<compile_context>
chip_gen: v7x
topology: tpu7x:2x2x1
jax: 0.10.0
libtpu: 0.0.40
codegen_flags: <defaults>
</compile_context>

<pallas_src>
import functools

import jax
import jax.numpy as jnp
import numpy as np
from jax.experimental import pallas as pl
from jax.experimental.pallas import tpu as pltpu


COUT_PAD = 128  # padded output-channel count -> lane-dense matmul N / stores


# ----------------------------------------------------------------------------
# Fused Pallas kernel: one image per grid step.
# ----------------------------------------------------------------------------
def _fused_head_kernel(rgb_ref, dep_ref, w_ref, shift_ref, o_ref, patches_ref,
                       *, H, W, C):
    """rgb_ref/dep_ref: (1,H,W,C); w_ref: (9*2C, COUT_PAD);
    shift_ref: (1, COUT_PAD); o_ref: (1, H*W, COUT_PAD);
    patches_ref: VMEM scratch (H, W, 9*2C) for the im2col operand."""
    C2 = 2 * C
    rgb = rgb_ref[0]          # (H, W, C)
    dep = dep_ref[0]          # (H, W, C)

    # im2col with in-kernel zero halo: zero the scratch once, then copy the
    # valid sub-window of the (virtually zero-padded) input for each tap.
    patches_ref[...] = jnp.zeros_like(patches_ref)
    for t in range(9):
        dy, dx = t // 3, t % 3
        dh0, dh1 = max(0, 1 - dy), min(H, H + 1 - dy)   # dest rows (output h)
        dw0, dw1 = max(0, 1 - dx), min(W, W + 1 - dx)   # dest cols (output w)
        nh, nw = dh1 - dh0, dw1 - dw0
        sh0, sw0 = dh0 + dy - 1, dw0 + dx - 1           # source offsets
        base = t * C2
        patches_ref[dh0:dh1, dw0:dw1, base:base + C] = (
            rgb[sh0:sh0 + nh, sw0:sw0 + nw, :])
        patches_ref[dh0:dh1, dw0:dw1, base + C:base + C2] = (
            dep[sh0:sh0 + nh, sw0:sw0 + nw, :])

    # Single MXU matmul for all 9 taps and all three heads.
    patches = patches_ref[...].reshape(H * W, 9 * C2)          # (H*W, 72)
    acc = jnp.dot(patches, w_ref[...],
                  preferred_element_type=jnp.float32)          # (H*W, 128)

    # Fused epilogue: folded-BN shift + ReLU, full-width lanes.
    out = jnp.maximum(acc + shift_ref[...], 0.0)
    o_ref[0] = out.astype(o_ref.dtype)


def _fused_head_pallas(rgb, depth, wmat, shift):
    """rgb/depth: (N,H,W,C) NHWC.  Returns (N, H*W, COUT_PAD)."""
    N, H, W, C = rgb.shape
    K, Cout = wmat.shape                      # (9*2C, COUT_PAD)
    kernel = functools.partial(_fused_head_kernel, H=H, W=W, C=C)
    return pl.pallas_call(
        kernel,
        out_shape=jax.ShapeDtypeStruct((N, H * W, Cout), rgb.dtype),
        grid=(N,),
        in_specs=[
            pl.BlockSpec((1, H, W, C), lambda n: (n, 0, 0, 0)),
            pl.BlockSpec((1, H, W, C), lambda n: (n, 0, 0, 0)),
            pl.BlockSpec((K, Cout), lambda n: (0, 0)),
            pl.BlockSpec((1, Cout), lambda n: (0, 0)),
        ],
        out_specs=pl.BlockSpec((1, H * W, Cout), lambda n: (n, 0, 0)),
        scratch_shapes=[pltpu.VMEM((H, W, K), jnp.float32)],
        compiler_params=pltpu.CompilerParams(
            dimension_semantics=("parallel",)),   # v7x: one image per core
    )(rgb, depth, wmat, shift)


# ----------------------------------------------------------------------------
# Module wrapper
# ----------------------------------------------------------------------------
def right_to_left_head_a_forward(rgb_small, depth_small, wmat, shift, *, out_c):
    """Inputs NHWC.  Returns (rd, rr, dd) in NHWC."""
    N, H, W, _ = rgb_small.shape
    c_rd, c_r = out_c
    out = _fused_head_pallas(rgb_small, depth_small, wmat, shift)
    out = out.reshape(N, H, W, -1)            # contiguous reshape (free)
    rd = out[..., 0:c_rd]
    rr = out[..., c_rd:c_rd + c_r]
    dd = out[..., c_rd + c_r:c_rd + 2 * c_r]
    return rd, rr, dd


# ----------------------------------------------------------------------------
# Parameter construction & folding (BN folded, heads fused, done once)
# ----------------------------------------------------------------------------
def make_basic_block_params(key, in_c, out_c, eps=1e-5):
    kw, kg, kb, km, kv = jax.random.split(key, 5)
    w = jax.random.normal(kw, (3, 3, in_c, out_c), jnp.float32) * 0.1  # HWIO
    gamma = 1.0 + 0.1 * jax.random.normal(kg, (out_c,), jnp.float32)
    beta = 0.1 * jax.random.normal(kb, (out_c,), jnp.float32)
    mean = 0.1 * jax.random.normal(km, (out_c,), jnp.float32)
    var = jnp.abs(jax.random.normal(kv, (out_c,), jnp.float32)) + 0.5
    scale = gamma / jnp.sqrt(var + eps)
    shift = beta - mean * scale
    return (w, scale, shift)


def fold_params(params, in_c, out_c):
    """Fold BN scale into the weights and build the fused block-structured
    weight / shift computing [rd | rr | dd] from the stacked [rgb | depth]."""
    w_rd, s_rd, b_rd = params["r_d"]
    w_r, s_r, b_r = params["r"]
    w_d, s_d, b_d = params["d"]
    C = in_c
    c_rd, c_r = out_c[0], out_c[1]
    c_tot = c_rd + 2 * c_r

    w_rd_f = w_rd * s_rd.reshape(1, 1, 1, -1)
    w_r_f = w_r * s_r.reshape(1, 1, 1, -1)
    w_d_f = w_d * s_d.reshape(1, 1, 1, -1)

    wc = jnp.zeros((3, 3, 2 * C, COUT_PAD), jnp.float32)
    wc = wc.at[:, :, 0:C, 0:c_rd].set(w_rd_f)                  # rgb   -> rd
    wc = wc.at[:, :, C:2 * C, 0:c_rd].set(w_rd_f)              # depth -> rd (rgb+depth)
    wc = wc.at[:, :, 0:C, c_rd:c_rd + c_r].set(w_r_f)          # rgb   -> rr
    wc = wc.at[:, :, C:2 * C, c_rd + c_r:c_tot].set(w_d_f)     # depth -> dd
    wmat = wc.reshape(9 * 2 * C, COUT_PAD)                     # K-major = tap, then [rgb|depth] chans

    shift = jnp.zeros((COUT_PAD,), jnp.float32)
    shift = shift.at[0:c_rd].set(b_rd)
    shift = shift.at[c_rd:c_rd + c_r].set(b_r)
    shift = shift.at[c_rd + c_r:c_tot].set(b_d)
    return wmat, shift.reshape(1, COUT_PAD)


# ----------------------------------------------------------------------------
# Pure-JAX reference (unfused) for correctness check
# ----------------------------------------------------------------------------
def basic_block_ref(x_nhwc, w, scale, shift):
    y = jax.lax.conv_general_dilated(
        x_nhwc, w, window_strides=(1, 1), padding="SAME",
        dimension_numbers=("NHWC", "HWIO", "NHWC"))
    y = y * scale.reshape(1, 1, 1, -1) + shift.reshape(1, 1, 1, -1)
    return jnp.maximum(y, 0.0)


def forward_ref(rgb, depth, params):
    rd = basic_block_ref(rgb + depth, *params["r_d"])
    rr = basic_block_ref(rgb, *params["r"])
    dd = basic_block_ref(depth, *params["d"])
    return rd, rr, dd


# ----------------------------------------------------------------------------
if __name__ == "__main__":
    # PyTorch-equivalent input: NCHW (2, 4, 16, 16); kernel layout is NHWC.
    N, C, H, W = 2, 4, 16, 16
    out_c = (8, 8)

    key = jax.random.PRNGKey(0)
    k_rgb, k_dep, k_rd, k_r, k_d = jax.random.split(key, 5)

    rgb_nchw = jax.random.normal(k_rgb, (N, C, H, W), jnp.float32)
    dep_nchw = jax.random.normal(k_dep, (N, C, H, W), jnp.float32)
    rgb = jnp.transpose(rgb_nchw, (0, 2, 3, 1))   # NHWC
    dep = jnp.transpose(dep_nchw, (0, 2, 3, 1))   # NHWC

    params = {
        "r_d": make_basic_block_params(k_rd, C, out_c[0]),
        "r":   make_basic_block_params(k_r,  C, out_c[1]),
        "d":   make_basic_block_params(k_d,  C, out_c[1]),
    }

    # Fold BN + fuse the three heads into one weight/shift (done once).
    wmat, shift = fold_params(params, C, out_c)

    fwd = jax.jit(functools.partial(right_to_left_head_a_forward, out_c=out_c))
    rd, rr, dd = fwd(rgb, dep, wmat, shift)
    jax.block_until_ready((rd, rr, dd))

    rd_ref, rr_ref, dd_ref = forward_ref(rgb, dep, params)
    np.testing.assert_allclose(np.asarray(rd), np.asarray(rd_ref), rtol=1e-4, atol=1e-4)
    np.testing.assert_allclose(np.asarray(rr), np.asarray(rr_ref), rtol=1e-4, atol=1e-4)
    np.testing.assert_allclose(np.asarray(dd), np.asarray(dd_ref), rtol=1e-4, atol=1e-4)

    print("KERNEL_OK")
</pallas_src>

<mosaic_0001>
module attributes {stable_mosaic.version = 11 : i64} {
  func.func @_fused_head_kernel(%arg0: i32, %arg1: memref<1x16x16x4xf32, #tpu.memory_space<vmem>>, %arg2: memref<1x16x16x4xf32, #tpu.memory_space<vmem>>, %arg3: memref<72x128xf32, #tpu.memory_space<vmem>>, %arg4: memref<1x128xf32, #tpu.memory_space<vmem>>, %arg5: memref<1x256x128xf32, #tpu.memory_space<vmem>>, %arg6: memref<16x16x72xf32, #tpu.memory_space<vmem>>) attributes {dimension_semantics = [#tpu.dimension_semantics<parallel>], iteration_bounds = array<i64: 2>, scalar_prefetch = 0 : i64, scratch_operands = 1 : i64, tpu.core_type = #tpu.core_type<tc>, window_params = [{transform_indices = @transform_0, window_bounds = array<i64: 1, 16, 16, 4>}, {transform_indices = @transform_1, window_bounds = array<i64: 1, 16, 16, 4>}, {pipeline_mode = #tpu.pipeline_mode<synchronous>, transform_indices = @transform_2, window_bounds = array<i64: 72, 128>}, {pipeline_mode = #tpu.pipeline_mode<synchronous>, transform_indices = @transform_3, window_bounds = array<i64: 1, 128>}, {transform_indices = @transform_4, window_bounds = array<i64: 1, 256, 128>}]} {
    %c0 = arith.constant 0 : index
    %c0_0 = arith.constant 0 : index
    %c0_1 = arith.constant 0 : index
    %c0_2 = arith.constant 0 : index
    %0 = vector.load %arg1[%c0, %c0_0, %c0_1, %c0_2] : memref<1x16x16x4xf32, #tpu.memory_space<vmem>>, vector<1x16x16x4xf32>
    %1 = vector.shape_cast %0 : vector<1x16x16x4xf32> to vector<16x16x4xf32>
    %c0_3 = arith.constant 0 : index
    %c0_4 = arith.constant 0 : index
    %c0_5 = arith.constant 0 : index
    %c0_6 = arith.constant 0 : index
    %2 = vector.load %arg2[%c0_3, %c0_4, %c0_5, %c0_6] : memref<1x16x16x4xf32, #tpu.memory_space<vmem>>, vector<1x16x16x4xf32>
    %3 = vector.shape_cast %2 : vector<1x16x16x4xf32> to vector<16x16x4xf32>
    %cst = arith.constant 0.000000e+00 : f32
    %4 = vector.broadcast %cst : f32 to vector<16x16x72xf32>
    %c0_7 = arith.constant 0 : index
    %c0_8 = arith.constant 0 : index
    %c0_9 = arith.constant 0 : index
    %5 = vector.load %arg6[%c0_7, %c0_8, %c0_9] : memref<16x16x72xf32, #tpu.memory_space<vmem>>, vector<16x16x72xf32>
    tpu.vector_store %arg6[%c0_7, %c0_8, %c0_9], %4 {strides = array<i32>} : memref<16x16x72xf32, #tpu.memory_space<vmem>>, vector<16x16x72xf32>,
    %6 = vector.extract_strided_slice %1 {offsets = [0, 0, 0], sizes = [15, 15, 4], strides = [1, 1, 1]} : vector<16x16x4xf32> to vector<15x15x4xf32>
    %c1 = arith.constant 1 : index
    %c1_10 = arith.constant 1 : index
    %c0_11 = arith.constant 0 : index
    %7 = vector.load %arg6[%c1, %c1_10, %c0_11] : memref<16x16x72xf32, #tpu.memory_space<vmem>>, vector<15x15x4xf32>
    tpu.vector_store %arg6[%c1, %c1_10, %c0_11], %6 {strides = array<i32>} : memref<16x16x72xf32, #tpu.memory_space<vmem>>, vector<15x15x4xf32>,
    %8 = vector.extract_strided_slice %3 {offsets = [0, 0, 0], sizes = [15, 15, 4], strides = [1, 1, 1]} : vector<16x16x4xf32> to vector<15x15x4xf32>
    %c1_12 = arith.constant 1 : index
    %c1_13 = arith.constant 1 : index
    %c4 = arith.constant 4 : index
    %9 = vector.load %arg6[%c1_12, %c1_13, %c4] : memref<16x16x72xf32, #tpu.memory_space<vmem>>, vector<15x15x4xf32>
    tpu.vector_store %arg6[%c1_12, %c1_13, %c4], %8 {strides = array<i32>} : memref<16x16x72xf32, #tpu.memory_space<vmem>>, vector<15x15x4xf32>,
    %10 = vector.extract_strided_slice %1 {offsets = [0, 0, 0], sizes = [15, 16, 4], strides = [1, 1, 1]} : vector<16x16x4xf32> to vector<15x16x4xf32>
    %c1_14 = arith.constant 1 : index
    %c0_15 = arith.constant 0 : index
    %c8 = arith.constant 8 : index
    %11 = vector.load %arg6[%c1_14, %c0_15, %c8] : memref<16x16x72xf32, #tpu.memory_space<vmem>>, vector<15x16x4xf32>
    tpu.vector_store %arg6[%c1_14, %c0_15, %c8], %10 {strides = array<i32>} : memref<16x16x72xf32, #tpu.memory_space<vmem>>, vector<15x16x4xf32>,
    %12 = vector.extract_strided_slice %3 {offsets = [0, 0, 0], sizes = [15, 16, 4], strides = [1, 1, 1]} : vector<16x16x4xf32> to vector<15x16x4xf32>
    %c1_16 = arith.constant 1 : index
    %c0_17 = arith.constant 0 : index
    %c12 = arith.constant 12 : index
    %13 = vector.load %arg6[%c1_16, %c0_17, %c12] : memref<16x16x72xf32, #tpu.memory_space<vmem>>, vector<15x16x4xf32>
    tpu.vector_store %arg6[%c1_16, %c0_17, %c12], %12 {strides = array<i32>} : memref<16x16x72xf32, #tpu.memory_space<vmem>>, vector<15x16x4xf32>,
    %14 = vector.extract_strided_slice %1 {offsets = [0, 1, 0], sizes = [15, 15, 4], strides = [1, 1, 1]} : vector<16x16x4xf32> to vector<15x15x4xf32>
    %c1_18 = arith.constant 1 : index
    %c0_19 = arith.constant 0 : index
    %c16 = arith.constant 16 : index
    %15 = vector.load %arg6[%c1_18, %c0_19, %c16] : memref<16x16x72xf32, #tpu.memory_space<vmem>>, vector<15x15x4xf32>
    tpu.vector_store %arg6[%c1_18, %c0_19, %c16], %14 {strides = array<i32>} : memref<16x16x72xf32, #tpu.memory_space<vmem>>, vector<15x15x4xf32>,
    %16 = vector.extract_strided_slice %3 {offsets = [0, 1, 0], sizes = [15, 15, 4], strides = [1, 1, 1]} : vector<16x16x4xf32> to vector<15x15x4xf32>
    %c1_20 = arith.constant 1 : index
    %c0_21 = arith.constant 0 : index
    %c20 = arith.constant 20 : index
    %17 = vector.load %arg6[%c1_20, %c0_21, %c20] : memref<16x16x72xf32, #tpu.memory_space<vmem>>, vector<15x15x4xf32>
    tpu.vector_store %arg6[%c1_20, %c0_21, %c20], %16 {strides = array<i32>} : memref<16x16x72xf32, #tpu.memory_space<vmem>>, vector<15x15x4xf32>,
    %18 = vector.extract_strided_slice %1 {offsets = [0, 0, 0], sizes = [16, 15, 4], strides = [1, 1, 1]} : vector<16x16x4xf32> to vector<16x15x4xf32>
    %c0_22 = arith.constant 0 : index
    %c1_23 = arith.constant 1 : index
    %c24 = arith.constant 24 : index
    %19 = vector.load %arg6[%c0_22, %c1_23, %c24] : memref<16x16x72xf32, #tpu.memory_space<vmem>>, vector<16x15x4xf32>
    tpu.vector_store %arg6[%c0_22, %c1_23, %c24], %18 {strides = array<i32>} : memref<16x16x72xf32, #tpu.memory_space<vmem>>, vector<16x15x4xf32>,
    %20 = vector.extract_strided_slice %3 {offsets = [0, 0, 0], sizes = [16, 15, 4], strides = [1, 1, 1]} : vector<16x16x4xf32> to vector<16x15x4xf32>
    %c0_24 = arith.constant 0 : index
    %c1_25 = arith.constant 1 : index
    %c28 = arith.constant 28 : index
    %21 = vector.load %arg6[%c0_24, %c1_25, %c28] : memref<16x16x72xf32, #tpu.memory_space<vmem>>, vector<16x15x4xf32>
    tpu.vector_store %arg6[%c0_24, %c1_25, %c28], %20 {strides = array<i32>} : memref<16x16x72xf32, #tpu.memory_space<vmem>>, vector<16x15x4xf32>,
    %c0_26 = arith.constant 0 : index
    %c0_27 = arith.constant 0 : index
    %c32 = arith.constant 32 : index
    %22 = vector.load %arg6[%c0_26, %c0_27, %c32] : memref<16x16x72xf32, #tpu.memory_space<vmem>>, vector<16x16x4xf32>
    tpu.vector_store %arg6[%c0_26, %c0_27, %c32], %1 {strides = array<i32>} : memref<16x16x72xf32, #tpu.memory_space<vmem>>, vector<16x16x4xf32>,
    %c0_28 = arith.constant 0 : index
    %c0_29 = arith.constant 0 : index
    %c36 = arith.constant 36 : index
    %23 = vector.load %arg6[%c0_28, %c0_29, %c36] : memref<16x16x72xf32, #tpu.memory_space<vmem>>, vector<16x16x4xf32>
    tpu.vector_store %arg6[%c0_28, %c0_29, %c36], %3 {strides = array<i32>} : memref<16x16x72xf32, #tpu.memory_space<vmem>>, vector<16x16x4xf32>,
    %24 = vector.extract_strided_slice %1 {offsets = [0, 1, 0], sizes = [16, 15, 4], strides = [1, 1, 1]} : vector<16x16x4xf32> to vector<16x15x4xf32>
    %c0_30 = arith.constant 0 : index
    %c0_31 = arith.constant 0 : index
    %c40 = arith.constant 40 : index
    %25 = vector.load %arg6[%c0_30, %c0_31, %c40] : memref<16x16x72xf32, #tpu.memory_space<vmem>>, vector<16x15x4xf32>
    tpu.vector_store %arg6[%c0_30, %c0_31, %c40], %24 {strides = array<i32>} : memref<16x16x72xf32, #tpu.memory_space<vmem>>, vector<16x15x4xf32>,
    %26 = vector.extract_strided_slice %3 {offsets = [0, 1, 0], sizes = [16, 15, 4], strides = [1, 1, 1]} : vector<16x16x4xf32> to vector<16x15x4xf32>
    %c0_32 = arith.constant 0 : index
    %c0_33 = arith.constant 0 : index
    %c44 = arith.constant 44 : index
    %27 = vector.load %arg6[%c0_32, %c0_33, %c44] : memref<16x16x72xf32, #tpu.memory_space<vmem>>, vector<16x15x4xf32>
    tpu.vector_store %arg6[%c0_32, %c0_33, %c44], %26 {strides = array<i32>} : memref<16x16x72xf32, #tpu.memory_space<vmem>>, vector<16x15x4xf32>,
    %28 = vector.extract_strided_slice %1 {offsets = [1, 0, 0], sizes = [15, 15, 4], strides = [1, 1, 1]} : vector<16x16x4xf32> to vector<15x15x4xf32>
    %c0_34 = arith.constant 0 : index
    %c1_35 = arith.constant 1 : index
    %c48 = arith.constant 48 : index
    %29 = vector.load %arg6[%c0_34, %c1_35, %c48] : memref<16x16x72xf32, #tpu.memory_space<vmem>>, vector<15x15x4xf32>
    tpu.vector_store %arg6[%c0_34, %c1_35, %c48], %28 {strides = array<i32>} : memref<16x16x72xf32, #tpu.memory_space<vmem>>, vector<15x15x4xf32>,
    %30 = vector.extract_strided_slice %3 {offsets = [1, 0, 0], sizes = [15, 15, 4], strides = [1, 1, 1]} : vector<16x16x4xf32> to vector<15x15x4xf32>
    %c0_36 = arith.constant 0 : index
    %c1_37 = arith.constant 1 : index
    %c52 = arith.constant 52 : index
    %31 = vector.load %arg6[%c0_36, %c1_37, %c52] : memref<16x16x72xf32, #tpu.memory_space<vmem>>, vector<15x15x4xf32>
    tpu.vector_store %arg6[%c0_36, %c1_37, %c52], %30 {strides = array<i32>} : memref<16x16x72xf32, #tpu.memory_space<vmem>>, vector<15x15x4xf32>,
    %32 = vector.extract_strided_slice %1 {offsets = [1, 0, 0], sizes = [15, 16, 4], strides = [1, 1, 1]} : vector<16x16x4xf32> to vector<15x16x4xf32>
    %c0_38 = arith.constant 0 : index
    %c0_39 = arith.constant 0 : index
    %c56 = arith.constant 56 : index
    %33 = vector.load %arg6[%c0_38, %c0_39, %c56] : memref<16x16x72xf32, #tpu.memory_space<vmem>>, vector<15x16x4xf32>
    tpu.vector_store %arg6[%c0_38, %c0_39, %c56], %32 {strides = array<i32>} : memref<16x16x72xf32, #tpu.memory_space<vmem>>, vector<15x16x4xf32>,
    %34 = vector.extract_strided_slice %3 {offsets = [1, 0, 0], sizes = [15, 16, 4], strides = [1, 1, 1]} : vector<16x16x4xf32> to vector<15x16x4xf32>
    %c0_40 = arith.constant 0 : index
    %c0_41 = arith.constant 0 : index
    %c60 = arith.constant 60 : index
    %35 = vector.load %arg6[%c0_40, %c0_41, %c60] : memref<16x16x72xf32, #tpu.memory_space<vmem>>, vector<15x16x4xf32>
    tpu.vector_store %arg6[%c0_40, %c0_41, %c60], %34 {strides = array<i32>} : memref<16x16x72xf32, #tpu.memory_space<vmem>>, vector<15x16x4xf32>,
    %36 = vector.extract_strided_slice %1 {offsets = [1, 1, 0], sizes = [15, 15, 4], strides = [1, 1, 1]} : vector<16x16x4xf32> to vector<15x15x4xf32>
    %c0_42 = arith.constant 0 : index
    %c0_43 = arith.constant 0 : index
    %c64 = arith.constant 64 : index
    %37 = vector.load %arg6[%c0_42, %c0_43, %c64] : memref<16x16x72xf32, #tpu.memory_space<vmem>>, vector<15x15x4xf32>
    tpu.vector_store %arg6[%c0_42, %c0_43, %c64], %36 {strides = array<i32>} : memref<16x16x72xf32, #tpu.memory_space<vmem>>, vector<15x15x4xf32>,
    %38 = vector.extract_strided_slice %3 {offsets = [1, 1, 0], sizes = [15, 15, 4], strides = [1, 1, 1]} : vector<16x16x4xf32> to vector<15x15x4xf32>
    %c0_44 = arith.constant 0 : index
    %c0_45 = arith.constant 0 : index
    %c68 = arith.constant 68 : index
    %39 = vector.load %arg6[%c0_44, %c0_45, %c68] : memref<16x16x72xf32, #tpu.memory_space<vmem>>, vector<15x15x4xf32>
    tpu.vector_store %arg6[%c0_44, %c0_45, %c68], %38 {strides = array<i32>} : memref<16x16x72xf32, #tpu.memory_space<vmem>>, vector<15x15x4xf32>,
    %c0_46 = arith.constant 0 : index
    %c0_47 = arith.constant 0 : index
    %c0_48 = arith.constant 0 : index
    %40 = vector.load %arg6[%c0_46, %c0_47, %c0_48] : memref<16x16x72xf32, #tpu.memory_space<vmem>>, vector<16x16x72xf32>
    %41 = vector.shape_cast %40 : vector<16x16x72xf32> to vector<256x72xf32>
    %c0_49 = arith.constant 0 : index
    %c0_50 = arith.constant 0 : index
    %42 = vector.load %arg3[%c0_49, %c0_50] : memref<72x128xf32, #tpu.memory_space<vmem>>, vector<72x128xf32>
    %cst_51 = arith.constant dense<0.000000e+00> : vector<256x128xf32>
    %43 = tpu.matmul %41, %42, %cst_51 {dimension_numbers = #tpu.dot_dimension_numbers<[1], [0], [0], [1], [0, 0, 1, 1], [], []>} : vector<256x72xf32>, vector<72x128xf32>, vector<256x128xf32> -> vector<256x128xf32>
    %c0_52 = arith.constant 0 : index
    %c0_53 = arith.constant 0 : index
    %44 = vector.load %arg4[%c0_52, %c0_53] : memref<1x128xf32, #tpu.memory_space<vmem>>, vector<1x128xf32>
    %45 = vector.broadcast %44 : vector<1x128xf32> to vector<256x128xf32>
    %46 = arith.addf %43, %45 : vector<256x128xf32>
    %cst_54 = arith.constant 0.000000e+00 : f32
    %47 = vector.broadcast %cst_54 : f32 to vector<256x128xf32>
    %48 = arith.maximumf %46, %47 : vector<256x128xf32>
    %c0_55 = arith.constant 0 : index
    %c0_56 = arith.constant 0 : index
    %c0_57 = arith.constant 0 : index
    %49 = vector.load %arg5[%c0_55, %c0_56, %c0_57] : memref<1x256x128xf32, #tpu.memory_space<vmem>>, vector<1x256x128xf32>
    %50 = vector.shape_cast %49 : vector<1x256x128xf32> to vector<256x128xf32>
    %51 = vector.shape_cast %48 : vector<256x128xf32> to vector<1x256x128xf32>
    tpu.vector_store %arg5[%c0_55, %c0_56, %c0_57], %51 {strides = array<i32>} : memref<1x256x128xf32, #tpu.memory_space<vmem>>, vector<1x256x128xf32>,
    return
  }
  func.func @transform_0(%arg0: i32) -> (i32, i32, i32, i32) {
    %c0_i32 = arith.constant 0 : i32
    %c0_i32_0 = arith.constant 0 : i32
    %c0_i32_1 = arith.constant 0 : i32
    %c0_i32_2 = arith.constant 0 : i32
    return %arg0, %c0_i32, %c0_i32_0, %c0_i32_1 : i32, i32, i32, i32
  }
  func.func @transform_1(%arg0: i32) -> (i32, i32, i32, i32) {
    %c0_i32 = arith.constant 0 : i32
    %c0_i32_0 = arith.constant 0 : i32
    %c0_i32_1 = arith.constant 0 : i32
    %c0_i32_2 = arith.constant 0 : i32
    return %arg0, %c0_i32, %c0_i32_0, %c0_i32_1 : i32, i32, i32, i32
  }
  func.func @transform_2(%arg0: i32) -> (i32, i32) {
    %c0_i32 = arith.constant 0 : i32
    %c0_i32_0 = arith.constant 0 : i32
    %c0_i32_1 = arith.constant 0 : i32
    return %c0_i32, %c0_i32_0 : i32, i32
  }
  func.func @transform_3(%arg0: i32) -> (i32, i32) {
    %c0_i32 = arith.constant 0 : i32
    %c0_i32_0 = arith.constant 0 : i32
    %c0_i32_1 = arith.constant 0 : i32
    return %c0_i32, %c0_i32_0 : i32, i32
  }
  func.func @transform_4(%arg0: i32) -> (i32, i32, i32) {
    %c0_i32 = arith.constant 0 : i32
    %c0_i32_0 = arith.constant 0 : i32
    %c0_i32_1 = arith.constant 0 : i32
    return %arg0, %c0_i32, %c0_i32_0 : i32, i32, i32
  }
}

</mosaic_0001>

<llo_original>
// kernel: right_to_left_head_a_forward.1
$region0: #{right_to_left_head_a_forward.1}
  #allocation0 [shape = 'u32[]', space=smem, size = 0x4, offset = 0x4, fixed_abs, tag = 'smem constant byte address 0x4 - core index']
  #allocation1 [shape = 'u32[144,128]{1,0:T(1,128)}', space=vmem, size = 0x12000, scoped, tag = 'internal scratch']
  #allocation2 [shape = 'f32[16,16,72]{2,1,0:T(8,128)}', space=vmem, size = 0x20000, scoped, tag = 'scratch operand']
  %s0 = inlined_call_operand.vmem [shape: f32[2,16,16,4], index: 0, kind: input, shape index: {}]
  %s1 = inlined_call_operand.vmem [shape: f32[2,16,16,4], index: 1, kind: input, shape index: {}]
  %s2 = inlined_call_operand.vmem [shape: f32[72,128], index: 2, kind: input, shape index: {}]
  %s3 = inlined_call_operand.vmem [shape: f32[1,128], index: 3, kind: input, shape index: {}]
  %s4 = inlined_call_operand.vmem [shape: f32[2,256,128], index: 4, kind: output, shape index: {}]
  %s5 = sld [smem:[#allocation0]]
  $region49: #{right_to_left_head_a_forward.1} parent=0
    _
  %s7 = ssub.s32 1, %s5
  %s8 = scalar_select 0, %s7, %s5
  loop: start=0, step=1, limit=4
  $region2: #{right_to_left_head_a_forward.1} parent=0 // loop_pre_header
    _
  $region3: #{right_to_left_head_a_forward.1} parent=0 // loop_header
    %s10 = sphi 0, %s14
    %p11 = scmp.ge.s32.totalorder %s10, 4
    %s20 = sphi 0, %s22
    %s23 = sphi 0, %s20
    %s24 = sphi 0, %s23
    %s40 = sphi 0, %s24
    %s46 = sphi 0, %s48
    %s49 = sphi 0, %s46
    %s50 = sphi 0, %s49
    %s66 = sphi 0, %s50
    %s70 = sphi 0, %s70
    %s72 = sphi 0, %s70
    %s73 = sphi 0, %s72
    %s87 = sphi 0, %s73
    %s91 = sphi 0, %s91
    %s93 = sphi 0, %s91
    %s94 = sphi 0, %s93
    %s108 = sphi 0, %s94
    %s114 = sphi 0, %s116
    %s117 = sphi 0, %s114
    %s118 = sphi 0, %s117
    %s134 = sphi 0, %s118
  $region4: #{right_to_left_head_a_forward.1} parent=0 // loop_header_branch
    %13 = sbr.rel (%p11) target = $region8
  $region5: #{right_to_left_head_a_forward.1} parent=0 // loop_body
    %s15 = ssub.s32 %s10, 1
    %s16 = ssub.s32 %s10, 2
    %s17 = sadd.s32 %s10, 1
    %s18 = ssub.s32 %s10, %s17
    %p19 = scmp.eq.s32.totalorder %s18, 0
    %s21 = sadd.s32 %s20, 1
    %s22 = scalar_select %p19, %s20, %s21
    %p25 = pneg %p19
    %p26 = scmp.eq.s32.totalorder %s10, 1
    %p27 = por %p25, %p26
    %p28 = scmp.ne.s32.totalorder %s20, %s23
    %p29 = scmp.eq.s32.totalorder %s10, 0
    %p30 = por %p28, %p29
    %p31 = scmp.ne.s32.totalorder %s20, %s23
    %p32 = scmp.eq.s32.totalorder %s15, 1
    %p33 = por %p31, %p32
    %p34 = scmp.ne.s32.totalorder %s23, %s24
    %p35 = scmp.eq.s32.totalorder %s15, 0
    %p36 = por %p34, %p35
    %p37 = scmp.ne.s32.totalorder %s23, %s24
    %p38 = scmp.eq.s32.totalorder %s16, 1
    %p39 = por %p37, %p38
    %p41 = scmp.ne.s32.totalorder %s24, %s40
    %p42 = scmp.eq.s32.totalorder %s16, 0
    %p43 = por %p41, %p42
    %s44 = ssub.s32 %s10, %s17
    %p45 = scmp.eq.s32.totalorder %s44, 0
    %s47 = sadd.s32 %s46, 1
    %s48 = scalar_select %p45, %s46, %s47
    %p51 = pneg %p45
    %p52 = scmp.eq.s32.totalorder %s10, 1
    %p53 = por %p51, %p52
    %p54 = scmp.ne.s32.totalorder %s46, %s49
    %p55 = scmp.eq.s32.totalorder %s10, 0
    %p56 = por %p54, %p55
    %p57 = scmp.ne.s32.totalorder %s46, %s49
    %p58 = scmp.eq.s32.totalorder %s15, 1
    %p59 = por %p57, %p58
    %p60 = scmp.ne.s32.totalorder %s49, %s50
    %p61 = scmp.eq.s32.totalorder %s15, 0
    %p62 = por %p60, %p61
    %p63 = scmp.ne.s32.totalorder %s49, %s50
    %p64 = scmp.eq.s32.totalorder %s16, 1
    %p65 = por %p63, %p64
    %p67 = scmp.ne.s32.totalorder %s50, %s66
    %p68 = scmp.eq.s32.totalorder %s16, 0
    %p69 = por %p67, %p68
    %s71 = sadd.s32 %s70, 1
    %p74 = scmp.eq.s32.totalorder %s10, 1
    %p75 = scmp.ne.s32.totalorder %s70, %s72
    %p76 = scmp.eq.s32.totalorder %s10, 0
    %p77 = por %p75, %p76
    %p78 = scmp.ne.s32.totalorder %s70, %s72
    %p79 = scmp.eq.s32.totalorder %s15, 1
    %p80 = por %p78, %p79
    %p81 = scmp.ne.s32.totalorder %s72, %s73
    %p82 = scmp.eq.s32.totalorder %s15, 0
    %p83 = por %p81, %p82
    %p84 = scmp.ne.s32.totalorder %s72, %s73
    %p85 = scmp.eq.s32.totalorder %s16, 1
    %p86 = por %p84, %p85
    %p88 = scmp.ne.s32.totalorder %s73, %s87
    %p89 = scmp.eq.s32.totalorder %s16, 0
    %p90 = por %p88, %p89
    %s92 = sadd.s32 %s91, 1
    %p95 = scmp.eq.s32.totalorder %s10, 1
    %p96 = scmp.ne.s32.totalorder %s91, %s93
    %p97 = scmp.eq.s32.totalorder %s10, 0
    %p98 = por %p96, %p97
    %p99 = scmp.ne.s32.totalorder %s91, %s93
    %p100 = scmp.eq.s32.totalorder %s15, 1
    %p101 = por %p99, %p100
    %p102 = scmp.ne.s32.totalorder %s93, %s94
    %p103 = scmp.eq.s32.totalorder %s15, 0
    %p104 = por %p102, %p103
    %p105 = scmp.ne.s32.totalorder %s93, %s94
    %p106 = scmp.eq.s32.totalorder %s16, 1
    %p107 = por %p105, %p106
    %p109 = scmp.ne.s32.totalorder %s94, %s108
    %p110 = scmp.eq.s32.totalorder %s16, 0
    %p111 = por %p109, %p110
    %s112 = ssub.s32 %s10, %s17
    %p113 = scmp.eq.s32.totalorder %s112, 0
    %s115 = sadd.s32 %s114, 1
    %s116 = scalar_select %p113, %s114, %s115
    %p119 = pneg %p113
    %p120 = scmp.eq.s32.totalorder %s10, 1
    %p121 = por %p119, %p120
    %p122 = scmp.ne.s32.totalorder %s114, %s117
    %p123 = scmp.eq.s32.totalorder %s10, 0
    %p124 = por %p122, %p123
    %p125 = scmp.ne.s32.totalorder %s114, %s117
    %p126 = scmp.eq.s32.totalorder %s15, 1
    %p127 = por %p125, %p126
    %p128 = scmp.ne.s32.totalorder %s117, %s118
    %p129 = scmp.eq.s32.totalorder %s15, 0
    %p130 = por %p128, %p129
    %p131 = scmp.ne.s32.totalorder %s117, %s118
    %p132 = scmp.eq.s32.totalorder %s16, 1
    %p133 = por %p131, %p132
    %p135 = scmp.ne.s32.totalorder %s118, %s134
    %p136 = scmp.eq.s32.totalorder %s16, 0
    %p137 = por %p135, %p136
    %p138 = scmp.le.s32.totalorder 1, %s10
    %p139 = scmp.lt.s32.totalorder %s10, 3
    %p140 = pnand %p138, %p139
    %p141 = pneg %p140
    // Predicated region
    $region9: #{right_to_left_head_a_forward.1} parent=5 // pred_check
      _
    $region10: #{right_to_left_head_a_forward.1} parent=5 // pred_check_branch
      %143 = sbr.rel (%p140) target = $region12
    $region11: #{right_to_left_head_a_forward.1} parent=5 // pred_region
      %s144 = ssub.s32 %s10, 1
      // Predicated region
      $region13: #{right_to_left_head_a_forward.1} parent=11 // pred_check
        %p145 = pneg %p83
      $region14: #{right_to_left_head_a_forward.1} parent=11 // pred_check_branch
        %147 = sbr.rel (%p145) target = $region16
      $region15: #{right_to_left_head_a_forward.1} parent=11 // pred_region
        _
      $region16: #{right_to_left_head_a_forward.1} parent=11 // pred_fallthru
        _
      // Predicated region
      $region17: #{right_to_left_head_a_forward.1} parent=11 // pred_check
        %p148 = pneg %p104
      $region18: #{right_to_left_head_a_forward.1} parent=11 // pred_check_branch
        %150 = sbr.rel (%p148) target = $region20
      $region19: #{right_to_left_head_a_forward.1} parent=11 // pred_region
        _
      $region20: #{right_to_left_head_a_forward.1} parent=11 // pred_fallthru
        _
    $region12: #{right_to_left_head_a_forward.1} parent=5 // pred_fallthru
      _
    %p151 = scmp.lt.s32.totalorder %s10, 2
    // Predicated region
    $region21: #{right_to_left_head_a_forward.1} parent=5 // pred_check
      %p152 = pneg %p151
    $region22: #{right_to_left_head_a_forward.1} parent=5 // pred_check_branch
      %154 = sbr.rel (%p152) target = $region24
    $region23: #{right_to_left_head_a_forward.1} parent=5 // pred_region
      // Predicated region
      $region25: #{right_to_left_head_a_forward.1} parent=23 // pred_check
        %p155 = pneg %p30
      $region26: #{right_to_left_head_a_forward.1} parent=23 // pred_check_branch
        %157 = sbr.rel (%p155) target = $region28
      $region27: #{right_to_left_head_a_forward.1} parent=23 // pred_region
        %p158 = scmp.lt.s32.totalorder %s10, 1
        %s159 = scalar_select %p158, %s10, 1
        %s160 = smul.addr %s159, 32
        %s161 = smul.addr %s160, 8
        %s162 = scalar_lea.vmem %s0, %s161
      $region28: #{right_to_left_head_a_forward.1} parent=23 // pred_fallthru
        _
      // Predicated region
      $region29: #{right_to_left_head_a_forward.1} parent=23 // pred_check
        %p163 = pneg %p56
      $region30: #{right_to_left_head_a_forward.1} parent=23 // pred_check_branch
        %165 = sbr.rel (%p163) target = $region32
      $region31: #{right_to_left_head_a_forward.1} parent=23 // pred_region
        %p166 = scmp.lt.s32.totalorder %s10, 1
        %s167 = scalar_select %p166, %s10, 1
        %s168 = smul.addr %s167, 32
        %s169 = smul.addr %s168, 8
        %s170 = scalar_lea.vmem %s1, %s169
      $region32: #{right_to_left_head_a_forward.1} parent=23 // pred_fallthru
        _
    $region24: #{right_to_left_head_a_forward.1} parent=5 // pred_fallthru
      _
    %p171 = scmp.le.s32.totalorder 1, %s10
    %p172 = scmp.lt.s32.totalorder %s10, 3
    %p173 = pnand %p171, %p172
    %p174 = pneg %p173
    // Predicated region
    $region33: #{right_to_left_head_a_forward.1} parent=5 // pred_check
      _
    $region34: #{right_to_left_head_a_forward.1} parent=5 // pred_check_branch
      %176 = sbr.rel (%p173) target = $region36
    $region35: #{right_to_left_head_a_forward.1} parent=5 // pred_region
      %s177 = ssub.s32 %s10, 1
      %p178 = scmp.lt.s32.totalorder %s15, 1
      %s179 = scalar_select %p178, %s15, 1
      %s180 = smul.addr %s179, 32
      %s181 = smul.addr %s180, 8
      %s182 = scalar_lea.vmem %s0, %s181
      %p183 = pneg %p36
      %p184 = pneg %p33
      %p185 = scmp.lt.s32.totalorder %s15, 1
      %s186 = scalar_select %p185, %s15, 1
      %s187 = smul.addr %s186, 32
      %s188 = smul.addr %s187, 8
      %s189 = scalar_lea.vmem %s1, %s188
      %p190 = pneg %p62
      %p191 = pneg %p59
      %p192 = pneg %p83
      %p193 = pneg %p80
      %p194 = pneg %p104
      %p195 = pneg %p101
      %p196 = pneg %p130
      %p197 = pneg %p127
      %p198 = scmp.lt.s32.totalorder %s15, 1
      %s199 = scalar_select %p198, %s15, 1
      %s200 = smul.addr %s199, 32
      %s201 = smul.addr %s200, 8
      %s202 = scalar_lea.vmem %s4, %s201
      %p203 = scmp.lt.s32.totalorder %s15, 1
      %s204 = scalar_select %p203, %s15, 1
      %s205 = smul.addr %s204, 32
      %s206 = smul.addr %s205, 8
      %s207 = scalar_lea.vmem %s0, %s206
      %p208 = scmp.lt.s32.totalorder %s15, 1
      %s209 = scalar_select %p208, %s15, 1
      %s210 = smul.addr %s209, 32
      %s211 = smul.addr %s210, 8
      %s212 = scalar_lea.vmem %s1, %s211
      %p213 = scmp.lt.s32.totalorder %s15, 1
      %s214 = scalar_select %p213, %s15, 1
      %s215 = smul.addr %s214, 32
      %s216 = smul.addr %s215, 8
      %s217 = scalar_lea.vmem %s4, %s216
      %v218 = vld [vmem:[%s207] sm:$0xff]
      %v219 = vld [vmem:[%s207 + $0x8] sm:$0xff]
      %v220 = vld [vmem:[%s207 + $0x10] sm:$0xff]
      %v221 = vld [vmem:[%s207 + $0x18] sm:$0xff]
      %v222 = vld [vmem:[%s207 + $0x20] sm:$0xff]
      %v223 = vld [vmem:[%s207 + $0x28] sm:$0xff]
      %v224 = vld [vmem:[%s207 + $0x30] sm:$0xff]
      %v225 = vld [vmem:[%s207 + $0x38] sm:$0xff]
      %v226 = vld [vmem:[%s207 + $0x40] sm:$0xff]
      %v227 = vld [vmem:[%s207 + $0x48] sm:$0xff]
      %v228 = vld [vmem:[%s207 + $0x50] sm:$0xff]
      %v229 = vld [vmem:[%s207 + $0x58] sm:$0xff]
      %v230 = vld [vmem:[%s207 + $0x60] sm:$0xff]
      %v231 = vld [vmem:[%s207 + $0x68] sm:$0xff]
      %v232 = vld [vmem:[%s207 + $0x70] sm:$0xff]
      %v233 = vld [vmem:[%s207 + $0x78] sm:$0xff]
      %v234 = vld [vmem:[%s207 + $0x80] sm:$0xff]
      %v235 = vld [vmem:[%s207 + $0x88] sm:$0xff]
      %v236 = vld [vmem:[%s207 + $0x90] sm:$0xff]
      %v237 = vld [vmem:[%s207 + $0x98] sm:$0xff]
      %v238 = vld [vmem:[%s207 + $0xa0] sm:$0xff]
      %v239 = vld [vmem:[%s207 + $0xa8] sm:$0xff]
      %v240 = vld [vmem:[%s207 + $0xb0] sm:$0xff]
      %v241 = vld [vmem:[%s207 + $0xb8] sm:$0xff]
      %v242 = vld [vmem:[%s207 + $0xc0] sm:$0xff]
      %v243 = vld [vmem:[%s207 + $0xc8] sm:$0xff]
      %v244 = vld [vmem:[%s207 + $0xd0] sm:$0xff]
      %v245 = vld [vmem:[%s207 + $0xd8] sm:$0xff]
      %v246 = vld [vmem:[%s207 + $0xe0] sm:$0xff]
      %v247 = vld [vmem:[%s207 + $0xe8] sm:$0xff]
      %v248 = vld [vmem:[%s207 + $0xf0] sm:$0xff]
      %v249 = vld [vmem:[%s207 + $0xf8] sm:$0xff]
      %v250 = vld [vmem:[%s212] sm:$0xff]
      %v251 = vld [vmem:[%s212 + $0x8] sm:$0xff]
      %v252 = vld [vmem:[%s212 + $0x10] sm:$0xff]
      %v253 = vld [vmem:[%s212 + $0x18] sm:$0xff]
      %v254 = vld [vmem:[%s212 + $0x20] sm:$0xff]
      %v255 = vld [vmem:[%s212 + $0x28] sm:$0xff]
      %v256 = vld [vmem:[%s212 + $0x30] sm:$0xff]
      %v257 = vld [vmem:[%s212 + $0x38] sm:$0xff]
      %v258 = vld [vmem:[%s212 + $0x40] sm:$0xff]
      %v259 = vld [vmem:[%s212 + $0x48] sm:$0xff]
      %v260 = vld [vmem:[%s212 + $0x50] sm:$0xff]
      %v261 = vld [vmem:[%s212 + $0x58] sm:$0xff]
      %v262 = vld [vmem:[%s212 + $0x60] sm:$0xff]
      %v263 = vld [vmem:[%s212 + $0x68] sm:$0xff]
      %v264 = vld [vmem:[%s212 + $0x70] sm:$0xff]
      %v265 = vld [vmem:[%s212 + $0x78] sm:$0xff]
      %v266 = vld [vmem:[%s212 + $0x80] sm:$0xff]
      %v267 = vld [vmem:[%s212 + $0x88] sm:$0xff]
      %v268 = vld [vmem:[%s212 + $0x90] sm:$0xff]
      %v269 = vld [vmem:[%s212 + $0x98] sm:$0xff]
      %v270 = vld [vmem:[%s212 + $0xa0] sm:$0xff]
      %v271 = vld [vmem:[%s212 + $0xa8] sm:$0xff]
      %v272 = vld [vmem:[%s212 + $0xb0] sm:$0xff]
      %v273 = vld [vmem:[%s212 + $0xb8] sm:$0xff]
      %v274 = vld [vmem:[%s212 + $0xc0] sm:$0xff]
      %v275 = vld [vmem:[%s212 + $0xc8] sm:$0xff]
      %v276 = vld [vmem:[%s212 + $0xd0] sm:$0xff]
      %v277 = vld [vmem:[%s212 + $0xd8] sm:$0xff]
      %v278 = vld [vmem:[%s212 + $0xe0] sm:$0xff]
      %v279 = vld [vmem:[%s212 + $0xe8] sm:$0xff]
      %v280 = vld [vmem:[%s212 + $0xf0] sm:$0xff]
      %v281 = vld [vmem:[%s212 + $0xf8] sm:$0xff]
      %vm282 = vcmask 588800
      %283 = vst.msk [vmem:[#allocation2] sm:$0xff] %vm282, 0.0
      %284 = vst.msk [vmem:[#allocation2 + $0x8] sm:$0xff] %vm282, 0.0
      %285 = vst.msk [vmem:[#allocation2 + $0x10] sm:$0xff] %vm282, 0.0
      %286 = vst.msk [vmem:[#allocation2 + $0x18] sm:$0xff] %vm282, 0.0
      %287 = vst.msk [vmem:[#allocation2 + $0x20] sm:$0xff] %vm282, 0.0
      %288 = vst.msk [vmem:[#allocation2 + $0x28] sm:$0xff] %vm282, 0.0
      %289 = vst.msk [vmem:[#allocation2 + $0x30] sm:$0xff] %vm282, 0.0
      %290 = vst.msk [vmem:[#allocation2 + $0x38] sm:$0xff] %vm282, 0.0
      %291 = vst.msk [vmem:[#allocation2 + $0x40] sm:$0xff] %vm282, 0.0
      %292 = vst.msk [vmem:[#allocation2 + $0x48] sm:$0xff] %vm282, 0.0
      %293 = vst.msk [vmem:[#allocation2 + $0x50] sm:$0xff] %vm282, 0.0
      %294 = vst.msk [vmem:[#allocation2 + $0x58] sm:$0xff] %vm282, 0.0
      %295 = vst.msk [vmem:[#allocation2 + $0x60] sm:$0xff] %vm282, 0.0
      %296 = vst.msk [vmem:[#allocation2 + $0x68] sm:$0xff] %vm282, 0.0
      %297 = vst.msk [vmem:[#allocation2 + $0x70] sm:$0xff] %vm282, 0.0
      %298 = vst.msk [vmem:[#allocation2 + $0x78] sm:$0xff] %vm282, 0.0
      %299 = vst.msk [vmem:[#allocation2 + $0x80] sm:$0xff] %vm282, 0.0
      %300 = vst.msk [vmem:[#allocation2 + $0x88] sm:$0xff] %vm282, 0.0
      %301 = vst.msk [vmem:[#allocation2 + $0x90] sm:$0xff] %vm282, 0.0
      %302 = vst.msk [vmem:[#allocation2 + $0x98] sm:$0xff] %vm282, 0.0
      %303 = vst.msk [vmem:[#allocation2 + $0xa0] sm:$0xff] %vm282, 0.0
      %304 = vst.msk [vmem:[#allocation2 + $0xa8] sm:$0xff] %vm282, 0.0
      %305 = vst.msk [vmem:[#allocation2 + $0xb0] sm:$0xff] %vm282, 0.0
      %306 = vst.msk [vmem:[#allocation2 + $0xb8] sm:$0xff] %vm282, 0.0
      %307 = vst.msk [vmem:[#allocation2 + $0xc0] sm:$0xff] %vm282, 0.0
      %308 = vst.msk [vmem:[#allocation2 + $0xc8] sm:$0xff] %vm282, 0.0
      %309 = vst.msk [vmem:[#allocation2 + $0xd0] sm:$0xff] %vm282, 0.0
      %310 = vst.msk [vmem:[#allocation2 + $0xd8] sm:$0xff] %vm282, 0.0
      %311 = vst.msk [vmem:[#allocation2 + $0xe0] sm:$0xff] %vm282, 0.0
      %312 = vst.msk [vmem:[#allocation2 + $0xe8] sm:$0xff] %vm282, 0.0
      %313 = vst.msk [vmem:[#allocation2 + $0xf0] sm:$0xff] %vm282, 0.0
      %314 = vst.msk [vmem:[#allocation2 + $0xf8] sm:$0xff] %vm282, 0.0
      %s315 = scalar_lea.vmem [#allocation2], 16
      %vm316 = vcmask 31744
      %317 = vst.msk [vmem:[%s315 + $0x1] sm:$0xff] %vm316, %v218
      %vm318 = vcmask 30720
      %319 = vst.msk [vmem:[%s315 + $0x9] sm:$0x7f] %vm318, %v219
      %320 = vst.msk [vmem:[%s315 + $0x11] sm:$0xff] %vm316, %v220
      %321 = vst.msk [vmem:[%s315 + $0x19] sm:$0x7f] %vm318, %v221
      %322 = vst.msk [vmem:[%s315 + $0x21] sm:$0xff] %vm316, %v222
      %323 = vst.msk [vmem:[%s315 + $0x29] sm:$0x7f] %vm318, %v223
      %324 = vst.msk [vmem:[%s315 + $0x31] sm:$0xff] %vm316, %v224
      %325 = vst.msk [vmem:[%s315 + $0x39] sm:$0x7f] %vm318, %v225
      %326 = vst.msk [vmem:[%s315 + $0x41] sm:$0xff] %vm316, %v226
      %327 = vst.msk [vmem:[%s315 + $0x49] sm:$0x7f] %vm318, %v227
      %328 = vst.msk [vmem:[%s315 + $0x51] sm:$0xff] %vm316, %v228
      %329 = vst.msk [vmem:[%s315 + $0x59] sm:$0x7f] %vm318, %v229
      %330 = vst.msk [vmem:[%s315 + $0x61] sm:$0xff] %vm316, %v230
      %331 = vst.msk [vmem:[%s315 + $0x69] sm:$0x7f] %vm318, %v231
      %332 = vst.msk [vmem:[%s315 + $0x71] sm:$0xff] %vm316, %v232
      %333 = vst.msk [vmem:[%s315 + $0x79] sm:$0x7f] %vm318, %v233
      %334 = vst.msk [vmem:[%s315 + $0x81] sm:$0xff] %vm316, %v234
      %335 = vst.msk [vmem:[%s315 + $0x89] sm:$0x7f] %vm318, %v235
      %336 = vst.msk [vmem:[%s315 + $0x91] sm:$0xff] %vm316, %v236
      %337 = vst.msk [vmem:[%s315 + $0x99] sm:$0x7f] %vm318, %v237
      %338 = vst.msk [vmem:[%s315 + $0xa1] sm:$0xff] %vm316, %v238
      %339 = vst.msk [vmem:[%s315 + $0xa9] sm:$0x7f] %vm318, %v239
      %340 = vst.msk [vmem:[%s315 + $0xb1] sm:$0xff] %vm316, %v240
      %341 = vst.msk [vmem:[%s315 + $0xb9] sm:$0x7f] %vm318, %v241
      %342 = vst.msk [vmem:[%s315 + $0xc1] sm:$0xff] %vm316, %v242
      %343 = vst.msk [vmem:[%s315 + $0xc9] sm:$0x7f] %vm318, %v243
      %344 = vst.msk [vmem:[%s315 + $0xd1] sm:$0xff] %vm316, %v244
      %345 = vst.msk [vmem:[%s315 + $0xd9] sm:$0x7f] %vm318, %v245
      %346 = vst.msk [vmem:[%s315 + $0xe1] sm:$0xff] %vm316, %v246
      %347 = vst.msk [vmem:[%s315 + $0xe9] sm:$0x7f] %vm318, %v247
      %378 = vrot.lane.b32.xlu0 %v250, 4
      %v379 = vpop.permute.xlu0 %378
      %380 = vrot.lane.b32.xlu0 %v251, 4
      %v381 = vpop.permute.xlu0 %380
      %382 = vrot.lane.b32.xlu0 %v252, 4
      %v383 = vpop.permute.xlu0 %382
      %384 = vrot.lane.b32.xlu0 %v253, 4
      %v385 = vpop.permute.xlu0 %384
      %386 = vrot.lane.b32.xlu0 %v254, 4
      %v387 = vpop.permute.xlu0 %386
      %388 = vrot.lane.b32.xlu0 %v255, 4
      %v389 = vpop.permute.xlu0 %388
      %390 = vrot.lane.b32.xlu0 %v256, 4
      %v391 = vpop.permute.xlu0 %390
      %392 = vrot.lane.b32.xlu0 %v257, 4
      %v393 = vpop.permute.xlu0 %392
      %394 = vrot.lane.b32.xlu0 %v258, 4
      %v395 = vpop.permute.xlu0 %394
      %396 = vrot.lane.b32.xlu0 %v259, 4
      %v397 = vpop.permute.xlu0 %396
      %398 = vrot.lane.b32.xlu0 %v260, 4
      %v399 = vpop.permute.xlu0 %398
      %400 = vrot.lane.b32.xlu0 %v261, 4
      %v401 = vpop.permute.xlu0 %400
      %402 = vrot.lane.b32.xlu0 %v262, 4
      %v403 = vpop.permute.xlu0 %402
      %404 = vrot.lane.b32.xlu0 %v263, 4
      %v405 = vpop.permute.xlu0 %404
      %406 = vrot.lane.b32.xlu0 %v264, 4
      %v407 = vpop.permute.xlu0 %406
      %408 = vrot.lane.b32.xlu0 %v265, 4
      %v409 = vpop.permute.xlu0 %408
      %410 = vrot.lane.b32.xlu0 %v266, 4
      %v411 = vpop.permute.xlu0 %410
      %412 = vrot.lane.b32.xlu0 %v267, 4
      %v413 = vpop.permute.xlu0 %412
      %414 = vrot.lane.b32.xlu0 %v268, 4
      %v415 = vpop.permute.xlu0 %414
      %416 = vrot.lane.b32.xlu0 %v269, 4
      %v417 = vpop.permute.xlu0 %416
      %418 = vrot.lane.b32.xlu0 %v270, 4
      %v419 = vpop.permute.xlu0 %418
      %420 = vrot.lane.b32.xlu0 %v271, 4
      %v421 = vpop.permute.xlu0 %420
      %422 = vrot.lane.b32.xlu0 %v272, 4
      %v423 = vpop.permute.xlu0 %422
      %424 = vrot.lane.b32.xlu0 %v273, 4
      %v425 = vpop.permute.xlu0 %424
      %426 = vrot.lane.b32.xlu0 %v274, 4
      %v427 = vpop.permute.xlu0 %426
      %428 = vrot.lane.b32.xlu0 %v275, 4
      %v429 = vpop.permute.xlu0 %428
      %430 = vrot.lane.b32.xlu0 %v276, 4
      %v431 = vpop.permute.xlu0 %430
      %432 = vrot.lane.b32.xlu0 %v277, 4
      %v433 = vpop.permute.xlu0 %432
      %434 = vrot.lane.b32.xlu0 %v278, 4
      %v435 = vpop.permute.xlu0 %434
      %436 = vrot.lane.b32.xlu0 %v279, 4
      %v437 = vpop.permute.xlu0 %436
      %vm468 = vcmask 64544
      %469 = vst.msk [vmem:[%s315 + $0x1] sm:$0xff] %vm468, %v379
      %vm470 = vcmask 63520
      %471 = vst.msk [vmem:[%s315 + $0x9] sm:$0x7f] %vm470, %v381
      %472 = vst.msk [vmem:[%s315 + $0x11] sm:$0xff] %vm468, %v383
      %473 = vst.msk [vmem:[%s315 + $0x19] sm:$0x7f] %vm470, %v385
      %474 = vst.msk [vmem:[%s315 + $0x21] sm:$0xff] %vm468, %v387
      %475 = vst.msk [vmem:[%s315 + $0x29] sm:$0x7f] %vm470, %v389
      %476 = vst.msk [vmem:[%s315 + $0x31] sm:$0xff] %vm468, %v391
      %477 = vst.msk [vmem:[%s315 + $0x39] sm:$0x7f] %vm470, %v393
      %478 = vst.msk [vmem:[%s315 + $0x41] sm:$0xff] %vm468, %v395
      %479 = vst.msk [vmem:[%s315 + $0x49] sm:$0x7f] %vm470, %v397
      %480 = vst.msk [vmem:[%s315 + $0x51] sm:$0xff] %vm468, %v399
      %481 = vst.msk [vmem:[%s315 + $0x59] sm:$0x7f] %vm470, %v401
      %482 = vst.msk [vmem:[%s315 + $0x61] sm:$0xff] %vm468, %v403
      %483 = vst.msk [vmem:[%s315 + $0x69] sm:$0x7f] %vm470, %v405
      %484 = vst.msk [vmem:[%s315 + $0x71] sm:$0xff] %vm468, %v407
      %485 = vst.msk [vmem:[%s315 + $0x79] sm:$0x7f] %vm470, %v409
      %486 = vst.msk [vmem:[%s315 + $0x81] sm:$0xff] %vm468, %v411
      %487 = vst.msk [vmem:[%s315 + $0x89] sm:$0x7f] %vm470, %v413
      %488 = vst.msk [vmem:[%s315 + $0x91] sm:$0xff] %vm468, %v415
      %489 = vst.msk [vmem:[%s315 + $0x99] sm:$0x7f] %vm470, %v417
      %490 = vst.msk [vmem:[%s315 + $0xa1] sm:$0xff] %vm468, %v419
      %491 = vst.msk [vmem:[%s315 + $0xa9] sm:$0x7f] %vm470, %v421
      %492 = vst.msk [vmem:[%s315 + $0xb1] sm:$0xff] %vm468, %v423
      %493 = vst.msk [vmem:[%s315 + $0xb9] sm:$0x7f] %vm470, %v425
      %494 = vst.msk [vmem:[%s315 + $0xc1] sm:$0xff] %vm468, %v427
      %495 = vst.msk [vmem:[%s315 + $0xc9] sm:$0x7f] %vm470, %v429
      %496 = vst.msk [vmem:[%s315 + $0xd1] sm:$0xff] %vm468, %v431
      %497 = vst.msk [vmem:[%s315 + $0xd9] sm:$0x7f] %vm470, %v433
      %498 = vst.msk [vmem:[%s315 + $0xe1] sm:$0xff] %vm468, %v435
      %499 = vst.msk [vmem:[%s315 + $0xe9] sm:$0x7f] %vm470, %v437
      %530 = vrot.lane.b32.xlu0 %v218, 8
      %v531 = vpop.permute.xlu0 %530
      %532 = vrot.lane.b32.xlu0 %v219, 8
      %v533 = vpop.permute.xlu0 %532
      %534 = vrot.lane.b32.xlu0 %v220, 8
      %v535 = vpop.permute.xlu0 %534
      %536 = vrot.lane.b32.xlu0 %v221, 8
      %v537 = vpop.permute.xlu0 %536
      %538 = vrot.lane.b32.xlu0 %v222, 8
      %v539 = vpop.permute.xlu0 %538
      %540 = vrot.lane.b32.xlu0 %v223, 8
      %v541 = vpop.permute.xlu0 %540
      %542 = vrot.lane.b32.xlu0 %v224, 8
      %v543 = vpop.permute.xlu0 %542
      %544 = vrot.lane.b32.xlu0 %v225, 8
      %v545 = vpop.permute.xlu0 %544
      %546 = vrot.lane.b32.xlu0 %v226, 8
      %v547 = vpop.permute.xlu0 %546
      %548 = vrot.lane.b32.xlu0 %v227, 8
      %v549 = vpop.permute.xlu0 %548
      %550 = vrot.lane.b32.xlu0 %v228, 8
      %v551 = vpop.permute.xlu0 %550
      %552 = vrot.lane.b32.xlu0 %v229, 8
      %v553 = vpop.permute.xlu0 %552
      %554 = vrot.lane.b32.xlu0 %v230, 8
      %v555 = vpop.permute.xlu0 %554
      %556 = vrot.lane.b32.xlu0 %v231, 8
      %v557 = vpop.permute.xlu0 %556
      %558 = vrot.lane.b32.xlu0 %v232, 8
      %v559 = vpop.permute.xlu0 %558
      %560 = vrot.lane.b32.xlu0 %v233, 8
      %v561 = vpop.permute.xlu0 %560
      %562 = vrot.lane.b32.xlu0 %v234, 8
      %v563 = vpop.permute.xlu0 %562
      %564 = vrot.lane.b32.xlu0 %v235, 8
      %v565 = vpop.permute.xlu0 %564
      %566 = vrot.lane.b32.xlu0 %v236, 8
      %v567 = vpop.permute.xlu0 %566
      %568 = vrot.lane.b32.xlu0 %v237, 8
      %v569 = vpop.permute.xlu0 %568
      %570 = vrot.lane.b32.xlu0 %v238, 8
      %v571 = vpop.permute.xlu0 %570
      %572 = vrot.lane.b32.xlu0 %v239, 8
      %v573 = vpop.permute.xlu0 %572
      %574 = vrot.lane.b32.xlu0 %v240, 8
      %v575 = vpop.permute.xlu0 %574
      %576 = vrot.lane.b32.xlu0 %v241, 8
      %v577 = vpop.permute.xlu0 %576
      %578 = vrot.lane.b32.xlu0 %v242, 8
      %v579 = vpop.permute.xlu0 %578
      %580 = vrot.lane.b32.xlu0 %v243, 8
      %v581 = vpop.permute.xlu0 %580
      %582 = vrot.lane.b32.xlu0 %v244, 8
      %v583 = vpop.permute.xlu0 %582
      %584 = vrot.lane.b32.xlu0 %v245, 8
      %v585 = vpop.permute.xlu0 %584
      %586 = vrot.lane.b32.xlu0 %v246, 8
      %v587 = vpop.permute.xlu0 %586
      %588 = vrot.lane.b32.xlu0 %v247, 8
      %v589 = vpop.permute.xlu0 %588
      %vm620 = vcmask 97344
      %621 = vst.msk [vmem:[%s315] sm:$0xff] %vm620, %v531
      %622 = vst.msk [vmem:[%s315 + $0x8] sm:$0xff] %vm620, %v533
      %623 = vst.msk [vmem:[%s315 + $0x10] sm:$0xff] %vm620, %v535
      %624 = vst.msk [vmem:[%s315 + $0x18] sm:$0xff] %vm620, %v537
      %625 = vst.msk [vmem:[%s315 + $0x20] sm:$0xff] %vm620, %v539
      %626 = vst.msk [vmem:[%s315 + $0x28] sm:$0xff] %vm620, %v541
      %627 = vst.msk [vmem:[%s315 + $0x30] sm:$0xff] %vm620, %v543
      %628 = vst.msk [vmem:[%s315 + $0x38] sm:$0xff] %vm620, %v545
      %629 = vst.msk [vmem:[%s315 + $0x40] sm:$0xff] %vm620, %v547
      %630 = vst.msk [vmem:[%s315 + $0x48] sm:$0xff] %vm620, %v549
      %631 = vst.msk [vmem:[%s315 + $0x50] sm:$0xff] %vm620, %v551
      %632 = vst.msk [vmem:[%s315 + $0x58] sm:$0xff] %vm620, %v553
      %633 = vst.msk [vmem:[%s315 + $0x60] sm:$0xff] %vm620, %v555
      %634 = vst.msk [vmem:[%s315 + $0x68] sm:$0xff] %vm620, %v557
      %635 = vst.msk [vmem:[%s315 + $0x70] sm:$0xff] %vm620, %v559
      %636 = vst.msk [vmem:[%s315 + $0x78] sm:$0xff] %vm620, %v561
      %637 = vst.msk [vmem:[%s315 + $0x80] sm:$0xff] %vm620, %v563
      %638 = vst.msk [vmem:[%s315 + $0x88] sm:$0xff] %vm620, %v565
      %639 = vst.msk [vmem:[%s315 + $0x90] sm:$0xff] %vm620, %v567
      %640 = vst.msk [vmem:[%s315 + $0x98] sm:$0xff] %vm620, %v569
      %641 = vst.msk [vmem:[%s315 + $0xa0] sm:$0xff] %vm620, %v571
      %642 = vst.msk [vmem:[%s315 + $0xa8] sm:$0xff] %vm620, %v573
      %643 = vst.msk [vmem:[%s315 + $0xb0] sm:$0xff] %vm620, %v575
      %644 = vst.msk [vmem:[%s315 + $0xb8] sm:$0xff] %vm620, %v577
      %645 = vst.msk [vmem:[%s315 + $0xc0] sm:$0xff] %vm620, %v579
      %646 = vst.msk [vmem:[%s315 + $0xc8] sm:$0xff] %vm620, %v581
      %647 = vst.msk [vmem:[%s315 + $0xd0] sm:$0xff] %vm620, %v583
      %648 = vst.msk [vmem:[%s315 + $0xd8] sm:$0xff] %vm620, %v585
      %649 = vst.msk [vmem:[%s315 + $0xe0] sm:$0xff] %vm620, %v587
      %650 = vst.msk [vmem:[%s315 + $0xe8] sm:$0xff] %vm620, %v589
      %651 = vrot.lane.b32.xlu0 %v250, 12
      %v652 = vpop.permute.xlu0 %651
      %653 = vrot.lane.b32.xlu0 %v251, 12
      %v654 = vpop.permute.xlu0 %653
      %655 = vrot.lane.b32.xlu0 %v252, 12
      %v656 = vpop.permute.xlu0 %655
      %657 = vrot.lane.b32.xlu0 %v253, 12
      %v658 = vpop.permute.xlu0 %657
      %659 = vrot.lane.b32.xlu0 %v254, 12
      %v660 = vpop.permute.xlu0 %659
      %661 = vrot.lane.b32.xlu0 %v255, 12
      %v662 = vpop.permute.xlu0 %661
      %663 = vrot.lane.b32.xlu0 %v256, 12
      %v664 = vpop.permute.xlu0 %663
      %665 = vrot.lane.b32.xlu0 %v257, 12
      %v666 = vpop.permute.xlu0 %665
      %667 = vrot.lane.b32.xlu0 %v258, 12
      %v668 = vpop.permute.xlu0 %667
      %669 = vrot.lane.b32.xlu0 %v259, 12
      %v670 = vpop.permute.xlu0 %669
      %671 = vrot.lane.b32.xlu0 %v260, 12
      %v672 = vpop.permute.xlu0 %671
      %673 = vrot.lane.b32.xlu0 %v261, 12
      %v674 = vpop.permute.xlu0 %673
      %675 = vrot.lane.b32.xlu0 %v262, 12
      %v676 = vpop.permute.xlu0 %675
      %677 = vrot.lane.b32.xlu0 %v263, 12
      %v678 = vpop.permute.xlu0 %677
      %679 = vrot.lane.b32.xlu0 %v264, 12
      %v680 = vpop.permute.xlu0 %679
      %681 = vrot.lane.b32.xlu0 %v265, 12
      %v682 = vpop.permute.xlu0 %681
      %683 = vrot.lane.b32.xlu0 %v266, 12
      %v684 = vpop.permute.xlu0 %683
      %685 = vrot.lane.b32.xlu0 %v267, 12
      %v686 = vpop.permute.xlu0 %685
      %687 = vrot.lane.b32.xlu0 %v268, 12
      %v688 = vpop.permute.xlu0 %687
      %689 = vrot.lane.b32.xlu0 %v269, 12
      %v690 = vpop.permute.xlu0 %689
      %691 = vrot.lane.b32.xlu0 %v270, 12
      %v692 = vpop.permute.xlu0 %691
      %693 = vrot.lane.b32.xlu0 %v271, 12
      %v694 = vpop.permute.xlu0 %693
      %695 = vrot.lane.b32.xlu0 %v272, 12
      %v696 = vpop.permute.xlu0 %695
      %697 = vrot.lane.b32.xlu0 %v273, 12
      %v698 = vpop.permute.xlu0 %697
      %699 = vrot.lane.b32.xlu0 %v274, 12
      %v700 = vpop.permute.xlu0 %699
      %701 = vrot.lane.b32.xlu0 %v275, 12
      %v702 = vpop.permute.xlu0 %701
      %703 = vrot.lane.b32.xlu0 %v276, 12
      %v704 = vpop.permute.xlu0 %703
      %705 = vrot.lane.b32.xlu0 %v277, 12
      %v706 = vpop.permute.xlu0 %705
      %707 = vrot.lane.b32.xlu0 %v278, 12
      %v708 = vpop.permute.xlu0 %707
      %709 = vrot.lane.b32.xlu0 %v279, 12
      %v710 = vpop.permute.xlu0 %709
      %vm741 = vcmask 130144
      %742 = vst.msk [vmem:[%s315] sm:$0xff] %vm741, %v652
      %743 = vst.msk [vmem:[%s315 + $0x8] sm:$0xff] %vm741, %v654
      %744 = vst.msk [vmem:[%s315 + $0x10] sm:$0xff] %vm741, %v656
      %745 = vst.msk [vmem:[%s315 + $0x18] sm:$0xff] %vm741, %v658
      %746 = vst.msk [vmem:[%s315 + $0x20] sm:$0xff] %vm741, %v660
      %747 = vst.msk [vmem:[%s315 + $0x28] sm:$0xff] %vm741, %v662
      %748 = vst.msk [vmem:[%s315 + $0x30] sm:$0xff] %vm741, %v664
      %749 = vst.msk [vmem:[%s315 + $0x38] sm:$0xff] %vm741, %v666
      %750 = vst.msk [vmem:[%s315 + $0x40] sm:$0xff] %vm741, %v668
      %751 = vst.msk [vmem:[%s315 + $0x48] sm:$0xff] %vm741, %v670
      %752 = vst.msk [vmem:[%s315 + $0x50] sm:$0xff] %vm741, %v672
      %753 = vst.msk [vmem:[%s315 + $0x58] sm:$0xff] %vm741, %v674
      %754 = vst.msk [vmem:[%s315 + $0x60] sm:$0xff] %vm741, %v676
      %755 = vst.msk [vmem:[%s315 + $0x68] sm:$0xff] %vm741, %v678
      %756 = vst.msk [vmem:[%s315 + $0x70] sm:$0xff] %vm741, %v680
      %757 = vst.msk [vmem:[%s315 + $0x78] sm:$0xff] %vm741, %v682
      %758 = vst.msk [vmem:[%s315 + $0x80] sm:$0xff] %vm741, %v684
      %759 = vst.msk [vmem:[%s315 + $0x88] sm:$0xff] %vm741, %v686
      %760 = vst.msk [vmem:[%s315 + $0x90] sm:$0xff] %vm741, %v688
      %761 = vst.msk [vmem:[%s315 + $0x98] sm:$0xff] %vm741, %v690
      %762 = vst.msk [vmem:[%s315 + $0xa0] sm:$0xff] %vm741, %v692
      %763 = vst.msk [vmem:[%s315 + $0xa8] sm:$0xff] %vm741, %v694
      %764 = vst.msk [vmem:[%s315 + $0xb0] sm:$0xff] %vm741, %v696
      %765 = vst.msk [vmem:[%s315 + $0xb8] sm:$0xff] %vm741, %v698
      %766 = vst.msk [vmem:[%s315 + $0xc0] sm:$0xff] %vm741, %v700
      %767 = vst.msk [vmem:[%s315 + $0xc8] sm:$0xff] %vm741, %v702
      %768 = vst.msk [vmem:[%s315 + $0xd0] sm:$0xff] %vm741, %v704
      %769 = vst.msk [vmem:[%s315 + $0xd8] sm:$0xff] %vm741, %v706
      %770 = vst.msk [vmem:[%s315 + $0xe0] sm:$0xff] %vm741, %v708
      %771 = vst.msk [vmem:[%s315 + $0xe8] sm:$0xff] %vm741, %v710
      %772 = vrot.lane.b32.xlu0 %v218, 16
      %v773 = vpop.permute.xlu0 %772
      %774 = vrot.lane.b32.xlu0 %v219, 16
      %v775 = vpop.permute.xlu0 %774
      %776 = vrot.lane.b32.xlu0 %v220, 16
      %v777 = vpop.permute.xlu0 %776
      %778 = vrot.lane.b32.xlu0 %v221, 16
      %v779 = vpop.permute.xlu0 %778
      %780 = vrot.lane.b32.xlu0 %v222, 16
      %v781 = vpop.permute.xlu0 %780
      %782 = vrot.lane.b32.xlu0 %v223, 16
      %v783 = vpop.permute.xlu0 %782
      %784 = vrot.lane.b32.xlu0 %v224, 16
      %v785 = vpop.permute.xlu0 %784
      %786 = vrot.lane.b32.xlu0 %v225, 16
      %v787 = vpop.permute.xlu0 %786
      %788 = vrot.lane.b32.xlu0 %v226, 16
      %v789 = vpop.permute.xlu0 %788
      %790 = vrot.lane.b32.xlu0 %v227, 16
      %v791 = vpop.permute.xlu0 %790
      %792 = vrot.lane.b32.xlu0 %v228, 16
      %v793 = vpop.permute.xlu0 %792
      %794 = vrot.lane.b32.xlu0 %v229, 16
      %v795 = vpop.permute.xlu0 %794
      %796 = vrot.lane.b32.xlu0 %v230, 16
      %v797 = vpop.permute.xlu0 %796
      %798 = vrot.lane.b32.xlu0 %v231, 16
      %v799 = vpop.permute.xlu0 %798
      %800 = vrot.lane.b32.xlu0 %v232, 16
      %v801 = vpop.permute.xlu0 %800
      %802 = vrot.lane.b32.xlu0 %v233, 16
      %v803 = vpop.permute.xlu0 %802
      %804 = vrot.lane.b32.xlu0 %v234, 16
      %v805 = vpop.permute.xlu0 %804
      %806 = vrot.lane.b32.xlu0 %v235, 16
      %v807 = vpop.permute.xlu0 %806
      %808 = vrot.lane.b32.xlu0 %v236, 16
      %v809 = vpop.permute.xlu0 %808
      %810 = vrot.lane.b32.xlu0 %v237, 16
      %v811 = vpop.permute.xlu0 %810
      %812 = vrot.lane.b32.xlu0 %v238, 16
      %v813 = vpop.permute.xlu0 %812
      %814 = vrot.lane.b32.xlu0 %v239, 16
      %v815 = vpop.permute.xlu0 %814
      %816 = vrot.lane.b32.xlu0 %v240, 16
      %v817 = vpop.permute.xlu0 %816
      %818 = vrot.lane.b32.xlu0 %v241, 16
      %v819 = vpop.permute.xlu0 %818
      %820 = vrot.lane.b32.xlu0 %v242, 16
      %v821 = vpop.permute.xlu0 %820
      %822 = vrot.lane.b32.xlu0 %v243, 16
      %v823 = vpop.permute.xlu0 %822
      %824 = vrot.lane.b32.xlu0 %v244, 16
      %v825 = vpop.permute.xlu0 %824
      %826 = vrot.lane.b32.xlu0 %v245, 16
      %v827 = vpop.permute.xlu0 %826
      %828 = vrot.lane.b32.xlu0 %v246, 16
      %v829 = vpop.permute.xlu0 %828
      %830 = vrot.lane.b32.xlu0 %v247, 16
      %v831 = vpop.permute.xlu0 %830
      %vm862 = vcmask 162945
      %863 = vst.msk [vmem:[%s315 - $0x1] sm:$0xfe] %vm862, %v773
      %vm864 = vcmask 162944
      %865 = vst.msk [vmem:[%s315 + $0x7] sm:$0xff] %vm864, %v775
      %866 = vst.msk [vmem:[%s315 + $0xf] sm:$0xfe] %vm862, %v777
      %867 = vst.msk [vmem:[%s315 + $0x17] sm:$0xff] %vm864, %v779
      %868 = vst.msk [vmem:[%s315 + $0x1f] sm:$0xfe] %vm862, %v781
      %869 = vst.msk [vmem:[%s315 + $0x27] sm:$0xff] %vm864, %v783
      %870 = vst.msk [vmem:[%s315 + $0x2f] sm:$0xfe] %vm862, %v785
      %871 = vst.msk [vmem:[%s315 + $0x37] sm:$0xff] %vm864, %v787
      %872 = vst.msk [vmem:[%s315 + $0x3f] sm:$0xfe] %vm862, %v789
      %873 = vst.msk [vmem:[%s315 + $0x47] sm:$0xff] %vm864, %v791
      %874 = vst.msk [vmem:[%s315 + $0x4f] sm:$0xfe] %vm862, %v793
      %875 = vst.msk [vmem:[%s315 + $0x57] sm:$0xff] %vm864, %v795
      %876 = vst.msk [vmem:[%s315 + $0x5f] sm:$0xfe] %vm862, %v797
      %877 = vst.msk [vmem:[%s315 + $0x67] sm:$0xff] %vm864, %v799
      %878 = vst.msk [vmem:[%s315 + $0x6f] sm:$0xfe] %vm862, %v801
      %879 = vst.msk [vmem:[%s315 + $0x77] sm:$0xff] %vm864, %v803
      %880 = vst.msk [vmem:[%s315 + $0x7f] sm:$0xfe] %vm862, %v805
      %881 = vst.msk [vmem:[%s315 + $0x87] sm:$0xff] %vm864, %v807
      %882 = vst.msk [vmem:[%s315 + $0x8f] sm:$0xfe] %vm862, %v809
      %883 = vst.msk [vmem:[%s315 + $0x97] sm:$0xff] %vm864, %v811
      %884 = vst.msk [vmem:[%s315 + $0x9f] sm:$0xfe] %vm862, %v813
      %885 = vst.msk [vmem:[%s315 + $0xa7] sm:$0xff] %vm864, %v815
      %886 = vst.msk [vmem:[%s315 + $0xaf] sm:$0xfe] %vm862, %v817
      %887 = vst.msk [vmem:[%s315 + $0xb7] sm:$0xff] %vm864, %v819
      %888 = vst.msk [vmem:[%s315 + $0xbf] sm:$0xfe] %vm862, %v821
      %889 = vst.msk [vmem:[%s315 + $0xc7] sm:$0xff] %vm864, %v823
      %890 = vst.msk [vmem:[%s315 + $0xcf] sm:$0xfe] %vm862, %v825
      %891 = vst.msk [vmem:[%s315 + $0xd7] sm:$0xff] %vm864, %v827
      %892 = vst.msk [vmem:[%s315 + $0xdf] sm:$0xfe] %vm862, %v829
      %893 = vst.msk [vmem:[%s315 + $0xe7] sm:$0xff] %vm864, %v831
      %894 = vrot.lane.b32.xlu0 %v250, 20
      %v895 = vpop.permute.xlu0 %894
      %896 = vrot.lane.b32.xlu0 %v251, 20
      %v897 = vpop.permute.xlu0 %896
      %898 = vrot.lane.b32.xlu0 %v252, 20
      %v899 = vpop.permute.xlu0 %898
      %900 = vrot.lane.b32.xlu0 %v253, 20
      %v901 = vpop.permute.xlu0 %900
      %902 = vrot.lane.b32.xlu0 %v254, 20
      %v903 = vpop.permute.xlu0 %902
      %904 = vrot.lane.b32.xlu0 %v255, 20
      %v905 = vpop.permute.xlu0 %904
      %906 = vrot.lane.b32.xlu0 %v256, 20
      %v907 = vpop.permute.xlu0 %906
      %908 = vrot.lane.b32.xlu0 %v257, 20
      %v909 = vpop.permute.xlu0 %908
      %910 = vrot.lane.b32.xlu0 %v258, 20
      %v911 = vpop.permute.xlu0 %910
      %912 = vrot.lane.b32.xlu0 %v259, 20
      %v913 = vpop.permute.xlu0 %912
      %914 = vrot.lane.b32.xlu0 %v260, 20
      %v915 = vpop.permute.xlu0 %914
      %916 = vrot.lane.b32.xlu0 %v261, 20
      %v917 = vpop.permute.xlu0 %916
      %918 = vrot.lane.b32.xlu0 %v262, 20
      %v919 = vpop.permute.xlu0 %918
      %920 = vrot.lane.b32.xlu0 %v263, 20
      %v921 = vpop.permute.xlu0 %920
      %922 = vrot.lane.b32.xlu0 %v264, 20
      %v923 = vpop.permute.xlu0 %922
      %924 = vrot.lane.b32.xlu0 %v265, 20
      %v925 = vpop.permute.xlu0 %924
      %926 = vrot.lane.b32.xlu0 %v266, 20
      %v927 = vpop.permute.xlu0 %926
      %928 = vrot.lane.b32.xlu0 %v267, 20
      %v929 = vpop.permute.xlu0 %928
      %930 = vrot.lane.b32.xlu0 %v268, 20
      %v931 = vpop.permute.xlu0 %930
      %932 = vrot.lane.b32.xlu0 %v269, 20
      %v933 = vpop.permute.xlu0 %932
      %934 = vrot.lane.b32.xlu0 %v270, 20
      %v935 = vpop.permute.xlu0 %934
      %936 = vrot.lane.b32.xlu0 %v271, 20
      %v937 = vpop.permute.xlu0 %936
      %938 = vrot.lane.b32.xlu0 %v272, 20
      %v939 = vpop.permute.xlu0 %938
      %940 = vrot.lane.b32.xlu0 %v273, 20
      %v941 = vpop.permute.xlu0 %940
      %942 = vrot.lane.b32.xlu0 %v274, 20
      %v943 = vpop.permute.xlu0 %942
      %944 = vrot.lane.b32.xlu0 %v275, 20
      %v945 = vpop.permute.xlu0 %944
      %946 = vrot.lane.b32.xlu0 %v276, 20
      %v947 = vpop.permute.xlu0 %946
      %948 = vrot.lane.b32.xlu0 %v277, 20
      %v949 = vpop.permute.xlu0 %948
      %950 = vrot.lane.b32.xlu0 %v278, 20
      %v951 = vpop.permute.xlu0 %950
      %952 = vrot.lane.b32.xlu0 %v279, 20
      %v953 = vpop.permute.xlu0 %952
      %vm984 = vcmask 195745
      %985 = vst.msk [vmem:[%s315 - $0x1] sm:$0xfe] %vm984, %v895
      %vm986 = vcmask 195744
      %987 = vst.msk [vmem:[%s315 + $0x7] sm:$0xff] %vm986, %v897
      %988 = vst.msk [vmem:[%s315 + $0xf] sm:$0xfe] %vm984, %v899
      %989 = vst.msk [vmem:[%s315 + $0x17] sm:$0xff] %vm986, %v901
      %990 = vst.msk [vmem:[%s315 + $0x1f] sm:$0xfe] %vm984, %v903
      %991 = vst.msk [vmem:[%s315 + $0x27] sm:$0xff] %vm986, %v905
      %992 = vst.msk [vmem:[%s315 + $0x2f] sm:$0xfe] %vm984, %v907
      %993 = vst.msk [vmem:[%s315 + $0x37] sm:$0xff] %vm986, %v909
      %994 = vst.msk [vmem:[%s315 + $0x3f] sm:$0xfe] %vm984, %v911
      %995 = vst.msk [vmem:[%s315 + $0x47] sm:$0xff] %vm986, %v913
      %996 = vst.msk [vmem:[%s315 + $0x4f] sm:$0xfe] %vm984, %v915
      %997 = vst.msk [vmem:[%s315 + $0x57] sm:$0xff] %vm986, %v917
      %998 = vst.msk [vmem:[%s315 + $0x5f] sm:$0xfe] %vm984, %v919
      %999 = vst.msk [vmem:[%s315 + $0x67] sm:$0xff] %vm986, %v921
      %1000 = vst.msk [vmem:[%s315 + $0x6f] sm:$0xfe] %vm984, %v923
      %1001 = vst.msk [vmem:[%s315 + $0x77] sm:$0xff] %vm986, %v925
      %1002 = vst.msk [vmem:[%s315 + $0x7f] sm:$0xfe] %vm984, %v927
      %1003 = vst.msk [vmem:[%s315 + $0x87] sm:$0xff] %vm986, %v929
      %1004 = vst.msk [vmem:[%s315 + $0x8f] sm:$0xfe] %vm984, %v931
      %1005 = vst.msk [vmem:[%s315 + $0x97] sm:$0xff] %vm986, %v933
      %1006 = vst.msk [vmem:[%s315 + $0x9f] sm:$0xfe] %vm984, %v935
      %1007 = vst.msk [vmem:[%s315 + $0xa7] sm:$0xff] %vm986, %v937
      %1008 = vst.msk [vmem:[%s315 + $0xaf] sm:$0xfe] %vm984, %v939
      %1009 = vst.msk [vmem:[%s315 + $0xb7] sm:$0xff] %vm986, %v941
      %1010 = vst.msk [vmem:[%s315 + $0xbf] sm:$0xfe] %vm984, %v943
      %1011 = vst.msk [vmem:[%s315 + $0xc7] sm:$0xff] %vm986, %v945
      %1012 = vst.msk [vmem:[%s315 + $0xcf] sm:$0xfe] %vm984, %v947
      %1013 = vst.msk [vmem:[%s315 + $0xd7] sm:$0xff] %vm986, %v949
      %1014 = vst.msk [vmem:[%s315 + $0xdf] sm:$0xfe] %vm984, %v951
      %1015 = vst.msk [vmem:[%s315 + $0xe7] sm:$0xff] %vm986, %v953
      %1018 = vrot.lane.b32.xlu0 %v218, 24
      %v1019 = vpop.permute.xlu0 %1018
      %1020 = vrot.lane.b32.xlu0 %v219, 24
      %v1021 = vpop.permute.xlu0 %1020
      %1022 = vrot.lane.b32.xlu0 %v220, 24
      %v1023 = vpop.permute.xlu0 %1022
      %1024 = vrot.lane.b32.xlu0 %v221, 24
      %v1025 = vpop.permute.xlu0 %1024
      %1026 = vrot.lane.b32.xlu0 %v222, 24
      %v1027 = vpop.permute.xlu0 %1026
      %1028 = vrot.lane.b32.xlu0 %v223, 24
      %v1029 = vpop.permute.xlu0 %1028
      %1030 = vrot.lane.b32.xlu0 %v224, 24
      %v1031 = vpop.permute.xlu0 %1030
      %1032 = vrot.lane.b32.xlu0 %v225, 24
      %v1033 = vpop.permute.xlu0 %1032
      %1034 = vrot.lane.b32.xlu0 %v226, 24
      %v1035 = vpop.permute.xlu0 %1034
      %1036 = vrot.lane.b32.xlu0 %v227, 24
      %v1037 = vpop.permute.xlu0 %1036
      %1038 = vrot.lane.b32.xlu0 %v228, 24
      %v1039 = vpop.permute.xlu0 %1038
      %1040 = vrot.lane.b32.xlu0 %v229, 24
      %v1041 = vpop.permute.xlu0 %1040
      %1042 = vrot.lane.b32.xlu0 %v230, 24
      %v1043 = vpop.permute.xlu0 %1042
      %1044 = vrot.lane.b32.xlu0 %v231, 24
      %v1045 = vpop.permute.xlu0 %1044
      %1046 = vrot.lane.b32.xlu0 %v232, 24
      %v1047 = vpop.permute.xlu0 %1046
      %1048 = vrot.lane.b32.xlu0 %v233, 24
      %v1049 = vpop.permute.xlu0 %1048
      %1050 = vrot.lane.b32.xlu0 %v234, 24
      %v1051 = vpop.permute.xlu0 %1050
      %1052 = vrot.lane.b32.xlu0 %v235, 24
      %v1053 = vpop.permute.xlu0 %1052
      %1054 = vrot.lane.b32.xlu0 %v236, 24
      %v1055 = vpop.permute.xlu0 %1054
      %1056 = vrot.lane.b32.xlu0 %v237, 24
      %v1057 = vpop.permute.xlu0 %1056
      %1058 = vrot.lane.b32.xlu0 %v238, 24
      %v1059 = vpop.permute.xlu0 %1058
      %1060 = vrot.lane.b32.xlu0 %v239, 24
      %v1061 = vpop.permute.xlu0 %1060
      %1062 = vrot.lane.b32.xlu0 %v240, 24
      %v1063 = vpop.permute.xlu0 %1062
      %1064 = vrot.lane.b32.xlu0 %v241, 24
      %v1065 = vpop.permute.xlu0 %1064
      %1066 = vrot.lane.b32.xlu0 %v242, 24
      %v1067 = vpop.permute.xlu0 %1066
      %1068 = vrot.lane.b32.xlu0 %v243, 24
      %v1069 = vpop.permute.xlu0 %1068
      %1070 = vrot.lane.b32.xlu0 %v244, 24
      %v1071 = vpop.permute.xlu0 %1070
      %1072 = vrot.lane.b32.xlu0 %v245, 24
      %v1073 = vpop.permute.xlu0 %1072
      %1074 = vrot.lane.b32.xlu0 %v246, 24
      %v1075 = vpop.permute.xlu0 %1074
      %1076 = vrot.lane.b32.xlu0 %v247, 24
      %v1077 = vpop.permute.xlu0 %1076
      %1078 = vrot.lane.b32.xlu0 %v248, 24
      %v1079 = vpop.permute.xlu0 %1078
      %1080 = vrot.lane.b32.xlu0 %v249, 24
      %v1081 = vpop.permute.xlu0 %1080
      %vm1114 = vcmask 228544
      %1115 = vst.msk [vmem:[#allocation2 + $0x1] sm:$0xff] %vm1114, %v1019
      %vm1116 = vcmask 227520
      %1117 = vst.msk [vmem:[#allocation2 + $0x9] sm:$0x7f] %vm1116, %v1021
      %1118 = vst.msk [vmem:[#allocation2 + $0x11] sm:$0xff] %vm1114, %v1023
      %1119 = vst.msk [vmem:[#allocation2 + $0x19] sm:$0x7f] %vm1116, %v1025
      %1120 = vst.msk [vmem:[#allocation2 + $0x21] sm:$0xff] %vm1114, %v1027
      %1121 = vst.msk [vmem:[#allocation2 + $0x29] sm:$0x7f] %vm1116, %v1029
      %1122 = vst.msk [vmem:[#allocation2 + $0x31] sm:$0xff] %vm1114, %v1031
      %1123 = vst.msk [vmem:[#allocation2 + $0x39] sm:$0x7f] %vm1116, %v1033
      %1124 = vst.msk [vmem:[#allocation2 + $0x41] sm:$0xff] %vm1114, %v1035
      %1125 = vst.msk [vmem:[#allocation2 + $0x49] sm:$0x7f] %vm1116, %v1037
      %1126 = vst.msk [vmem:[#allocation2 + $0x51] sm:$0xff] %vm1114, %v1039
      %1127 = vst.msk [vmem:[#allocation2 + $0x59] sm:$0x7f] %vm1116, %v1041
      %1128 = vst.msk [vmem:[#allocation2 + $0x61] sm:$0xff] %vm1114, %v1043
      %1129 = vst.msk [vmem:[#allocation2 + $0x69] sm:$0x7f] %vm1116, %v1045
      %1130 = vst.msk [vmem:[#allocation2 + $0x71] sm:$0xff] %vm1114, %v1047
      %1131 = vst.msk [vmem:[#allocation2 + $0x79] sm:$0x7f] %vm1116, %v1049
      %1132 = vst.msk [vmem:[#allocation2 + $0x81] sm:$0xff] %vm1114, %v1051
      %1133 = vst.msk [vmem:[#allocation2 + $0x89] sm:$0x7f] %vm1116, %v1053
      %1134 = vst.msk [vmem:[#allocation2 + $0x91] sm:$0xff] %vm1114, %v1055
      %1135 = vst.msk [vmem:[#allocation2 + $0x99] sm:$0x7f] %vm1116, %v1057
      %1136 = vst.msk [vmem:[#allocation2 + $0xa1] sm:$0xff] %vm1114, %v1059
      %1137 = vst.msk [vmem:[#allocation2 + $0xa9] sm:$0x7f] %vm1116, %v1061
      %1138 = vst.msk [vmem:[#allocation2 + $0xb1] sm:$0xff] %vm1114, %v1063
      %1139 = vst.msk [vmem:[#allocation2 + $0xb9] sm:$0x7f] %vm1116, %v1065
      %1140 = vst.msk [vmem:[#allocation2 + $0xc1] sm:$0xff] %vm1114, %v1067
      %1141 = vst.msk [vmem:[#allocation2 + $0xc9] sm:$0x7f] %vm1116, %v1069
      %1142 = vst.msk [vmem:[#allocation2 + $0xd1] sm:$0xff] %vm1114, %v1071
      %1143 = vst.msk [vmem:[#allocation2 + $0xd9] sm:$0x7f] %vm1116, %v1073
      %1144 = vst.msk [vmem:[#allocation2 + $0xe1] sm:$0xff] %vm1114, %v1075
      %1145 = vst.msk [vmem:[#allocation2 + $0xe9] sm:$0x7f] %vm1116, %v1077
      %1146 = vst.msk [vmem:[#allocation2 + $0xf1] sm:$0xff] %vm1114, %v1079
      %1147 = vst.msk [vmem:[#allocation2 + $0xf9] sm:$0x7f] %vm1116, %v1081
      %1150 = vrot.lane.b32.xlu0 %v250, 28
      %v1151 = vpop.permute.xlu0 %1150
      %1152 = vrot.lane.b32.xlu0 %v251, 28
      %v1153 = vpop.permute.xlu0 %1152
      %1154 = vrot.lane.b32.xlu0 %v252, 28
      %v1155 = vpop.permute.xlu0 %1154
      %1156 = vrot.lane.b32.xlu0 %v253, 28
      %v1157 = vpop.permute.xlu0 %1156
      %1158 = vrot.lane.b32.xlu0 %v254, 28
      %v1159 = vpop.permute.xlu0 %1158
      %1160 = vrot.lane.b32.xlu0 %v255, 28
      %v1161 = vpop.permute.xlu0 %1160
      %1162 = vrot.lane.b32.xlu0 %v256, 28
      %v1163 = vpop.permute.xlu0 %1162
      %1164 = vrot.lane.b32.xlu0 %v257, 28
      %v1165 = vpop.permute.xlu0 %1164
      %1166 = vrot.lane.b32.xlu0 %v258, 28
      %v1167 = vpop.permute.xlu0 %1166
      %1168 = vrot.lane.b32.xlu0 %v259, 28
      %v1169 = vpop.permute.xlu0 %1168
      %1170 = vrot.lane.b32.xlu0 %v260, 28
      %v1171 = vpop.permute.xlu0 %1170
      %1172 = vrot.lane.b32.xlu0 %v261, 28
      %v1173 = vpop.permute.xlu0 %1172
      %1174 = vrot.lane.b32.xlu0 %v262, 28
      %v1175 = vpop.permute.xlu0 %1174
      %1176 = vrot.lane.b32.xlu0 %v263, 28
      %v1177 = vpop.permute.xlu0 %1176
      %1178 = vrot.lane.b32.xlu0 %v264, 28
      %v1179 = vpop.permute.xlu0 %1178
      %1180 = vrot.lane.b32.xlu0 %v265, 28
      %v1181 = vpop.permute.xlu0 %1180
      %1182 = vrot.lane.b32.xlu0 %v266, 28
      %v1183 = vpop.permute.xlu0 %1182
      %1184 = vrot.lane.b32.xlu0 %v267, 28
      %v1185 = vpop.permute.xlu0 %1184
      %1186 = vrot.lane.b32.xlu0 %v268, 28
      %v1187 = vpop.permute.xlu0 %1186
      %1188 = vrot.lane.b32.xlu0 %v269, 28
      %v1189 = vpop.permute.xlu0 %1188
      %1190 = vrot.lane.b32.xlu0 %v270, 28
      %v1191 = vpop.permute.xlu0 %1190
      %1192 = vrot.lane.b32.xlu0 %v271, 28
      %v1193 = vpop.permute.xlu0 %1192
      %1194 = vrot.lane.b32.xlu0 %v272, 28
      %v1195 = vpop.permute.xlu0 %1194
      %1196 = vrot.lane.b32.xlu0 %v273, 28
      %v1197 = vpop.permute.xlu0 %1196
      %1198 = vrot.lane.b32.xlu0 %v274, 28
      %v1199 = vpop.permute.xlu0 %1198
      %1200 = vrot.lane.b32.xlu0 %v275, 28
      %v1201 = vpop.permute.xlu0 %1200
      %1202 = vrot.lane.b32.xlu0 %v276, 28
      %v1203 = vpop.permute.xlu0 %1202
      %1204 = vrot.lane.b32.xlu0 %v277, 28
      %v1205 = vpop.permute.xlu0 %1204
      %1206 = vrot.lane.b32.xlu0 %v278, 28
      %v1207 = vpop.permute.xlu0 %1206
      %1208 = vrot.lane.b32.xlu0 %v279, 28
      %v1209 = vpop.permute.xlu0 %1208
      %1210 = vrot.lane.b32.xlu0 %v280, 28
      %v1211 = vpop.permute.xlu0 %1210
      %1212 = vrot.lane.b32.xlu0 %v281, 28
      %v1213 = vpop.permute.xlu0 %1212
      %vm1246 = vcmask 261344
      %1247 = vst.msk [vmem:[#allocation2 + $0x1] sm:$0xff] %vm1246, %v1151
      %vm1248 = vcmask 260320
      %1249 = vst.msk [vmem:[#allocation2 + $0x9] sm:$0x7f] %vm1248, %v1153
      %1250 = vst.msk [vmem:[#allocation2 + $0x11] sm:$0xff] %vm1246, %v1155
      %1251 = vst.msk [vmem:[#allocation2 + $0x19] sm:$0x7f] %vm1248, %v1157
      %1252 = vst.msk [vmem:[#allocation2 + $0x21] sm:$0xff] %vm1246, %v1159
      %1253 = vst.msk [vmem:[#allocation2 + $0x29] sm:$0x7f] %vm1248, %v1161
      %1254 = vst.msk [vmem:[#allocation2 + $0x31] sm:$0xff] %vm1246, %v1163
      %1255 = vst.msk [vmem:[#allocation2 + $0x39] sm:$0x7f] %vm1248, %v1165
      %1256 = vst.msk [vmem:[#allocation2 + $0x41] sm:$0xff] %vm1246, %v1167
      %1257 = vst.msk [vmem:[#allocation2 + $0x49] sm:$0x7f] %vm1248, %v1169
      %1258 = vst.msk [vmem:[#allocation2 + $0x51] sm:$0xff] %vm1246, %v1171
      %1259 = vst.msk [vmem:[#allocation2 + $0x59] sm:$0x7f] %vm1248, %v1173
      %1260 = vst.msk [vmem:[#allocation2 + $0x61] sm:$0xff] %vm1246, %v1175
      %1261 = vst.msk [vmem:[#allocation2 + $0x69] sm:$0x7f] %vm1248, %v1177
      %1262 = vst.msk [vmem:[#allocation2 + $0x71] sm:$0xff] %vm1246, %v1179
      %1263 = vst.msk [vmem:[#allocation2 + $0x79] sm:$0x7f] %vm1248, %v1181
      %1264 = vst.msk [vmem:[#allocation2 + $0x81] sm:$0xff] %vm1246, %v1183
      %1265 = vst.msk [vmem:[#allocation2 + $0x89] sm:$0x7f] %vm1248, %v1185
      %1266 = vst.msk [vmem:[#allocation2 + $0x91] sm:$0xff] %vm1246, %v1187
      %1267 = vst.msk [vmem:[#allocation2 + $0x99] sm:$0x7f] %vm1248, %v1189
      %1268 = vst.msk [vmem:[#allocation2 + $0xa1] sm:$0xff] %vm1246, %v1191
      %1269 = vst.msk [vmem:[#allocation2 + $0xa9] sm:$0x7f] %vm1248, %v1193
      %1270 = vst.msk [vmem:[#allocation2 + $0xb1] sm:$0xff] %vm1246, %v1195
      %1271 = vst.msk [vmem:[#allocation2 + $0xb9] sm:$0x7f] %vm1248, %v1197
      %1272 = vst.msk [vmem:[#allocation2 + $0xc1] sm:$0xff] %vm1246, %v1199
      %1273 = vst.msk [vmem:[#allocation2 + $0xc9] sm:$0x7f] %vm1248, %v1201
      %1274 = vst.msk [vmem:[#allocation2 + $0xd1] sm:$0xff] %vm1246, %v1203
      %1275 = vst.msk [vmem:[#allocation2 + $0xd9] sm:$0x7f] %vm1248, %v1205
      %1276 = vst.msk [vmem:[#allocation2 + $0xe1] sm:$0xff] %vm1246, %v1207
      %1277 = vst.msk [vmem:[#allocation2 + $0xe9] sm:$0x7f] %vm1248, %v1209
      %1278 = vst.msk [vmem:[#allocation2 + $0xf1] sm:$0xff] %vm1246, %v1211
      %1279 = vst.msk [vmem:[#allocation2 + $0xf9] sm:$0x7f] %vm1248, %v1213
      %1280 = vrot.lane.b32.xlu0 %v218, 32
      %v1281 = vpop.permute.xlu0 %1280
      %1282 = vrot.lane.b32.xlu0 %v219, 32
      %v1283 = vpop.permute.xlu0 %1282
      %1284 = vrot.lane.b32.xlu0 %v220, 32
      %v1285 = vpop.permute.xlu0 %1284
      %1286 = vrot.lane.b32.xlu0 %v221, 32
      %v1287 = vpop.permute.xlu0 %1286
      %1288 = vrot.lane.b32.xlu0 %v222, 32
      %v1289 = vpop.permute.xlu0 %1288
      %1290 = vrot.lane.b32.xlu0 %v223, 32
      %v1291 = vpop.permute.xlu0 %1290
      %1292 = vrot.lane.b32.xlu0 %v224, 32
      %v1293 = vpop.permute.xlu0 %1292
      %1294 = vrot.lane.b32.xlu0 %v225, 32
      %v1295 = vpop.permute.xlu0 %1294
      %1296 = vrot.lane.b32.xlu0 %v226, 32
      %v1297 = vpop.permute.xlu0 %1296
      %1298 = vrot.lane.b32.xlu0 %v227, 32
      %v1299 = vpop.permute.xlu0 %1298
      %1300 = vrot.lane.b32.xlu0 %v228, 32
      %v1301 = vpop.permute.xlu0 %1300
      %1302 = vrot.lane.b32.xlu0 %v229, 32
      %v1303 = vpop.permute.xlu0 %1302
      %1304 = vrot.lane.b32.xlu0 %v230, 32
      %v1305 = vpop.permute.xlu0 %1304
      %1306 = vrot.lane.b32.xlu0 %v231, 32
      %v1307 = vpop.permute.xlu0 %1306
      %1308 = vrot.lane.b32.xlu0 %v232, 32
      %v1309 = vpop.permute.xlu0 %1308
      %1310 = vrot.lane.b32.xlu0 %v233, 32
      %v1311 = vpop.permute.xlu0 %1310
      %1312 = vrot.lane.b32.xlu0 %v234, 32
      %v1313 = vpop.permute.xlu0 %1312
      %1314 = vrot.lane.b32.xlu0 %v235, 32
      %v1315 = vpop.permute.xlu0 %1314
      %1316 = vrot.lane.b32.xlu0 %v236, 32
      %v1317 = vpop.permute.xlu0 %1316
      %1318 = vrot.lane.b32.xlu0 %v237, 32
      %v1319 = vpop.permute.xlu0 %1318
      %1320 = vrot.lane.b32.xlu0 %v238, 32
      %v1321 = vpop.permute.xlu0 %1320
      %1322 = vrot.lane.b32.xlu0 %v239, 32
      %v1323 = vpop.permute.xlu0 %1322
      %1324 = vrot.lane.b32.xlu0 %v240, 32
      %v1325 = vpop.permute.xlu0 %1324
      %1326 = vrot.lane.b32.xlu0 %v241, 32
      %v1327 = vpop.permute.xlu0 %1326
      %1328 = vrot.lane.b32.xlu0 %v242, 32
      %v1329 = vpop.permute.xlu0 %1328
      %1330 = vrot.lane.b32.xlu0 %v243, 32
      %v1331 = vpop.permute.xlu0 %1330
      %1332 = vrot.lane.b32.xlu0 %v244, 32
      %v1333 = vpop.permute.xlu0 %1332
      %1334 = vrot.lane.b32.xlu0 %v245, 32
      %v1335 = vpop.permute.xlu0 %1334
      %1336 = vrot.lane.b32.xlu0 %v246, 32
      %v1337 = vpop.permute.xlu0 %1336
      %1338 = vrot.lane.b32.xlu0 %v247, 32
      %v1339 = vpop.permute.xlu0 %1338
      %1340 = vrot.lane.b32.xlu0 %v248, 32
      %v1341 = vpop.permute.xlu0 %1340
      %1342 = vrot.lane.b32.xlu0 %v249, 32
      %v1343 = vpop.permute.xlu0 %1342
      %vm1376 = vcmask 294144
      %1377 = vst.msk [vmem:[#allocation2] sm:$0xff] %vm1376, %v1281
      %1378 = vst.msk [vmem:[#allocation2 + $0x8] sm:$0xff] %vm1376, %v1283
      %1379 = vst.msk [vmem:[#allocation2 + $0x10] sm:$0xff] %vm1376, %v1285
      %1380 = vst.msk [vmem:[#allocation2 + $0x18] sm:$0xff] %vm1376, %v1287
      %1381 = vst.msk [vmem:[#allocation2 + $0x20] sm:$0xff] %vm1376, %v1289
      %1382 = vst.msk [vmem:[#allocation2 + $0x28] sm:$0xff] %vm1376, %v1291
      %1383 = vst.msk [vmem:[#allocation2 + $0x30] sm:$0xff] %vm1376, %v1293
      %1384 = vst.msk [vmem:[#allocation2 + $0x38] sm:$0xff] %vm1376, %v1295
      %1385 = vst.msk [vmem:[#allocation2 + $0x40] sm:$0xff] %vm1376, %v1297
      %1386 = vst.msk [vmem:[#allocation2 + $0x48] sm:$0xff] %vm1376, %v1299
      %1387 = vst.msk [vmem:[#allocation2 + $0x50] sm:$0xff] %vm1376, %v1301
      %1388 = vst.msk [vmem:[#allocation2 + $0x58] sm:$0xff] %vm1376, %v1303
      %1389 = vst.msk [vmem:[#allocation2 + $0x60] sm:$0xff] %vm1376, %v1305
      %1390 = vst.msk [vmem:[#allocation2 + $0x68] sm:$0xff] %vm1376, %v1307
      %1391 = vst.msk [vmem:[#allocation2 + $0x70] sm:$0xff] %vm1376, %v1309
      %1392 = vst.msk [vmem:[#allocation2 + $0x78] sm:$0xff] %vm1376, %v1311
      %1393 = vst.msk [vmem:[#allocation2 + $0x80] sm:$0xff] %vm1376, %v1313
      %1394 = vst.msk [vmem:[#allocation2 + $0x88] sm:$0xff] %vm1376, %v1315
      %1395 = vst.msk [vmem:[#allocation2 + $0x90] sm:$0xff] %vm1376, %v1317
      %1396 = vst.msk [vmem:[#allocation2 + $0x98] sm:$0xff] %vm1376, %v1319
      %1397 = vst.msk [vmem:[#allocation2 + $0xa0] sm:$0xff] %vm1376, %v1321
      %1398 = vst.msk [vmem:[#allocation2 + $0xa8] sm:$0xff] %vm1376, %v1323
      %1399 = vst.msk [vmem:[#allocation2 + $0xb0] sm:$0xff] %vm1376, %v1325
      %1400 = vst.msk [vmem:[#allocation2 + $0xb8] sm:$0xff] %vm1376, %v1327
      %1401 = vst.msk [vmem:[#allocation2 + $0xc0] sm:$0xff] %vm1376, %v1329
      %1402 = vst.msk [vmem:[#allocation2 + $0xc8] sm:$0xff] %vm1376, %v1331
      %1403 = vst.msk [vmem:[#allocation2 + $0xd0] sm:$0xff] %vm1376, %v1333
      %1404 = vst.msk [vmem:[#allocation2 + $0xd8] sm:$0xff] %vm1376, %v1335
      %1405 = vst.msk [vmem:[#allocation2 + $0xe0] sm:$0xff] %vm1376, %v1337
      %1406 = vst.msk [vmem:[#allocation2 + $0xe8] sm:$0xff] %vm1376, %v1339
      %1407 = vst.msk [vmem:[#allocation2 + $0xf0] sm:$0xff] %vm1376, %v1341
      %1408 = vst.msk [vmem:[#allocation2 + $0xf8] sm:$0xff] %vm1376, %v1343
      %1409 = vrot.lane.b32.xlu0 %v250, 36
      %v1410 = vpop.permute.xlu0 %1409
      %1411 = vrot.lane.b32.xlu0 %v251, 36
      %v1412 = vpop.permute.xlu0 %1411
      %1413 = vrot.lane.b32.xlu0 %v252, 36
      %v1414 = vpop.permute.xlu0 %1413
      %1415 = vrot.lane.b32.xlu0 %v253, 36
      %v1416 = vpop.permute.xlu0 %1415
      %1417 = vrot.lane.b32.xlu0 %v254, 36
      %v1418 = vpop.permute.xlu0 %1417
      %1419 = vrot.lane.b32.xlu0 %v255, 36
      %v1420 = vpop.permute.xlu0 %1419
      %1421 = vrot.lane.b32.xlu0 %v256, 36
      %v1422 = vpop.permute.xlu0 %1421
      %1423 = vrot.lane.b32.xlu0 %v257, 36
      %v1424 = vpop.permute.xlu0 %1423
      %1425 = vrot.lane.b32.xlu0 %v258, 36
      %v1426 = vpop.permute.xlu0 %1425
      %1427 = vrot.lane.b32.xlu0 %v259, 36
      %v1428 = vpop.permute.xlu0 %1427
      %1429 = vrot.lane.b32.xlu0 %v260, 36
      %v1430 = vpop.permute.xlu0 %1429
      %1431 = vrot.lane.b32.xlu0 %v261, 36
      %v1432 = vpop.permute.xlu0 %1431
      %1433 = vrot.lane.b32.xlu0 %v262, 36
      %v1434 = vpop.permute.xlu0 %1433
      %1435 = vrot.lane.b32.xlu0 %v263, 36
      %v1436 = vpop.permute.xlu0 %1435
      %1437 = vrot.lane.b32.xlu0 %v264, 36
      %v1438 = vpop.permute.xlu0 %1437
      %1439 = vrot.lane.b32.xlu0 %v265, 36
      %v1440 = vpop.permute.xlu0 %1439
      %1441 = vrot.lane.b32.xlu0 %v266, 36
      %v1442 = vpop.permute.xlu0 %1441
      %1443 = vrot.lane.b32.xlu0 %v267, 36
      %v1444 = vpop.permute.xlu0 %1443
      %1445 = vrot.lane.b32.xlu0 %v268, 36
      %v1446 = vpop.permute.xlu0 %1445
      %1447 = vrot.lane.b32.xlu0 %v269, 36
      %v1448 = vpop.permute.xlu0 %1447
      %1449 = vrot.lane.b32.xlu0 %v270, 36
      %v1450 = vpop.permute.xlu0 %1449
      %1451 = vrot.lane.b32.xlu0 %v271, 36
      %v1452 = vpop.permute.xlu0 %1451
      %1453 = vrot.lane.b32.xlu0 %v272, 36
      %v1454 = vpop.permute.xlu0 %1453
      %1455 = vrot.lane.b32.xlu0 %v273, 36
      %v1456 = vpop.permute.xlu0 %1455
      %1457 = vrot.lane.b32.xlu0 %v274, 36
      %v1458 = vpop.permute.xlu0 %1457
      %1459 = vrot.lane.b32.xlu0 %v275, 36
      %v1460 = vpop.permute.xlu0 %1459
      %1461 = vrot.lane.b32.xlu0 %v276, 36
      %v1462 = vpop.permute.xlu0 %1461
      %1463 = vrot.lane.b32.xlu0 %v277, 36
      %v1464 = vpop.permute.xlu0 %1463
      %1465 = vrot.lane.b32.xlu0 %v278, 36
      %v1466 = vpop.permute.xlu0 %1465
      %1467 = vrot.lane.b32.xlu0 %v279, 36
      %v1468 = vpop.permute.xlu0 %1467
      %1469 = vrot.lane.b32.xlu0 %v280, 36
      %v1470 = vpop.permute.xlu0 %1469
      %1471 = vrot.lane.b32.xlu0 %v281, 36
      %v1472 = vpop.permute.xlu0 %1471
      %vm1505 = vcmask 326944
      %1506 = vst.msk [vmem:[#allocation2] sm:$0xff] %vm1505, %v1410
      %1507 = vst.msk [vmem:[#allocation2 + $0x8] sm:$0xff] %vm1505, %v1412
      %1508 = vst.msk [vmem:[#allocation2 + $0x10] sm:$0xff] %vm1505, %v1414
      %1509 = vst.msk [vmem:[#allocation2 + $0x18] sm:$0xff] %vm1505, %v1416
      %1510 = vst.msk [vmem:[#allocation2 + $0x20] sm:$0xff] %vm1505, %v1418
      %1511 = vst.msk [vmem:[#allocation2 + $0x28] sm:$0xff] %vm1505, %v1420
      %1512 = vst.msk [vmem:[#allocation2 + $0x30] sm:$0xff] %vm1505, %v1422
      %1513 = vst.msk [vmem:[#allocation2 + $0x38] sm:$0xff] %vm1505, %v1424
      %1514 = vst.msk [vmem:[#allocation2 + $0x40] sm:$0xff] %vm1505, %v1426
      %1515 = vst.msk [vmem:[#allocation2 + $0x48] sm:$0xff] %vm1505, %v1428
      %1516 = vst.msk [vmem:[#allocation2 + $0x50] sm:$0xff] %vm1505, %v1430
      %1517 = vst.msk [vmem:[#allocation2 + $0x58] sm:$0xff] %vm1505, %v1432
      %1518 = vst.msk [vmem:[#allocation2 + $0x60] sm:$0xff] %vm1505, %v1434
      %1519 = vst.msk [vmem:[#allocation2 + $0x68] sm:$0xff] %vm1505, %v1436
      %1520 = vst.msk [vmem:[#allocation2 + $0x70] sm:$0xff] %vm1505, %v1438
      %1521 = vst.msk [vmem:[#allocation2 + $0x78] sm:$0xff] %vm1505, %v1440
      %1522 = vst.msk [vmem:[#allocation2 + $0x80] sm:$0xff] %vm1505, %v1442
      %1523 = vst.msk [vmem:[#allocation2 + $0x88] sm:$0xff] %vm1505, %v1444
      %1524 = vst.msk [vmem:[#allocation2 + $0x90] sm:$0xff] %vm1505, %v1446
      %1525 = vst.msk [vmem:[#allocation2 + $0x98] sm:$0xff] %vm1505, %v1448
      %1526 = vst.msk [vmem:[#allocation2 + $0xa0] sm:$0xff] %vm1505, %v1450
      %1527 = vst.msk [vmem:[#allocation2 + $0xa8] sm:$0xff] %vm1505, %v1452
      %1528 = vst.msk [vmem:[#allocation2 + $0xb0] sm:$0xff] %vm1505, %v1454
      %1529 = vst.msk [vmem:[#allocation2 + $0xb8] sm:$0xff] %vm1505, %v1456
      %1530 = vst.msk [vmem:[#allocation2 + $0xc0] sm:$0xff] %vm1505, %v1458
      %1531 = vst.msk [vmem:[#allocation2 + $0xc8] sm:$0xff] %vm1505, %v1460
      %1532 = vst.msk [vmem:[#allocation2 + $0xd0] sm:$0xff] %vm1505, %v1462
      %1533 = vst.msk [vmem:[#allocation2 + $0xd8] sm:$0xff] %vm1505, %v1464
      %1534 = vst.msk [vmem:[#allocation2 + $0xe0] sm:$0xff] %vm1505, %v1466
      %1535 = vst.msk [vmem:[#allocation2 + $0xe8] sm:$0xff] %vm1505, %v1468
      %1536 = vst.msk [vmem:[#allocation2 + $0xf0] sm:$0xff] %vm1505, %v1470
      %1537 = vst.msk [vmem:[#allocation2 + $0xf8] sm:$0xff] %vm1505, %v1472
      %1538 = vrot.lane.b32.xlu0 %v218, 40
      %v1539 = vpop.permute.xlu0 %1538
      %1540 = vrot.lane.b32.xlu0 %v219, 40
      %v1541 = vpop.permute.xlu0 %1540
      %1542 = vrot.lane.b32.xlu0 %v220, 40
      %v1543 = vpop.permute.xlu0 %1542
      %1544 = vrot.lane.b32.xlu0 %v221, 40
      %v1545 = vpop.permute.xlu0 %1544
      %1546 = vrot.lane.b32.xlu0 %v222, 40
      %v1547 = vpop.permute.xlu0 %1546
      %1548 = vrot.lane.b32.xlu0 %v223, 40
      %v1549 = vpop.permute.xlu0 %1548
      %1550 = vrot.lane.b32.xlu0 %v224, 40
      %v1551 = vpop.permute.xlu0 %1550
      %1552 = vrot.lane.b32.xlu0 %v225, 40
      %v1553 = vpop.permute.xlu0 %1552
      %1554 = vrot.lane.b32.xlu0 %v226, 40
      %v1555 = vpop.permute.xlu0 %1554
      %1556 = vrot.lane.b32.xlu0 %v227, 40
      %v1557 = vpop.permute.xlu0 %1556
      %1558 = vrot.lane.b32.xlu0 %v228, 40
      %v1559 = vpop.permute.xlu0 %1558
      %1560 = vrot.lane.b32.xlu0 %v229, 40
      %v1561 = vpop.permute.xlu0 %1560
      %1562 = vrot.lane.b32.xlu0 %v230, 40
      %v1563 = vpop.permute.xlu0 %1562
      %1564 = vrot.lane.b32.xlu0 %v231, 40
      %v1565 = vpop.permute.xlu0 %1564
      %1566 = vrot.lane.b32.xlu0 %v232, 40
      %v1567 = vpop.permute.xlu0 %1566
      %1568 = vrot.lane.b32.xlu0 %v233, 40
      %v1569 = vpop.permute.xlu0 %1568
      %1570 = vrot.lane.b32.xlu0 %v234, 40
      %v1571 = vpop.permute.xlu0 %1570
      %1572 = vrot.lane.b32.xlu0 %v235, 40
      %v1573 = vpop.permute.xlu0 %1572
      %1574 = vrot.lane.b32.xlu0 %v236, 40
      %v1575 = vpop.permute.xlu0 %1574
      %1576 = vrot.lane.b32.xlu0 %v237, 40
      %v1577 = vpop.permute.xlu0 %1576
      %1578 = vrot.lane.b32.xlu0 %v238, 40
      %v1579 = vpop.permute.xlu0 %1578
      %1580 = vrot.lane.b32.xlu0 %v239, 40
      %v1581 = vpop.permute.xlu0 %1580
      %1582 = vrot.lane.b32.xlu0 %v240, 40
      %v1583 = vpop.permute.xlu0 %1582
      %1584 = vrot.lane.b32.xlu0 %v241, 40
      %v1585 = vpop.permute.xlu0 %1584
      %1586 = vrot.lane.b32.xlu0 %v242, 40
      %v1587 = vpop.permute.xlu0 %1586
      %1588 = vrot.lane.b32.xlu0 %v243, 40
      %v1589 = vpop.permute.xlu0 %1588
      %1590 = vrot.lane.b32.xlu0 %v244, 40
      %v1591 = vpop.permute.xlu0 %1590
      %1592 = vrot.lane.b32.xlu0 %v245, 40
      %v1593 = vpop.permute.xlu0 %1592
      %1594 = vrot.lane.b32.xlu0 %v246, 40
      %v1595 = vpop.permute.xlu0 %1594
      %1596 = vrot.lane.b32.xlu0 %v247, 40
      %v1597 = vpop.permute.xlu0 %1596
      %1598 = vrot.lane.b32.xlu0 %v248, 40
      %v1599 = vpop.permute.xlu0 %1598
      %1600 = vrot.lane.b32.xlu0 %v249, 40
      %v1601 = vpop.permute.xlu0 %1600
      %vm1634 = vcmask 359745
      %1635 = vst.msk [vmem:[#allocation2 - $0x1] sm:$0xfe] %vm1634, %v1539
      %vm1636 = vcmask 359744
      %1637 = vst.msk [vmem:[#allocation2 + $0x7] sm:$0xff] %vm1636, %v1541
      %1638 = vst.msk [vmem:[#allocation2 + $0xf] sm:$0xfe] %vm1634, %v1543
      %1639 = vst.msk [vmem:[#allocation2 + $0x17] sm:$0xff] %vm1636, %v1545
      %1640 = vst.msk [vmem:[#allocation2 + $0x1f] sm:$0xfe] %vm1634, %v1547
      %1641 = vst.msk [vmem:[#allocation2 + $0x27] sm:$0xff] %vm1636, %v1549
      %1642 = vst.msk [vmem:[#allocation2 + $0x2f] sm:$0xfe] %vm1634, %v1551
      %1643 = vst.msk [vmem:[#allocation2 + $0x37] sm:$0xff] %vm1636, %v1553
      %1644 = vst.msk [vmem:[#allocation2 + $0x3f] sm:$0xfe] %vm1634, %v1555
      %1645 = vst.msk [vmem:[#allocation2 + $0x47] sm:$0xff] %vm1636, %v1557
      %1646 = vst.msk [vmem:[#allocation2 + $0x4f] sm:$0xfe] %vm1634, %v1559
      %1647 = vst.msk [vmem:[#allocation2 + $0x57] sm:$0xff] %vm1636, %v1561
      %1648 = vst.msk [vmem:[#allocation2 + $0x5f] sm:$0xfe] %vm1634, %v1563
      %1649 = vst.msk [vmem:[#allocation2 + $0x67] sm:$0xff] %vm1636, %v1565
      %1650 = vst.msk [vmem:[#allocation2 + $0x6f] sm:$0xfe] %vm1634, %v1567
      %1651 = vst.msk [vmem:[#allocation2 + $0x77] sm:$0xff] %vm1636, %v1569
      %1652 = vst.msk [vmem:[#allocation2 + $0x7f] sm:$0xfe] %vm1634, %v1571
      %1653 = vst.msk [vmem:[#allocation2 + $0x87] sm:$0xff] %vm1636, %v1573
      %1654 = vst.msk [vmem:[#allocation2 + $0x8f] sm:$0xfe] %vm1634, %v1575
      %1655 = vst.msk [vmem:[#allocation2 + $0x97] sm:$0xff] %vm1636, %v1577
      %1656 = vst.msk [vmem:[#allocation2 + $0x9f] sm:$0xfe] %vm1634, %v1579
      %1657 = vst.msk [vmem:[#allocation2 + $0xa7] sm:$0xff] %vm1636, %v1581
      %1658 = vst.msk [vmem:[#allocation2 + $0xaf] sm:$0xfe] %vm1634, %v1583
      %1659 = vst.msk [vmem:[#allocation2 + $0xb7] sm:$0xff] %vm1636, %v1585
      %1660 = vst.msk [vmem:[#allocation2 + $0xbf] sm:$0xfe] %vm1634, %v1587
      %1661 = vst.msk [vmem:[#allocation2 + $0xc7] sm:$0xff] %vm1636, %v1589
      %1662 = vst.msk [vmem:[#allocation2 + $0xcf] sm:$0xfe] %vm1634, %v1591
      %1663 = vst.msk [vmem:[#allocation2 + $0xd7] sm:$0xff] %vm1636, %v1593
      %1664 = vst.msk [vmem:[#allocation2 + $0xdf] sm:$0xfe] %vm1634, %v1595
      %1665 = vst.msk [vmem:[#allocation2 + $0xe7] sm:$0xff] %vm1636, %v1597
      %1666 = vst.msk [vmem:[#allocation2 + $0xef] sm:$0xfe] %vm1634, %v1599
      %1667 = vst.msk [vmem:[#allocation2 + $0xf7] sm:$0xff] %vm1636, %v1601
      %1668 = vrot.lane.b32.xlu0 %v250, 44
      %v1669 = vpop.permute.xlu0 %1668
      %1670 = vrot.lane.b32.xlu0 %v251, 44
      %v1671 = vpop.permute.xlu0 %1670
      %1672 = vrot.lane.b32.xlu0 %v252, 44
      %v1673 = vpop.permute.xlu0 %1672
      %1674 = vrot.lane.b32.xlu0 %v253, 44
      %v1675 = vpop.permute.xlu0 %1674
      %1676 = vrot.lane.b32.xlu0 %v254, 44
      %v1677 = vpop.permute.xlu0 %1676
      %1678 = vrot.lane.b32.xlu0 %v255, 44
      %v1679 = vpop.permute.xlu0 %1678
      %1680 = vrot.lane.b32.xlu0 %v256, 44
      %v1681 = vpop.permute.xlu0 %1680
      %1682 = vrot.lane.b32.xlu0 %v257, 44
      %v1683 = vpop.permute.xlu0 %1682
      %1684 = vrot.lane.b32.xlu0 %v258, 44
      %v1685 = vpop.permute.xlu0 %1684
      %1686 = vrot.lane.b32.xlu0 %v259, 44
      %v1687 = vpop.permute.xlu0 %1686
      %1688 = vrot.lane.b32.xlu0 %v260, 44
      %v1689 = vpop.permute.xlu0 %1688
      %1690 = vrot.lane.b32.xlu0 %v261, 44
      %v1691 = vpop.permute.xlu0 %1690
      %1692 = vrot.lane.b32.xlu0 %v262, 44
      %v1693 = vpop.permute.xlu0 %1692
      %1694 = vrot.lane.b32.xlu0 %v263, 44
      %v1695 = vpop.permute.xlu0 %1694
      %1696 = vrot.lane.b32.xlu0 %v264, 44
      %v1697 = vpop.permute.xlu0 %1696
      %1698 = vrot.lane.b32.xlu0 %v265, 44
      %v1699 = vpop.permute.xlu0 %1698
      %1700 = vrot.lane.b32.xlu0 %v266, 44
      %v1701 = vpop.permute.xlu0 %1700
      %1702 = vrot.lane.b32.xlu0 %v267, 44
      %v1703 = vpop.permute.xlu0 %1702
      %1704 = vrot.lane.b32.xlu0 %v268, 44
      %v1705 = vpop.permute.xlu0 %1704
      %1706 = vrot.lane.b32.xlu0 %v269, 44
      %v1707 = vpop.permute.xlu0 %1706
      %1708 = vrot.lane.b32.xlu0 %v270, 44
      %v1709 = vpop.permute.xlu0 %1708
      %1710 = vrot.lane.b32.xlu0 %v271, 44
      %v1711 = vpop.permute.xlu0 %1710
      %1712 = vrot.lane.b32.xlu0 %v272, 44
      %v1713 = vpop.permute.xlu0 %1712
      %1714 = vrot.lane.b32.xlu0 %v273, 44
      %v1715 = vpop.permute.xlu0 %1714
      %1716 = vrot.lane.b32.xlu0 %v274, 44
      %v1717 = vpop.permute.xlu0 %1716
      %1718 = vrot.lane.b32.xlu0 %v275, 44
      %v1719 = vpop.permute.xlu0 %1718
      %1720 = vrot.lane.b32.xlu0 %v276, 44
      %v1721 = vpop.permute.xlu0 %1720
      %1722 = vrot.lane.b32.xlu0 %v277, 44
      %v1723 = vpop.permute.xlu0 %1722
      %1724 = vrot.lane.b32.xlu0 %v278, 44
      %v1725 = vpop.permute.xlu0 %1724
      %1726 = vrot.lane.b32.xlu0 %v279, 44
      %v1727 = vpop.permute.xlu0 %1726
      %1728 = vrot.lane.b32.xlu0 %v280, 44
      %v1729 = vpop.permute.xlu0 %1728
      %1730 = vrot.lane.b32.xlu0 %v281, 44
      %v1731 = vpop.permute.xlu0 %1730
      %vm1764 = vcmask 392545
      %1765 = vst.msk [vmem:[#allocation2 - $0x1] sm:$0xfe] %vm1764, %v1669
      %vm1766 = vcmask 392544
      %1767 = vst.msk [vmem:[#allocation2 + $0x7] sm:$0xff] %vm1766, %v1671
      %1768 = vst.msk [vmem:[#allocation2 + $0xf] sm:$0xfe] %vm1764, %v1673
      %1769 = vst.msk [vmem:[#allocation2 + $0x17] sm:$0xff] %vm1766, %v1675
      %1770 = vst.msk [vmem:[#allocation2 + $0x1f] sm:$0xfe] %vm1764, %v1677
      %1771 = vst.msk [vmem:[#allocation2 + $0x27] sm:$0xff] %vm1766, %v1679
      %1772 = vst.msk [vmem:[#allocation2 + $0x2f] sm:$0xfe] %vm1764, %v1681
      %1773 = vst.msk [vmem:[#allocation2 + $0x37] sm:$0xff] %vm1766, %v1683
      %1774 = vst.msk [vmem:[#allocation2 + $0x3f] sm:$0xfe] %vm1764, %v1685
      %1775 = vst.msk [vmem:[#allocation2 + $0x47] sm:$0xff] %vm1766, %v1687
      %1776 = vst.msk [vmem:[#allocation2 + $0x4f] sm:$0xfe] %vm1764, %v1689
      %1777 = vst.msk [vmem:[#allocation2 + $0x57] sm:$0xff] %vm1766, %v1691
      %1778 = vst.msk [vmem:[#allocation2 + $0x5f] sm:$0xfe] %vm1764, %v1693
      %1779 = vst.msk [vmem:[#allocation2 + $0x67] sm:$0xff] %vm1766, %v1695
      %1780 = vst.msk [vmem:[#allocation2 + $0x6f] sm:$0xfe] %vm1764, %v1697
      %1781 = vst.msk [vmem:[#allocation2 + $0x77] sm:$0xff] %vm1766, %v1699
      %1782 = vst.msk [vmem:[#allocation2 + $0x7f] sm:$0xfe] %vm1764, %v1701
      %1783 = vst.msk [vmem:[#allocation2 + $0x87] sm:$0xff] %vm1766, %v1703
      %1784 = vst.msk [vmem:[#allocation2 + $0x8f] sm:$0xfe] %vm1764, %v1705
      %1785 = vst.msk [vmem:[#allocation2 + $0x97] sm:$0xff] %vm1766, %v1707
      %1786 = vst.msk [vmem:[#allocation2 + $0x9f] sm:$0xfe] %vm1764, %v1709
      %1787 = vst.msk [vmem:[#allocation2 + $0xa7] sm:$0xff] %vm1766, %v1711
      %1788 = vst.msk [vmem:[#allocation2 + $0xaf] sm:$0xfe] %vm1764, %v1713
      %1789 = vst.msk [vmem:[#allocation2 + $0xb7] sm:$0xff] %vm1766, %v1715
      %1790 = vst.msk [vmem:[#allocation2 + $0xbf] sm:$0xfe] %vm1764, %v1717
      %1791 = vst.msk [vmem:[#allocation2 + $0xc7] sm:$0xff] %vm1766, %v1719
      %1792 = vst.msk [vmem:[#allocation2 + $0xcf] sm:$0xfe] %vm1764, %v1721
      %1793 = vst.msk [vmem:[#allocation2 + $0xd7] sm:$0xff] %vm1766, %v1723
      %1794 = vst.msk [vmem:[#allocation2 + $0xdf] sm:$0xfe] %vm1764, %v1725
      %1795 = vst.msk [vmem:[#allocation2 + $0xe7] sm:$0xff] %vm1766, %v1727
      %1796 = vst.msk [vmem:[#allocation2 + $0xef] sm:$0xfe] %vm1764, %v1729
      %1797 = vst.msk [vmem:[#allocation2 + $0xf7] sm:$0xff] %vm1766, %v1731
      %1798 = vrot.lane.b32.xlu0 %v220, 48
      %v1799 = vpop.permute.xlu0 %1798
      %1800 = vrot.lane.b32.xlu0 %v221, 48
      %v1801 = vpop.permute.xlu0 %1800
      %1802 = vrot.lane.b32.xlu0 %v222, 48
      %v1803 = vpop.permute.xlu0 %1802
      %1804 = vrot.lane.b32.xlu0 %v223, 48
      %v1805 = vpop.permute.xlu0 %1804
      %1806 = vrot.lane.b32.xlu0 %v224, 48
      %v1807 = vpop.permute.xlu0 %1806
      %1808 = vrot.lane.b32.xlu0 %v225, 48
      %v1809 = vpop.permute.xlu0 %1808
      %1810 = vrot.lane.b32.xlu0 %v226, 48
      %v1811 = vpop.permute.xlu0 %1810
      %1812 = vrot.lane.b32.xlu0 %v227, 48
      %v1813 = vpop.permute.xlu0 %1812
      %1814 = vrot.lane.b32.xlu0 %v228, 48
      %v1815 = vpop.permute.xlu0 %1814
      %1816 = vrot.lane.b32.xlu0 %v229, 48
      %v1817 = vpop.permute.xlu0 %1816
      %1818 = vrot.lane.b32.xlu0 %v230, 48
      %v1819 = vpop.permute.xlu0 %1818
      %1820 = vrot.lane.b32.xlu0 %v231, 48
      %v1821 = vpop.permute.xlu0 %1820
      %1822 = vrot.lane.b32.xlu0 %v232, 48
      %v1823 = vpop.permute.xlu0 %1822
      %1824 = vrot.lane.b32.xlu0 %v233, 48
      %v1825 = vpop.permute.xlu0 %1824
      %1826 = vrot.lane.b32.xlu0 %v234, 48
      %v1827 = vpop.permute.xlu0 %1826
      %1828 = vrot.lane.b32.xlu0 %v235, 48
      %v1829 = vpop.permute.xlu0 %1828
      %1830 = vrot.lane.b32.xlu0 %v236, 48
      %v1831 = vpop.permute.xlu0 %1830
      %1832 = vrot.lane.b32.xlu0 %v237, 48
      %v1833 = vpop.permute.xlu0 %1832
      %1834 = vrot.lane.b32.xlu0 %v238, 48
      %v1835 = vpop.permute.xlu0 %1834
      %1836 = vrot.lane.b32.xlu0 %v239, 48
      %v1837 = vpop.permute.xlu0 %1836
      %1838 = vrot.lane.b32.xlu0 %v240, 48
      %v1839 = vpop.permute.xlu0 %1838
      %1840 = vrot.lane.b32.xlu0 %v241, 48
      %v1841 = vpop.permute.xlu0 %1840
      %1842 = vrot.lane.b32.xlu0 %v242, 48
      %v1843 = vpop.permute.xlu0 %1842
      %1844 = vrot.lane.b32.xlu0 %v243, 48
      %v1845 = vpop.permute.xlu0 %1844
      %1846 = vrot.lane.b32.xlu0 %v244, 48
      %v1847 = vpop.permute.xlu0 %1846
      %1848 = vrot.lane.b32.xlu0 %v245, 48
      %v1849 = vpop.permute.xlu0 %1848
      %1850 = vrot.lane.b32.xlu0 %v246, 48
      %v1851 = vpop.permute.xlu0 %1850
      %1852 = vrot.lane.b32.xlu0 %v247, 48
      %v1853 = vpop.permute.xlu0 %1852
      %1854 = vrot.lane.b32.xlu0 %v248, 48
      %v1855 = vpop.permute.xlu0 %1854
      %1856 = vrot.lane.b32.xlu0 %v249, 48
      %v1857 = vpop.permute.xlu0 %1856
      %vm1888 = vcmask 425344
      %1889 = vst.msk [vmem:[#allocation2 + $0x1] sm:$0xff] %vm1888, %v1799
      %vm1890 = vcmask 424320
      %1891 = vst.msk [vmem:[#allocation2 + $0x9] sm:$0x7f] %vm1890, %v1801
      %1892 = vst.msk [vmem:[#allocation2 + $0x11] sm:$0xff] %vm1888, %v1803
      %1893 = vst.msk [vmem:[#allocation2 + $0x19] sm:$0x7f] %vm1890, %v1805
      %1894 = vst.msk [vmem:[#allocation2 + $0x21] sm:$0xff] %vm1888, %v1807
      %1895 = vst.msk [vmem:[#allocation2 + $0x29] sm:$0x7f] %vm1890, %v1809
      %1896 = vst.msk [vmem:[#allocation2 + $0x31] sm:$0xff] %vm1888, %v1811
      %1897 = vst.msk [vmem:[#allocation2 + $0x39] sm:$0x7f] %vm1890, %v1813
      %1898 = vst.msk [vmem:[#allocation2 + $0x41] sm:$0xff] %vm1888, %v1815
      %1899 = vst.msk [vmem:[#allocation2 + $0x49] sm:$0x7f] %vm1890, %v1817
      %1900 = vst.msk [vmem:[#allocation2 + $0x51] sm:$0xff] %vm1888, %v1819
      %1901 = vst.msk [vmem:[#allocation2 + $0x59] sm:$0x7f] %vm1890, %v1821
      %1902 = vst.msk [vmem:[#allocation2 + $0x61] sm:$0xff] %vm1888, %v1823
      %1903 = vst.msk [vmem:[#allocation2 + $0x69] sm:$0x7f] %vm1890, %v1825
      %1904 = vst.msk [vmem:[#allocation2 + $0x71] sm:$0xff] %vm1888, %v1827
      %1905 = vst.msk [vmem:[#allocation2 + $0x79] sm:$0x7f] %vm1890, %v1829
      %1906 = vst.msk [vmem:[#allocation2 + $0x81] sm:$0xff] %vm1888, %v1831
      %1907 = vst.msk [vmem:[#allocation2 + $0x89] sm:$0x7f] %vm1890, %v1833
      %1908 = vst.msk [vmem:[#allocation2 + $0x91] sm:$0xff] %vm1888, %v1835
      %1909 = vst.msk [vmem:[#allocation2 + $0x99] sm:$0x7f] %vm1890, %v1837
      %1910 = vst.msk [vmem:[#allocation2 + $0xa1] sm:$0xff] %vm1888, %v1839
      %1911 = vst.msk [vmem:[#allocation2 + $0xa9] sm:$0x7f] %vm1890, %v1841
      %1912 = vst.msk [vmem:[#allocation2 + $0xb1] sm:$0xff] %vm1888, %v1843
      %1913 = vst.msk [vmem:[#allocation2 + $0xb9] sm:$0x7f] %vm1890, %v1845
      %1914 = vst.msk [vmem:[#allocation2 + $0xc1] sm:$0xff] %vm1888, %v1847
      %1915 = vst.msk [vmem:[#allocation2 + $0xc9] sm:$0x7f] %vm1890, %v1849
      %1916 = vst.msk [vmem:[#allocation2 + $0xd1] sm:$0xff] %vm1888, %v1851
      %1917 = vst.msk [vmem:[#allocation2 + $0xd9] sm:$0x7f] %vm1890, %v1853
      %1918 = vst.msk [vmem:[#allocation2 + $0xe1] sm:$0xff] %vm1888, %v1855
      %1919 = vst.msk [vmem:[#allocation2 + $0xe9] sm:$0x7f] %vm1890, %v1857
      %1920 = vrot.lane.b32.xlu0 %v252, 52
      %v1921 = vpop.permute.xlu0 %1920
      %1922 = vrot.lane.b32.xlu0 %v253, 52
      %v1923 = vpop.permute.xlu0 %1922
      %1924 = vrot.lane.b32.xlu0 %v254, 52
      %v1925 = vpop.permute.xlu0 %1924
      %1926 = vrot.lane.b32.xlu0 %v255, 52
      %v1927 = vpop.permute.xlu0 %1926
      %1928 = vrot.lane.b32.xlu0 %v256, 52
      %v1929 = vpop.permute.xlu0 %1928
      %1930 = vrot.lane.b32.xlu0 %v257, 52
      %v1931 = vpop.permute.xlu0 %1930
      %1932 = vrot.lane.b32.xlu0 %v258, 52
      %v1933 = vpop.permute.xlu0 %1932
      %1934 = vrot.lane.b32.xlu0 %v259, 52
      %v1935 = vpop.permute.xlu0 %1934
      %1936 = vrot.lane.b32.xlu0 %v260, 52
      %v1937 = vpop.permute.xlu0 %1936
      %1938 = vrot.lane.b32.xlu0 %v261, 52
      %v1939 = vpop.permute.xlu0 %1938
      %1940 = vrot.lane.b32.xlu0 %v262, 52
      %v1941 = vpop.permute.xlu0 %1940
      %1942 = vrot.lane.b32.xlu0 %v263, 52
      %v1943 = vpop.permute.xlu0 %1942
      %1944 = vrot.lane.b32.xlu0 %v264, 52
      %v1945 = vpop.permute.xlu0 %1944
      %1946 = vrot.lane.b32.xlu0 %v265, 52
      %v1947 = vpop.permute.xlu0 %1946
      %1948 = vrot.lane.b32.xlu0 %v266, 52
      %v1949 = vpop.permute.xlu0 %1948
      %1950 = vrot.lane.b32.xlu0 %v267, 52
      %v1951 = vpop.permute.xlu0 %1950
      %1952 = vrot.lane.b32.xlu0 %v268, 52
      %v1953 = vpop.permute.xlu0 %1952
      %1954 = vrot.lane.b32.xlu0 %v269, 52
      %v1955 = vpop.permute.xlu0 %1954
      %1956 = vrot.lane.b32.xlu0 %v270, 52
      %v1957 = vpop.permute.xlu0 %1956
      %1958 = vrot.lane.b32.xlu0 %v271, 52
      %v1959 = vpop.permute.xlu0 %1958
      %1960 = vrot.lane.b32.xlu0 %v272, 52
      %v1961 = vpop.permute.xlu0 %1960
      %1962 = vrot.lane.b32.xlu0 %v273, 52
      %v1963 = vpop.permute.xlu0 %1962
      %1964 = vrot.lane.b32.xlu0 %v274, 52
      %v1965 = vpop.permute.xlu0 %1964
      %1966 = vrot.lane.b32.xlu0 %v275, 52
      %v1967 = vpop.permute.xlu0 %1966
      %1968 = vrot.lane.b32.xlu0 %v276, 52
      %v1969 = vpop.permute.xlu0 %1968
      %1970 = vrot.lane.b32.xlu0 %v277, 52
      %v1971 = vpop.permute.xlu0 %1970
      %1972 = vrot.lane.b32.xlu0 %v278, 52
      %v1973 = vpop.permute.xlu0 %1972
      %1974 = vrot.lane.b32.xlu0 %v279, 52
      %v1975 = vpop.permute.xlu0 %1974
      %1976 = vrot.lane.b32.xlu0 %v280, 52
      %v1977 = vpop.permute.xlu0 %1976
      %1978 = vrot.lane.b32.xlu0 %v281, 52
      %v1979 = vpop.permute.xlu0 %1978
      %vm2010 = vcmask 458144
      %2011 = vst.msk [vmem:[#allocation2 + $0x1] sm:$0xff] %vm2010, %v1921
      %vm2012 = vcmask 457120
      %2013 = vst.msk [vmem:[#allocation2 + $0x9] sm:$0x7f] %vm2012, %v1923
      %2014 = vst.msk [vmem:[#allocation2 + $0x11] sm:$0xff] %vm2010, %v1925
      %2015 = vst.msk [vmem:[#allocation2 + $0x19] sm:$0x7f] %vm2012, %v1927
      %2016 = vst.msk [vmem:[#allocation2 + $0x21] sm:$0xff] %vm2010, %v1929
      %2017 = vst.msk [vmem:[#allocation2 + $0x29] sm:$0x7f] %vm2012, %v1931
      %2018 = vst.msk [vmem:[#allocation2 + $0x31] sm:$0xff] %vm2010, %v1933
      %2019 = vst.msk [vmem:[#allocation2 + $0x39] sm:$0x7f] %vm2012, %v1935
      %2020 = vst.msk [vmem:[#allocation2 + $0x41] sm:$0xff] %vm2010, %v1937
      %2021 = vst.msk [vmem:[#allocation2 + $0x49] sm:$0x7f] %vm2012, %v1939
      %2022 = vst.msk [vmem:[#allocation2 + $0x51] sm:$0xff] %vm2010, %v1941
      %2023 = vst.msk [vmem:[#allocation2 + $0x59] sm:$0x7f] %vm2012, %v1943
      %2024 = vst.msk [vmem:[#allocation2 + $0x61] sm:$0xff] %vm2010, %v1945
      %2025 = vst.msk [vmem:[#allocation2 + $0x69] sm:$0x7f] %vm2012, %v1947
      %2026 = vst.msk [vmem:[#allocation2 + $0x71] sm:$0xff] %vm2010, %v1949
      %2027 = vst.msk [vmem:[#allocation2 + $0x79] sm:$0x7f] %vm2012, %v1951
      %2028 = vst.msk [vmem:[#allocation2 + $0x81] sm:$0xff] %vm2010, %v1953
      %2029 = vst.msk [vmem:[#allocation2 + $0x89] sm:$0x7f] %vm2012, %v1955
      %2030 = vst.msk [vmem:[#allocation2 + $0x91] sm:$0xff] %vm2010, %v1957
      %2031 = vst.msk [vmem:[#allocation2 + $0x99] sm:$0x7f] %vm2012, %v1959
      %2032 = vst.msk [vmem:[#allocation2 + $0xa1] sm:$0xff] %vm2010, %v1961
      %2033 = vst.msk [vmem:[#allocation2 + $0xa9] sm:$0x7f] %vm2012, %v1963
      %2034 = vst.msk [vmem:[#allocation2 + $0xb1] sm:$0xff] %vm2010, %v1965
      %2035 = vst.msk [vmem:[#allocation2 + $0xb9] sm:$0x7f] %vm2012, %v1967
      %2036 = vst.msk [vmem:[#allocation2 + $0xc1] sm:$0xff] %vm2010, %v1969
      %2037 = vst.msk [vmem:[#allocation2 + $0xc9] sm:$0x7f] %vm2012, %v1971
      %2038 = vst.msk [vmem:[#allocation2 + $0xd1] sm:$0xff] %vm2010, %v1973
      %2039 = vst.msk [vmem:[#allocation2 + $0xd9] sm:$0x7f] %vm2012, %v1975
      %2040 = vst.msk [vmem:[#allocation2 + $0xe1] sm:$0xff] %vm2010, %v1977
      %2041 = vst.msk [vmem:[#allocation2 + $0xe9] sm:$0x7f] %vm2012, %v1979
      %2042 = vrot.lane.b32.xlu0 %v220, 56
      %v2043 = vpop.permute.xlu0 %2042
      %2044 = vrot.lane.b32.xlu0 %v221, 56
      %v2045 = vpop.permute.xlu0 %2044
      %2046 = vrot.lane.b32.xlu0 %v222, 56
      %v2047 = vpop.permute.xlu0 %2046
      %2048 = vrot.lane.b32.xlu0 %v223, 56
      %v2049 = vpop.permute.xlu0 %2048
      %2050 = vrot.lane.b32.xlu0 %v224, 56
      %v2051 = vpop.permute.xlu0 %2050
      %2052 = vrot.lane.b32.xlu0 %v225, 56
      %v2053 = vpop.permute.xlu0 %2052
      %2054 = vrot.lane.b32.xlu0 %v226, 56
      %v2055 = vpop.permute.xlu0 %2054
      %2056 = vrot.lane.b32.xlu0 %v227, 56
      %v2057 = vpop.permute.xlu0 %2056
      %2058 = vrot.lane.b32.xlu0 %v228, 56
      %v2059 = vpop.permute.xlu0 %2058
      %2060 = vrot.lane.b32.xlu0 %v229, 56
      %v2061 = vpop.permute.xlu0 %2060
      %2062 = vrot.lane.b32.xlu0 %v230, 56
      %v2063 = vpop.permute.xlu0 %2062
      %2064 = vrot.lane.b32.xlu0 %v231, 56
      %v2065 = vpop.permute.xlu0 %2064
      %2066 = vrot.lane.b32.xlu0 %v232, 56
      %v2067 = vpop.permute.xlu0 %2066
      %2068 = vrot.lane.b32.xlu0 %v233, 56
      %v2069 = vpop.permute.xlu0 %2068
      %2070 = vrot.lane.b32.xlu0 %v234, 56
      %v2071 = vpop.permute.xlu0 %2070
      %2072 = vrot.lane.b32.xlu0 %v235, 56
      %v2073 = vpop.permute.xlu0 %2072
      %2074 = vrot.lane.b32.xlu0 %v236, 56
      %v2075 = vpop.permute.xlu0 %2074
      %2076 = vrot.lane.b32.xlu0 %v237, 56
      %v2077 = vpop.permute.xlu0 %2076
      %2078 = vrot.lane.b32.xlu0 %v238, 56
      %v2079 = vpop.permute.xlu0 %2078
      %2080 = vrot.lane.b32.xlu0 %v239, 56
      %v2081 = vpop.permute.xlu0 %2080
      %2082 = vrot.lane.b32.xlu0 %v240, 56
      %v2083 = vpop.permute.xlu0 %2082
      %2084 = vrot.lane.b32.xlu0 %v241, 56
      %v2085 = vpop.permute.xlu0 %2084
      %2086 = vrot.lane.b32.xlu0 %v242, 56
      %v2087 = vpop.permute.xlu0 %2086
      %2088 = vrot.lane.b32.xlu0 %v243, 56
      %v2089 = vpop.permute.xlu0 %2088
      %2090 = vrot.lane.b32.xlu0 %v244, 56
      %v2091 = vpop.permute.xlu0 %2090
      %2092 = vrot.lane.b32.xlu0 %v245, 56
      %v2093 = vpop.permute.xlu0 %2092
      %2094 = vrot.lane.b32.xlu0 %v246, 56
      %v2095 = vpop.permute.xlu0 %2094
      %2096 = vrot.lane.b32.xlu0 %v247, 56
      %v2097 = vpop.permute.xlu0 %2096
      %2098 = vrot.lane.b32.xlu0 %v248, 56
      %v2099 = vpop.permute.xlu0 %2098
      %2100 = vrot.lane.b32.xlu0 %v249, 56
      %v2101 = vpop.permute.xlu0 %2100
      %vm2132 = vcmask 490944
      %2133 = vst.msk [vmem:[#allocation2] sm:$0xff] %vm2132, %v2043
      %2134 = vst.msk [vmem:[#allocation2 + $0x8] sm:$0xff] %vm2132, %v2045
      %2135 = vst.msk [vmem:[#allocation2 + $0x10] sm:$0xff] %vm2132, %v2047
      %2136 = vst.msk [vmem:[#allocation2 + $0x18] sm:$0xff] %vm2132, %v2049
      %2137 = vst.msk [vmem:[#allocation2 + $0x20] sm:$0xff] %vm2132, %v2051
      %2138 = vst.msk [vmem:[#allocation2 + $0x28] sm:$0xff] %vm2132, %v2053
      %2139 = vst.msk [vmem:[#allocation2 + $0x30] sm:$0xff] %vm2132, %v2055
      %2140 = vst.msk [vmem:[#allocation2 + $0x38] sm:$0xff] %vm2132, %v2057
      %2141 = vst.msk [vmem:[#allocation2 + $0x40] sm:$0xff] %vm2132, %v2059
      %2142 = vst.msk [vmem:[#allocation2 + $0x48] sm:$0xff] %vm2132, %v2061
      %2143 = vst.msk [vmem:[#allocation2 + $0x50] sm:$0xff] %vm2132, %v2063
      %2144 = vst.msk [vmem:[#allocation2 + $0x58] sm:$0xff] %vm2132, %v2065
      %2145 = vst.msk [vmem:[#allocation2 + $0x60] sm:$0xff] %vm2132, %v2067
      %2146 = vst.msk [vmem:[#allocation2 + $0x68] sm:$0xff] %vm2132, %v2069
      %2147 = vst.msk [vmem:[#allocation2 + $0x70] sm:$0xff] %vm2132, %v2071
      %2148 = vst.msk [vmem:[#allocation2 + $0x78] sm:$0xff] %vm2132, %v2073
      %2149 = vst.msk [vmem:[#allocation2 + $0x80] sm:$0xff] %vm2132, %v2075
      %2150 = vst.msk [vmem:[#allocation2 + $0x88] sm:$0xff] %vm2132, %v2077
      %2151 = vst.msk [vmem:[#allocation2 + $0x90] sm:$0xff] %vm2132, %v2079
      %2152 = vst.msk [vmem:[#allocation2 + $0x98] sm:$0xff] %vm2132, %v2081
      %2153 = vst.msk [vmem:[#allocation2 + $0xa0] sm:$0xff] %vm2132, %v2083
      %2154 = vst.msk [vmem:[#allocation2 + $0xa8] sm:$0xff] %vm2132, %v2085
      %2155 = vst.msk [vmem:[#allocation2 + $0xb0] sm:$0xff] %vm2132, %v2087
      %2156 = vst.msk [vmem:[#allocation2 + $0xb8] sm:$0xff] %vm2132, %v2089
      %2157 = vst.msk [vmem:[#allocation2 + $0xc0] sm:$0xff] %vm2132, %v2091
      %2158 = vst.msk [vmem:[#allocation2 + $0xc8] sm:$0xff] %vm2132, %v2093
      %2159 = vst.msk [vmem:[#allocation2 + $0xd0] sm:$0xff] %vm2132, %v2095
      %2160 = vst.msk [vmem:[#allocation2 + $0xd8] sm:$0xff] %vm2132, %v2097
      %2161 = vst.msk [vmem:[#allocation2 + $0xe0] sm:$0xff] %vm2132, %v2099
      %2162 = vst.msk [vmem:[#allocation2 + $0xe8] sm:$0xff] %vm2132, %v2101
      %2163 = vrot.lane.b32.xlu0 %v252, 60
      %v2164 = vpop.permute.xlu0 %2163
      %2165 = vrot.lane.b32.xlu0 %v253, 60
      %v2166 = vpop.permute.xlu0 %2165
      %2167 = vrot.lane.b32.xlu0 %v254, 60
      %v2168 = vpop.permute.xlu0 %2167
      %2169 = vrot.lane.b32.xlu0 %v255, 60
      %v2170 = vpop.permute.xlu0 %2169
      %2171 = vrot.lane.b32.xlu0 %v256, 60
      %v2172 = vpop.permute.xlu0 %2171
      %2173 = vrot.lane.b32.xlu0 %v257, 60
      %v2174 = vpop.permute.xlu0 %2173
      %2175 = vrot.lane.b32.xlu0 %v258, 60
      %v2176 = vpop.permute.xlu0 %2175
      %2177 = vrot.lane.b32.xlu0 %v259, 60
      %v2178 = vpop.permute.xlu0 %2177
      %2179 = vrot.lane.b32.xlu0 %v260, 60
      %v2180 = vpop.permute.xlu0 %2179
      %2181 = vrot.lane.b32.xlu0 %v261, 60
      %v2182 = vpop.permute.xlu0 %2181
      %2183 = vrot.lane.b32.xlu0 %v262, 60
      %v2184 = vpop.permute.xlu0 %2183
      %2185 = vrot.lane.b32.xlu0 %v263, 60
      %v2186 = vpop.permute.xlu0 %2185
      %2187 = vrot.lane.b32.xlu0 %v264, 60
      %v2188 = vpop.permute.xlu0 %2187
      %2189 = vrot.lane.b32.xlu0 %v265, 60
      %v2190 = vpop.permute.xlu0 %2189
      %2191 = vrot.lane.b32.xlu0 %v266, 60
      %v2192 = vpop.permute.xlu0 %2191
      %2193 = vrot.lane.b32.xlu0 %v267, 60
      %v2194 = vpop.permute.xlu0 %2193
      %2195 = vrot.lane.b32.xlu0 %v268, 60
      %v2196 = vpop.permute.xlu0 %2195
      %2197 = vrot.lane.b32.xlu0 %v269, 60
      %v2198 = vpop.permute.xlu0 %2197
      %2199 = vrot.lane.b32.xlu0 %v270, 60
      %v2200 = vpop.permute.xlu0 %2199
      %2201 = vrot.lane.b32.xlu0 %v271, 60
      %v2202 = vpop.permute.xlu0 %2201
      %2203 = vrot.lane.b32.xlu0 %v272, 60
      %v2204 = vpop.permute.xlu0 %2203
      %2205 = vrot.lane.b32.xlu0 %v273, 60
      %v2206 = vpop.permute.xlu0 %2205
      %2207 = vrot.lane.b32.xlu0 %v274, 60
      %v2208 = vpop.permute.xlu0 %2207
      %2209 = vrot.lane.b32.xlu0 %v275, 60
      %v2210 = vpop.permute.xlu0 %2209
      %2211 = vrot.lane.b32.xlu0 %v276, 60
      %v2212 = vpop.permute.xlu0 %2211
      %2213 = vrot.lane.b32.xlu0 %v277, 60
      %v2214 = vpop.permute.xlu0 %2213
      %2215 = vrot.lane.b32.xlu0 %v278, 60
      %v2216 = vpop.permute.xlu0 %2215
      %2217 = vrot.lane.b32.xlu0 %v279, 60
      %v2218 = vpop.permute.xlu0 %2217
      %2219 = vrot.lane.b32.xlu0 %v280, 60
      %v2220 = vpop.permute.xlu0 %2219
      %2221 = vrot.lane.b32.xlu0 %v281, 60
      %v2222 = vpop.permute.xlu0 %2221
      %vm2253 = vcmask 523744
      %2254 = vst.msk [vmem:[#allocation2] sm:$0xff] %vm2253, %v2164
      %2255 = vst.msk [vmem:[#allocation2 + $0x8] sm:$0xff] %vm2253, %v2166
      %2256 = vst.msk [vmem:[#allocation2 + $0x10] sm:$0xff] %vm2253, %v2168
      %2257 = vst.msk [vmem:[#allocation2 + $0x18] sm:$0xff] %vm2253, %v2170
      %2258 = vst.msk [vmem:[#allocation2 + $0x20] sm:$0xff] %vm2253, %v2172
      %2259 = vst.msk [vmem:[#allocation2 + $0x28] sm:$0xff] %vm2253, %v2174
      %2260 = vst.msk [vmem:[#allocation2 + $0x30] sm:$0xff] %vm2253, %v2176
      %2261 = vst.msk [vmem:[#allocation2 + $0x38] sm:$0xff] %vm2253, %v2178
      %2262 = vst.msk [vmem:[#allocation2 + $0x40] sm:$0xff] %vm2253, %v2180
      %2263 = vst.msk [vmem:[#allocation2 + $0x48] sm:$0xff] %vm2253, %v2182
      %2264 = vst.msk [vmem:[#allocation2 + $0x50] sm:$0xff] %vm2253, %v2184
      %2265 = vst.msk [vmem:[#allocation2 + $0x58] sm:$0xff] %vm2253, %v2186
      %2266 = vst.msk [vmem:[#allocation2 + $0x60] sm:$0xff] %vm2253, %v2188
      %2267 = vst.msk [vmem:[#allocation2 + $0x68] sm:$0xff] %vm2253, %v2190
      %2268 = vst.msk [vmem:[#allocation2 + $0x70] sm:$0xff] %vm2253, %v2192
      %2269 = vst.msk [vmem:[#allocation2 + $0x78] sm:$0xff] %vm2253, %v2194
      %2270 = vst.msk [vmem:[#allocation2 + $0x80] sm:$0xff] %vm2253, %v2196
      %2271 = vst.msk [vmem:[#allocation2 + $0x88] sm:$0xff] %vm2253, %v2198
      %2272 = vst.msk [vmem:[#allocation2 + $0x90] sm:$0xff] %vm2253, %v2200
      %2273 = vst.msk [vmem:[#allocation2 + $0x98] sm:$0xff] %vm2253, %v2202
      %2274 = vst.msk [vmem:[#allocation2 + $0xa0] sm:$0xff] %vm2253, %v2204
      %2275 = vst.msk [vmem:[#allocation2 + $0xa8] sm:$0xff] %vm2253, %v2206
      %2276 = vst.msk [vmem:[#allocation2 + $0xb0] sm:$0xff] %vm2253, %v2208
      %2277 = vst.msk [vmem:[#allocation2 + $0xb8] sm:$0xff] %vm2253, %v2210
      %2278 = vst.msk [vmem:[#allocation2 + $0xc0] sm:$0xff] %vm2253, %v2212
      %2279 = vst.msk [vmem:[#allocation2 + $0xc8] sm:$0xff] %vm2253, %v2214
      %2280 = vst.msk [vmem:[#allocation2 + $0xd0] sm:$0xff] %vm2253, %v2216
      %2281 = vst.msk [vmem:[#allocation2 + $0xd8] sm:$0xff] %vm2253, %v2218
      %2282 = vst.msk [vmem:[#allocation2 + $0xe0] sm:$0xff] %vm2253, %v2220
      %2283 = vst.msk [vmem:[#allocation2 + $0xe8] sm:$0xff] %vm2253, %v2222
      %2284 = vrot.lane.b32.xlu0 %v220, 64
      %v2285 = vpop.permute.xlu0 %2284
      %2286 = vrot.lane.b32.xlu0 %v221, 64
      %v2287 = vpop.permute.xlu0 %2286
      %2288 = vrot.lane.b32.xlu0 %v222, 64
      %v2289 = vpop.permute.xlu0 %2288
      %2290 = vrot.lane.b32.xlu0 %v223, 64
      %v2291 = vpop.permute.xlu0 %2290
      %2292 = vrot.lane.b32.xlu0 %v224, 64
      %v2293 = vpop.permute.xlu0 %2292
      %2294 = vrot.lane.b32.xlu0 %v225, 64
      %v2295 = vpop.permute.xlu0 %2294
      %2296 = vrot.lane.b32.xlu0 %v226, 64
      %v2297 = vpop.permute.xlu0 %2296
      %2298 = vrot.lane.b32.xlu0 %v227, 64
      %v2299 = vpop.permute.xlu0 %2298
      %2300 = vrot.lane.b32.xlu0 %v228, 64
      %v2301 = vpop.permute.xlu0 %2300
      %2302 = vrot.lane.b32.xlu0 %v229, 64
      %v2303 = vpop.permute.xlu0 %2302
      %2304 = vrot.lane.b32.xlu0 %v230, 64
      %v2305 = vpop.permute.xlu0 %2304
      %2306 = vrot.lane.b32.xlu0 %v231, 64
      %v2307 = vpop.permute.xlu0 %2306
      %2308 = vrot.lane.b32.xlu0 %v232, 64
      %v2309 = vpop.permute.xlu0 %2308
      %2310 = vrot.lane.b32.xlu0 %v233, 64
      %v2311 = vpop.permute.xlu0 %2310
      %2312 = vrot.lane.b32.xlu0 %v234, 64
      %v2313 = vpop.permute.xlu0 %2312
      %2314 = vrot.lane.b32.xlu0 %v235, 64
      %v2315 = vpop.permute.xlu0 %2314
      %2316 = vrot.lane.b32.xlu0 %v236, 64
      %v2317 = vpop.permute.xlu0 %2316
      %2318 = vrot.lane.b32.xlu0 %v237, 64
      %v2319 = vpop.permute.xlu0 %2318
      %2320 = vrot.lane.b32.xlu0 %v238, 64
      %v2321 = vpop.permute.xlu0 %2320
      %2322 = vrot.lane.b32.xlu0 %v239, 64
      %v2323 = vpop.permute.xlu0 %2322
      %2324 = vrot.lane.b32.xlu0 %v240, 64
      %v2325 = vpop.permute.xlu0 %2324
      %2326 = vrot.lane.b32.xlu0 %v241, 64
      %v2327 = vpop.permute.xlu0 %2326
      %2328 = vrot.lane.b32.xlu0 %v242, 64
      %v2329 = vpop.permute.xlu0 %2328
      %2330 = vrot.lane.b32.xlu0 %v243, 64
      %v2331 = vpop.permute.xlu0 %2330
      %2332 = vrot.lane.b32.xlu0 %v244, 64
      %v2333 = vpop.permute.xlu0 %2332
      %2334 = vrot.lane.b32.xlu0 %v245, 64
      %v2335 = vpop.permute.xlu0 %2334
      %2336 = vrot.lane.b32.xlu0 %v246, 64
      %v2337 = vpop.permute.xlu0 %2336
      %2338 = vrot.lane.b32.xlu0 %v247, 64
      %v2339 = vpop.permute.xlu0 %2338
      %2340 = vrot.lane.b32.xlu0 %v248, 64
      %v2341 = vpop.permute.xlu0 %2340
      %2342 = vrot.lane.b32.xlu0 %v249, 64
      %v2343 = vpop.permute.xlu0 %2342
      %vm2374 = vcmask 556545
      %2375 = vst.msk [vmem:[#allocation2 - $0x1] sm:$0xfe] %vm2374, %v2285
      %vm2376 = vcmask 556544
      %2377 = vst.msk [vmem:[#allocation2 + $0x7] sm:$0xff] %vm2376, %v2287
      %2378 = vst.msk [vmem:[#allocation2 + $0xf] sm:$0xfe] %vm2374, %v2289
      %2379 = vst.msk [vmem:[#allocation2 + $0x17] sm:$0xff] %vm2376, %v2291
      %2380 = vst.msk [vmem:[#allocation2 + $0x1f] sm:$0xfe] %vm2374, %v2293
      %2381 = vst.msk [vmem:[#allocation2 + $0x27] sm:$0xff] %vm2376, %v2295
      %2382 = vst.msk [vmem:[#allocation2 + $0x2f] sm:$0xfe] %vm2374, %v2297
      %2383 = vst.msk [vmem:[#allocation2 + $0x37] sm:$0xff] %vm2376, %v2299
      %2384 = vst.msk [vmem:[#allocation2 + $0x3f] sm:$0xfe] %vm2374, %v2301
      %2385 = vst.msk [vmem:[#allocation2 + $0x47] sm:$0xff] %vm2376, %v2303
      %2386 = vst.msk [vmem:[#allocation2 + $0x4f] sm:$0xfe] %vm2374, %v2305
      %2387 = vst.msk [vmem:[#allocation2 + $0x57] sm:$0xff] %vm2376, %v2307
      %2388 = vst.msk [vmem:[#allocation2 + $0x5f] sm:$0xfe] %vm2374, %v2309
      %2389 = vst.msk [vmem:[#allocation2 + $0x67] sm:$0xff] %vm2376, %v2311
      %2390 = vst.msk [vmem:[#allocation2 + $0x6f] sm:$0xfe] %vm2374, %v2313
      %2391 = vst.msk [vmem:[#allocation2 + $0x77] sm:$0xff] %vm2376, %v2315
      %2392 = vst.msk [vmem:[#allocation2 + $0x7f] sm:$0xfe] %vm2374, %v2317
      %2393 = vst.msk [vmem:[#allocation2 + $0x87] sm:$0xff] %vm2376, %v2319
      %2394 = vst.msk [vmem:[#allocation2 + $0x8f] sm:$0xfe] %vm2374, %v2321
      %2395 = vst.msk [vmem:[#allocation2 + $0x97] sm:$0xff] %vm2376, %v2323
      %2396 = vst.msk [vmem:[#allocation2 + $0x9f] sm:$0xfe] %vm2374, %v2325
      %2397 = vst.msk [vmem:[#allocation2 + $0xa7] sm:$0xff] %vm2376, %v2327
      %2398 = vst.msk [vmem:[#allocation2 + $0xaf] sm:$0xfe] %vm2374, %v2329
      %2399 = vst.msk [vmem:[#allocation2 + $0xb7] sm:$0xff] %vm2376, %v2331
      %2400 = vst.msk [vmem:[#allocation2 + $0xbf] sm:$0xfe] %vm2374, %v2333
      %2401 = vst.msk [vmem:[#allocation2 + $0xc7] sm:$0xff] %vm2376, %v2335
      %2402 = vst.msk [vmem:[#allocation2 + $0xcf] sm:$0xfe] %vm2374, %v2337
      %2403 = vst.msk [vmem:[#allocation2 + $0xd7] sm:$0xff] %vm2376, %v2339
      %2404 = vst.msk [vmem:[#allocation2 + $0xdf] sm:$0xfe] %vm2374, %v2341
      %2405 = vst.msk [vmem:[#allocation2 + $0xe7] sm:$0xff] %vm2376, %v2343
      %2406 = vrot.lane.b32.xlu0 %v252, 68
      %v2407 = vpop.permute.xlu0 %2406
      %2408 = vrot.lane.b32.xlu0 %v253, 68
      %v2409 = vpop.permute.xlu0 %2408
      %2410 = vrot.lane.b32.xlu0 %v254, 68
      %v2411 = vpop.permute.xlu0 %2410
      %2412 = vrot.lane.b32.xlu0 %v255, 68
      %v2413 = vpop.permute.xlu0 %2412
      %2414 = vrot.lane.b32.xlu0 %v256, 68
      %v2415 = vpop.permute.xlu0 %2414
      %2416 = vrot.lane.b32.xlu0 %v257, 68
      %v2417 = vpop.permute.xlu0 %2416
      %2418 = vrot.lane.b32.xlu0 %v258, 68
      %v2419 = vpop.permute.xlu0 %2418
      %2420 = vrot.lane.b32.xlu0 %v259, 68
      %v2421 = vpop.permute.xlu0 %2420
      %2422 = vrot.lane.b32.xlu0 %v260, 68
      %v2423 = vpop.permute.xlu0 %2422
      %2424 = vrot.lane.b32.xlu0 %v261, 68
      %v2425 = vpop.permute.xlu0 %2424
      %2426 = vrot.lane.b32.xlu0 %v262, 68
      %v2427 = vpop.permute.xlu0 %2426
      %2428 = vrot.lane.b32.xlu0 %v263, 68
      %v2429 = vpop.permute.xlu0 %2428
      %2430 = vrot.lane.b32.xlu0 %v264, 68
      %v2431 = vpop.permute.xlu0 %2430
      %2432 = vrot.lane.b32.xlu0 %v265, 68
      %v2433 = vpop.permute.xlu0 %2432
      %2434 = vrot.lane.b32.xlu0 %v266, 68
      %v2435 = vpop.permute.xlu0 %2434
      %2436 = vrot.lane.b32.xlu0 %v267, 68
      %v2437 = vpop.permute.xlu0 %2436
      %2438 = vrot.lane.b32.xlu0 %v268, 68
      %v2439 = vpop.permute.xlu0 %2438
      %2440 = vrot.lane.b32.xlu0 %v269, 68
      %v2441 = vpop.permute.xlu0 %2440
      %2442 = vrot.lane.b32.xlu0 %v270, 68
      %v2443 = vpop.permute.xlu0 %2442
      %2444 = vrot.lane.b32.xlu0 %v271, 68
      %v2445 = vpop.permute.xlu0 %2444
      %2446 = vrot.lane.b32.xlu0 %v272, 68
      %v2447 = vpop.permute.xlu0 %2446
      %2448 = vrot.lane.b32.xlu0 %v273, 68
      %v2449 = vpop.permute.xlu0 %2448
      %2450 = vrot.lane.b32.xlu0 %v274, 68
      %v2451 = vpop.permute.xlu0 %2450
      %2452 = vrot.lane.b32.xlu0 %v275, 68
      %v2453 = vpop.permute.xlu0 %2452
      %2454 = vrot.lane.b32.xlu0 %v276, 68
      %v2455 = vpop.permute.xlu0 %2454
      %2456 = vrot.lane.b32.xlu0 %v277, 68
      %v2457 = vpop.permute.xlu0 %2456
      %2458 = vrot.lane.b32.xlu0 %v278, 68
      %v2459 = vpop.permute.xlu0 %2458
      %2460 = vrot.lane.b32.xlu0 %v279, 68
      %v2461 = vpop.permute.xlu0 %2460
      %2462 = vrot.lane.b32.xlu0 %v280, 68
      %v2463 = vpop.permute.xlu0 %2462
      %2464 = vrot.lane.b32.xlu0 %v281, 68
      %v2465 = vpop.permute.xlu0 %2464
      %vm2496 = vcmask 589345
      %2497 = vst.msk [vmem:[#allocation2 - $0x1] sm:$0xfe] %vm2496, %v2407
      %vm2498 = vcmask 589344
      %2499 = vst.msk [vmem:[#allocation2 + $0x7] sm:$0xff] %vm2498, %v2409
      %2500 = vst.msk [vmem:[#allocation2 + $0xf] sm:$0xfe] %vm2496, %v2411
      %2501 = vst.msk [vmem:[#allocation2 + $0x17] sm:$0xff] %vm2498, %v2413
      %2502 = vst.msk [vmem:[#allocation2 + $0x1f] sm:$0xfe] %vm2496, %v2415
      %2503 = vst.msk [vmem:[#allocation2 + $0x27] sm:$0xff] %vm2498, %v2417
      %2504 = vst.msk [vmem:[#allocation2 + $0x2f] sm:$0xfe] %vm2496, %v2419
      %2505 = vst.msk [vmem:[#allocation2 + $0x37] sm:$0xff] %vm2498, %v2421
      %2506 = vst.msk [vmem:[#allocation2 + $0x3f] sm:$0xfe] %vm2496, %v2423
      %2507 = vst.msk [vmem:[#allocation2 + $0x47] sm:$0xff] %vm2498, %v2425
      %2508 = vst.msk [vmem:[#allocation2 + $0x4f] sm:$0xfe] %vm2496, %v2427
      %2509 = vst.msk [vmem:[#allocation2 + $0x57] sm:$0xff] %vm2498, %v2429
      %2510 = vst.msk [vmem:[#allocation2 + $0x5f] sm:$0xfe] %vm2496, %v2431
      %2511 = vst.msk [vmem:[#allocation2 + $0x67] sm:$0xff] %vm2498, %v2433
      %2512 = vst.msk [vmem:[#allocation2 + $0x6f] sm:$0xfe] %vm2496, %v2435
      %2513 = vst.msk [vmem:[#allocation2 + $0x77] sm:$0xff] %vm2498, %v2437
      %2514 = vst.msk [vmem:[#allocation2 + $0x7f] sm:$0xfe] %vm2496, %v2439
      %2515 = vst.msk [vmem:[#allocation2 + $0x87] sm:$0xff] %vm2498, %v2441
      %2516 = vst.msk [vmem:[#allocation2 + $0x8f] sm:$0xfe] %vm2496, %v2443
      %2517 = vst.msk [vmem:[#allocation2 + $0x97] sm:$0xff] %vm2498, %v2445
      %2518 = vst.msk [vmem:[#allocation2 + $0x9f] sm:$0xfe] %vm2496, %v2447
      %2519 = vst.msk [vmem:[#allocation2 + $0xa7] sm:$0xff] %vm2498, %v2449
      %2520 = vst.msk [vmem:[#allocation2 + $0xaf] sm:$0xfe] %vm2496, %v2451
      %2521 = vst.msk [vmem:[#allocation2 + $0xb7] sm:$0xff] %vm2498, %v2453
      %2522 = vst.msk [vmem:[#allocation2 + $0xbf] sm:$0xfe] %vm2496, %v2455
      %2523 = vst.msk [vmem:[#allocation2 + $0xc7] sm:$0xff] %vm2498, %v2457
      %2524 = vst.msk [vmem:[#allocation2 + $0xcf] sm:$0xfe] %vm2496, %v2459
      %2525 = vst.msk [vmem:[#allocation2 + $0xd7] sm:$0xff] %vm2498, %v2461
      %2526 = vst.msk [vmem:[#allocation2 + $0xdf] sm:$0xfe] %vm2496, %v2463
      %2527 = vst.msk [vmem:[#allocation2 + $0xe7] sm:$0xff] %vm2498, %v2465
      %v2528 = vld [vmem:[#allocation2] sm:$0xff]
      %v2529 = vld [vmem:[#allocation2 + $0x8] sm:$0xff]
      %v2530 = vld [vmem:[#allocation2 + $0x10] sm:$0xff]
      %v2531 = vld [vmem:[#allocation2 + $0x18] sm:$0xff]
      %v2532 = vld [vmem:[#allocation2 + $0x20] sm:$0xff]
      %v2533 = vld [vmem:[#allocation2 + $0x28] sm:$0xff]
      %v2534 = vld [vmem:[#allocation2 + $0x30] sm:$0xff]
      %v2535 = vld [vmem:[#allocation2 + $0x38] sm:$0xff]
      %v2536 = vld [vmem:[#allocation2 + $0x40] sm:$0xff]
      %v2537 = vld [vmem:[#allocation2 + $0x48] sm:$0xff]
      %v2538 = vld [vmem:[#allocation2 + $0x50] sm:$0xff]
      %v2539 = vld [vmem:[#allocation2 + $0x58] sm:$0xff]
      %v2540 = vld [vmem:[#allocation2 + $0x60] sm:$0xff]
      %v2541 = vld [vmem:[#allocation2 + $0x68] sm:$0xff]
      %v2542 = vld [vmem:[#allocation2 + $0x70] sm:$0xff]
      %v2543 = vld [vmem:[#allocation2 + $0x78] sm:$0xff]
      %v2544 = vld [vmem:[#allocation2 + $0x80] sm:$0xff]
      %v2545 = vld [vmem:[#allocation2 + $0x88] sm:$0xff]
      %v2546 = vld [vmem:[#allocation2 + $0x90] sm:$0xff]
      %v2547 = vld [vmem:[#allocation2 + $0x98] sm:$0xff]
      %v2548 = vld [vmem:[#allocation2 + $0xa0] sm:$0xff]
      %v2549 = vld [vmem:[#allocation2 + $0xa8] sm:$0xff]
      %v2550 = vld [vmem:[#allocation2 + $0xb0] sm:$0xff]
      %v2551 = vld [vmem:[#allocation2 + $0xb8] sm:$0xff]
      %v2552 = vld [vmem:[#allocation2 + $0xc0] sm:$0xff]
      %v2553 = vld [vmem:[#allocation2 + $0xc8] sm:$0xff]
      %v2554 = vld [vmem:[#allocation2 + $0xd0] sm:$0xff]
      %v2555 = vld [vmem:[#allocation2 + $0xd8] sm:$0xff]
      %v2556 = vld [vmem:[#allocation2 + $0xe0] sm:$0xff]
      %v2557 = vld [vmem:[#allocation2 + $0xe8] sm:$0xff]
      %v2558 = vld [vmem:[#allocation2 + $0xf0] sm:$0xff]
      %v2559 = vld [vmem:[#allocation2 + $0xf8] sm:$0xff]
      %v2560 = vld [vmem:[%s2] sm:$0xff]
      %v2561 = vld [vmem:[%s2 + $0x8] sm:$0xff]
      %v2562 = vld [vmem:[%s2 + $0x10] sm:$0xff]
      %v2563 = vld [vmem:[%s2 + $0x18] sm:$0xff]
      %v2564 = vld [vmem:[%s2 + $0x20] sm:$0xff]
      %v2565 = vld [vmem:[%s2 + $0x28] sm:$0xff]
      %v2566 = vld [vmem:[%s2 + $0x30] sm:$0xff]
      %v2567 = vld [vmem:[%s2 + $0x38] sm:$0xff]
      %v2568 = vld [vmem:[%s2 + $0x40] sm:$0xff]
      %v2569 = vld [vmem:[%s3] sm:$0x1]
      %v2571 = vlaneseq
      %v2572 = vshrl.u32 %v2571, 7
      %v2573 = vsub.s32 0, %v2572
      %v2574 = vrot.slane %v2569, %v2573
      %v2577 = vsel %vm282, %v2528, 0
      %v2580 = vsel %vm282, %v2529, 0
      %v2583 = vsel %vm282, %v2530, 0
      %v2586 = vsel %vm282, %v2531, 0
      %v2589 = vsel %vm282, %v2532, 0
      %v2592 = vsel %vm282, %v2533, 0
      %v2595 = vsel %vm282, %v2534, 0
      %v2598 = vsel %vm282, %v2535, 0
      %v2601 = vsel %vm282, %v2536, 0
      %v2604 = vsel %vm282, %v2537, 0
      %v2607 = vsel %vm282, %v2538, 0
      %v2610 = vsel %vm282, %v2539, 0
      %v2613 = vsel %vm282, %v2540, 0
      %v2616 = vsel %vm282, %v2541, 0
      %v2619 = vsel %vm282, %v2542, 0
      %v2622 = vsel %vm282, %v2543, 0
      %v2625 = vsel %vm282, %v2544, 0
      %v2628 = vsel %vm282, %v2545, 0
      %v2631 = vsel %vm282, %v2546, 0
      %v2634 = vsel %vm282, %v2547, 0
      %v2637 = vsel %vm282, %v2548, 0
      %v2640 = vsel %vm282, %v2549, 0
      %v2643 = vsel %vm282, %v2550, 0
      %v2646 = vsel %vm282, %v2551, 0
      %v2649 = vsel %vm282, %v2552, 0
      %v2652 = vsel %vm282, %v2553, 0
      %v2655 = vsel %vm282, %v2554, 0
      %v2658 = vsel %vm282, %v2555, 0
      %v2661 = vsel %vm282, %v2556, 0
      %v2664 = vsel %vm282, %v2557, 0
      %v2667 = vsel %vm282, %v2558, 0
      %v2670 = vsel %vm282, %v2559, 0
      %2672 = vmatprep.subr.mxu0 0.0
      %2673 = vmatpush1.msra.mxu0 %v2560
      %2674 = vmatprep.subr.mxu0 0.0
      %2675 = vmatpush1.msra.mxu0 %v2561
      %2676 = vmatprep.subr.mxu0 0.0
      %2677 = vmatpush1.msra.mxu0 %v2562
      %2678 = vmatprep.subr.mxu0 0.0
      %2679 = vmatpush1.msra.mxu0 %v2563
      %2680 = vmatprep.subr.mxu0 0.0
      %2681 = vmatpush1.msra.mxu0 %v2564
      %2682 = vmatprep.subr.mxu0 0.0
      %2683 = vmatpush1.msra.mxu0 %v2565
      %2684 = vmatprep.subr.mxu0 0.0
      %2685 = vmatpush1.msra.mxu0 %v2566
      %2686 = vmatprep.subr.mxu0 0.0
      %2687 = vmatpush1.msra.mxu0 %v2567
      %2688 = vmatprep.subr.mxu0 0.0
      %2689 = vmatpush1.msra.mxu0 %v2568
      %2690 = vmatprep.subr.mxu0 0.0
      %2691 = vmatpush1.msra.mxu0 0.0
      %2692 = vmatprep.subr.mxu0 0.0
      %2693 = vmatpush1.msra.mxu0 0.0
      %2694 = vmatprep.subr.mxu0 0.0
      %2695 = vmatpush1.msra.mxu0 0.0
      %2696 = vmatprep.subr.mxu0 0.0
      %2697 = vmatpush1.msra.mxu0 0.0
      %2698 = vmatprep.subr.mxu0 0.0
      %2699 = vmatpush1.msra.mxu0 0.0
      %2700 = vmatprep.subr.mxu0 0.0
      %2701 = vmatpush1.msra.mxu0 0.0
      %2702 = vmatprep.subr.mxu0 0.0
      %2703 = vmatpush1.msra.mxu0 0.0
      %2704 = vmatprep.subr.mxu0 0.0
      %2705 = vmatpush1.msra.mxu0 0.0
      %2706 = vmatprep.subr.mxu0 0.0
      %2707 = vmatpush1.msra.mxu0 0.0
      %2708 = vmatprep.subr.mxu0 0.0
      %2709 = vmatpush1.msra.mxu0 0.0
      %2710 = vmatprep.subr.mxu0 0.0
      %2711 = vmatpush1.msra.mxu0 0.0
      %2712 = vmatprep.subr.mxu0 0.0
      %2713 = vmatpush1.msra.mxu0 0.0
      %2714 = vmatprep.subr.mxu0 0.0
      %2715 = vmatpush1.msra.mxu0 0.0
      %2716 = vmatprep.subr.mxu0 0.0
      %2717 = vmatpush1.msra.mxu0 0.0
      %2718 = vmatprep.subr.mxu0 0.0
      %2719 = vmatpush1.msra.mxu0 0.0
      %2720 = vmatprep.subr.mxu0 0.0
      %2721 = vmatpush1.msra.mxu0 0.0
      %2722 = vmatprep.subr.mxu0 0.0
      %2723 = vmatpush1.msra.mxu0 0.0
      %2724 = vmatprep.subr.mxu0 0.0
      %2725 = vmatpush1.msra.mxu0 0.0
      %2726 = vmatprep.subr.mxu0 0.0
      %2727 = vmatpush1.msra.mxu0 0.0
      %2728 = vmatprep.subr.mxu0 0.0
      %2729 = vmatpush1.msra.mxu0 0.0
      %2730 = vmatprep.subr.mxu0 0.0
      %2731 = vmatpush1.msra.mxu0 0.0
      %2732 = vmatprep.subr.mxu0 0.0
      %2733 = vmatpush1.msra.mxu0 0.0
      %2734 = vmatprep.subr.mxu0 0.0
      %2735 = vmatpush1.msra.mxu0 0.0
      %2736 = vmatprep.mubr.f32.mxu0 0.0
      %2737 = vmatmul.mubr.f32.gmra.mrb[0].mxu0 %v2577
      %v2738 = vpop.f32.mrb[0].mxu0
      %v2739 = vadd.f32 %v2574, %v2738
      %v2740 = vpop.f32.mrb[0].mxu0
      %2741 = vmatprep.mubr.f32.mxu0 0.0
      %2742 = vmatmul.mubr.f32.gmra.mrb[0].mxu0 %v2580
      %v2743 = vpop.f32.mrb[0].mxu0
      %v2744 = vadd.f32 %v2574, %v2743
      %v2745 = vpop.f32.mrb[0].mxu0
      %2746 = vmatprep.mubr.f32.mxu0 0.0
      %2747 = vmatmul.mubr.f32.gmra.mrb[0].mxu0 %v2583
      %v2748 = vpop.f32.mrb[0].mxu0
      %v2749 = vadd.f32 %v2574, %v2748
      %v2750 = vpop.f32.mrb[0].mxu0
      %2751 = vmatprep.mubr.f32.mxu0 0.0
      %2752 = vmatmul.mubr.f32.gmra.mrb[0].mxu0 %v2586
      %v2753 = vpop.f32.mrb[0].mxu0
      %v2754 = vadd.f32 %v2574, %v2753
      %v2755 = vpop.f32.mrb[0].mxu0
      %2756 = vmatprep.mubr.f32.mxu0 0.0
      %2757 = vmatmul.mubr.f32.gmra.mrb[0].mxu0 %v2589
      %v2758 = vpop.f32.mrb[0].mxu0
      %v2759 = vadd.f32 %v2574, %v2758
      %v2760 = vpop.f32.mrb[0].mxu0
      %2761 = vmatprep.mubr.f32.mxu0 0.0
      %2762 = vmatmul.mubr.f32.gmra.mrb[0].mxu0 %v2592
      %v2763 = vpop.f32.mrb[0].mxu0
      %v2764 = vadd.f32 %v2574, %v2763
      %v2765 = vpop.f32.mrb[0].mxu0
      %2766 = vmatprep.mubr.f32.mxu0 0.0
      %2767 = vmatmul.mubr.f32.gmra.mrb[0].mxu0 %v2595
      %v2768 = vpop.f32.mrb[0].mxu0
      %v2769 = vadd.f32 %v2574, %v2768
      %v2770 = vpop.f32.mrb[0].mxu0
      %2771 = vmatprep.mubr.f32.mxu0 0.0
      %2772 = vmatmul.mubr.f32.gmra.mrb[0].mxu0 %v2598
      %v2773 = vpop.f32.mrb[0].mxu0
      %v2774 = vadd.f32 %v2574, %v2773
      %v2775 = vpop.f32.mrb[0].mxu0
      %2776 = vmatprep.mubr.f32.mxu0 0.0
      %2777 = vmatmul.mubr.f32.gmra.mrb[0].mxu0 %v2601
      %v2778 = vpop.f32.mrb[0].mxu0
      %v2779 = vadd.f32 %v2574, %v2778
      %v2780 = vpop.f32.mrb[0].mxu0
      %2781 = vmatprep.mubr.f32.mxu0 0.0
      %2782 = vmatmul.mubr.f32.gmra.mrb[0].mxu0 %v2604
      %v2783 = vpop.f32.mrb[0].mxu0
      %v2784 = vadd.f32 %v2574, %v2783
      %v2785 = vpop.f32.mrb[0].mxu0
      %2786 = vmatprep.mubr.f32.mxu0 0.0
      %2787 = vmatmul.mubr.f32.gmra.mrb[0].mxu0 %v2607
      %v2788 = vpop.f32.mrb[0].mxu0
      %v2789 = vadd.f32 %v2574, %v2788
      %v2790 = vpop.f32.mrb[0].mxu0
      %2791 = vmatprep.mubr.f32.mxu0 0.0
      %2792 = vmatmul.mubr.f32.gmra.mrb[0].mxu0 %v2610
      %v2793 = vpop.f32.mrb[0].mxu0
      %v2794 = vadd.f32 %v2574, %v2793
      %v2795 = vpop.f32.mrb[0].mxu0
      %2796 = vmatprep.mubr.f32.mxu0 0.0
      %2797 = vmatmul.mubr.f32.gmra.mrb[0].mxu0 %v2613
      %v2798 = vpop.f32.mrb[0].mxu0
      %v2799 = vadd.f32 %v2574, %v2798
      %v2800 = vpop.f32.mrb[0].mxu0
      %2801 = vmatprep.mubr.f32.mxu0 0.0
      %2802 = vmatmul.mubr.f32.gmra.mrb[0].mxu0 %v2616
      %v2803 = vpop.f32.mrb[0].mxu0
      %v2804 = vadd.f32 %v2574, %v2803
      %v2805 = vpop.f32.mrb[0].mxu0
      %2806 = vmatprep.mubr.f32.mxu0 0.0
      %2807 = vmatmul.mubr.f32.gmra.mrb[0].mxu0 %v2619
      %v2808 = vpop.f32.mrb[0].mxu0
      %v2809 = vadd.f32 %v2574, %v2808
      %v2810 = vpop.f32.mrb[0].mxu0
      %2811 = vmatprep.mubr.f32.mxu0 0.0
      %2812 = vmatmul.mubr.f32.gmra.mrb[0].mxu0 %v2622
      %v2813 = vpop.f32.mrb[0].mxu0
      %v2814 = vadd.f32 %v2574, %v2813
      %v2815 = vpop.f32.mrb[0].mxu0
      %2816 = vmatprep.mubr.f32.mxu0 0.0
      %2817 = vmatmul.mubr.f32.gmra.mrb[0].mxu0 %v2625
      %v2818 = vpop.f32.mrb[0].mxu0
      %v2819 = vadd.f32 %v2574, %v2818
      %v2820 = vpop.f32.mrb[0].mxu0
      %2821 = vmatprep.mubr.f32.mxu0 0.0
      %2822 = vmatmul.mubr.f32.gmra.mrb[0].mxu0 %v2628
      %v2823 = vpop.f32.mrb[0].mxu0
      %v2824 = vadd.f32 %v2574, %v2823
      %v2825 = vpop.f32.mrb[0].mxu0
      %2826 = vmatprep.mubr.f32.mxu0 0.0
      %2827 = vmatmul.mubr.f32.gmra.mrb[0].mxu0 %v2631
      %v2828 = vpop.f32.mrb[0].mxu0
      %v2829 = vadd.f32 %v2574, %v2828
      %v2830 = vpop.f32.mrb[0].mxu0
      %2831 = vmatprep.mubr.f32.mxu0 0.0
      %2832 = vmatmul.mubr.f32.gmra.mrb[0].mxu0 %v2634
      %v2833 = vpop.f32.mrb[0].mxu0
      %v2834 = vadd.f32 %v2574, %v2833
      %v2835 = vpop.f32.mrb[0].mxu0
      %2836 = vmatprep.mubr.f32.mxu0 0.0
      %2837 = vmatmul.mubr.f32.gmra.mrb[0].mxu0 %v2637
      %v2838 = vpop.f32.mrb[0].mxu0
      %v2839 = vadd.f32 %v2574, %v2838
      %v2840 = vpop.f32.mrb[0].mxu0
      %2841 = vmatprep.mubr.f32.mxu0 0.0
      %2842 = vmatmul.mubr.f32.gmra.mrb[0].mxu0 %v2640
      %v2843 = vpop.f32.mrb[0].mxu0
      %v2844 = vadd.f32 %v2574, %v2843
      %v2845 = vpop.f32.mrb[0].mxu0
      %2846 = vmatprep.mubr.f32.mxu0 0.0
      %2847 = vmatmul.mubr.f32.gmra.mrb[0].mxu0 %v2643
      %v2848 = vpop.f32.mrb[0].mxu0
      %v2849 = vadd.f32 %v2574, %v2848
      %v2850 = vpop.f32.mrb[0].mxu0
      %2851 = vmatprep.mubr.f32.mxu0 0.0
      %2852 = vmatmul.mubr.f32.gmra.mrb[0].mxu0 %v2646
      %v2853 = vpop.f32.mrb[0].mxu0
      %v2854 = vadd.f32 %v2574, %v2853
      %v2855 = vpop.f32.mrb[0].mxu0
      %2856 = vmatprep.mubr.f32.mxu0 0.0
      %2857 = vmatmul.mubr.f32.gmra.mrb[0].mxu0 %v2649
      %v2858 = vpop.f32.mrb[0].mxu0
      %v2859 = vadd.f32 %v2574, %v2858
      %v2860 = vpop.f32.mrb[0].mxu0
      %2861 = vmatprep.mubr.f32.mxu0 0.0
      %2862 = vmatmul.mubr.f32.gmra.mrb[0].mxu0 %v2652
      %v2863 = vpop.f32.mrb[0].mxu0
      %v2864 = vadd.f32 %v2574, %v2863
      %v2865 = vpop.f32.mrb[0].mxu0
      %2866 = vmatprep.mubr.f32.mxu0 0.0
      %2867 = vmatmul.mubr.f32.gmra.mrb[0].mxu0 %v2655
      %v2868 = vpop.f32.mrb[0].mxu0
      %v2869 = vadd.f32 %v2574, %v2868
      %v2870 = vpop.f32.mrb[0].mxu0
      %2871 = vmatprep.mubr.f32.mxu0 0.0
      %2872 = vmatmul.mubr.f32.gmra.mrb[0].mxu0 %v2658
      %v2873 = vpop.f32.mrb[0].mxu0
      %v2874 = vadd.f32 %v2574, %v2873
      %v2875 = vpop.f32.mrb[0].mxu0
      %2876 = vmatprep.mubr.f32.mxu0 0.0
      %2877 = vmatmul.mubr.f32.gmra.mrb[0].mxu0 %v2661
      %v2878 = vpop.f32.mrb[0].mxu0
      %v2879 = vadd.f32 %v2574, %v2878
      %v2880 = vpop.f32.mrb[0].mxu0
      %2881 = vmatprep.mubr.f32.mxu0 0.0
      %2882 = vmatmul.mubr.f32.gmra.mrb[0].mxu0 %v2664
      %v2883 = vpop.f32.mrb[0].mxu0
      %v2884 = vadd.f32 %v2574, %v2883
      %v2885 = vpop.f32.mrb[0].mxu0
      %2886 = vmatprep.mubr.f32.mxu0 0.0
      %2887 = vmatmul.mubr.f32.gmra.mrb[0].mxu0 %v2667
      %v2888 = vpop.f32.mrb[0].mxu0
      %v2889 = vadd.f32 %v2574, %v2888
      %v2890 = vpop.f32.mrb[0].mxu0
      %2891 = vmatprep.mubr.f32.mxu0 0.0
      %2892 = vmatmul.mubr.f32.gmra.mrb[0].mxu0 %v2670
      %v2893 = vpop.f32.mrb[0].mxu0
      %v2894 = vadd.f32 %v2574, %v2893
      %v2895 = vpop.f32.mrb[0].mxu0
      %2896 = vdwg.mxu0
      %v2897 = vmax.f32 %v2739, 0.0
      %v2898 = vmax.f32 %v2744, 0.0
      %v2899 = vmax.f32 %v2749, 0.0
      %v2900 = vmax.f32 %v2754, 0.0
      %v2901 = vmax.f32 %v2759, 0.0
      %v2902 = vmax.f32 %v2764, 0.0
      %v2903 = vmax.f32 %v2769, 0.0
      %v2904 = vmax.f32 %v2774, 0.0
      %v2905 = vmax.f32 %v2779, 0.0
      %v2906 = vmax.f32 %v2784, 0.0
      %v2907 = vmax.f32 %v2789, 0.0
      %v2908 = vmax.f32 %v2794, 0.0
      %v2909 = vmax.f32 %v2799, 0.0
      %v2910 = vmax.f32 %v2804, 0.0
      %v2911 = vmax.f32 %v2809, 0.0
      %v2912 = vmax.f32 %v2814, 0.0
      %v2913 = vmax.f32 %v2819, 0.0
      %v2914 = vmax.f32 %v2824, 0.0
      %v2915 = vmax.f32 %v2829, 0.0
      %v2916 = vmax.f32 %v2834, 0.0
      %v2917 = vmax.f32 %v2839, 0.0
      %v2918 = vmax.f32 %v2844, 0.0
      %v2919 = vmax.f32 %v2849, 0.0
      %v2920 = vmax.f32 %v2854, 0.0
      %v2921 = vmax.f32 %v2859, 0.0
      %v2922 = vmax.f32 %v2864, 0.0
      %v2923 = vmax.f32 %v2869, 0.0
      %v2924 = vmax.f32 %v2874, 0.0
      %v2925 = vmax.f32 %v2879, 0.0
      %v2926 = vmax.f32 %v2884, 0.0
      %v2927 = vmax.f32 %v2889, 0.0
      %v2928 = vmax.f32 %v2894, 0.0
      %2929 = vst [vmem:[%s217] sm:$0xff] %v2897
      %2930 = vst [vmem:[%s217 + $0x8] sm:$0xff] %v2898
      %2931 = vst [vmem:[%s217 + $0x10] sm:$0xff] %v2899
      %2932 = vst [vmem:[%s217 + $0x18] sm:$0xff] %v2900
      %2933 = vst [vmem:[%s217 + $0x20] sm:$0xff] %v2901
      %2934 = vst [vmem:[%s217 + $0x28] sm:$0xff] %v2902
      %2935 = vst [vmem:[%s217 + $0x30] sm:$0xff] %v2903
      %2936 = vst [vmem:[%s217 + $0x38] sm:$0xff] %v2904
      %2937 = vst [vmem:[%s217 + $0x40] sm:$0xff] %v2905
      %2938 = vst [vmem:[%s217 + $0x48] sm:$0xff] %v2906
      %2939 = vst [vmem:[%s217 + $0x50] sm:$0xff] %v2907
      %2940 = vst [vmem:[%s217 + $0x58] sm:$0xff] %v2908
      %2941 = vst [vmem:[%s217 + $0x60] sm:$0xff] %v2909
      %2942 = vst [vmem:[%s217 + $0x68] sm:$0xff] %v2910
      %2943 = vst [vmem:[%s217 + $0x70] sm:$0xff] %v2911
      %2944 = vst [vmem:[%s217 + $0x78] sm:$0xff] %v2912
      %2945 = vst [vmem:[%s217 + $0x80] sm:$0xff] %v2913
      %2946 = vst [vmem:[%s217 + $0x88] sm:$0xff] %v2914
      %2947 = vst [vmem:[%s217 + $0x90] sm:$0xff] %v2915
      %2948 = vst [vmem:[%s217 + $0x98] sm:$0xff] %v2916
      %2949 = vst [vmem:[%s217 + $0xa0] sm:$0xff] %v2917
      %2950 = vst [vmem:[%s217 + $0xa8] sm:$0xff] %v2918
      %2951 = vst [vmem:[%s217 + $0xb0] sm:$0xff] %v2919
      %2952 = vst [vmem:[%s217 + $0xb8] sm:$0xff] %v2920
      %2953 = vst [vmem:[%s217 + $0xc0] sm:$0xff] %v2921
      %2954 = vst [vmem:[%s217 + $0xc8] sm:$0xff] %v2922
      %2955 = vst [vmem:[%s217 + $0xd0] sm:$0xff] %v2923
      %2956 = vst [vmem:[%s217 + $0xd8] sm:$0xff] %v2924
      %2957 = vst [vmem:[%s217 + $0xe0] sm:$0xff] %v2925
      %2958 = vst [vmem:[%s217 + $0xe8] sm:$0xff] %v2926
      %2959 = vst [vmem:[%s217 + $0xf0] sm:$0xff] %v2927
      %2960 = vst [vmem:[%s217 + $0xf8] sm:$0xff] %v2928
      %p2961 = scmp.lt.s32.totalorder %s15, 1
      %s2962 = scalar_select %p2961, %s15, 1
      %s2963 = smul.addr %s2962, 32
      %s2964 = smul.addr %s2963, 8
      %s2965 = scalar_lea.vmem %s4, %s2964
      // Predicated region
      $region37: #{right_to_left_head_a_forward.1} parent=35 // pred_check
        %p2966 = pneg %p127
      $region38: #{right_to_left_head_a_forward.1} parent=35 // pred_check_branch
        %2968 = sbr.rel (%p2966) target = $region40
      $region39: #{right_to_left_head_a_forward.1} parent=35 // pred_region
        _
      $region40: #{right_to_left_head_a_forward.1} parent=35 // pred_fallthru
        _
    $region36: #{right_to_left_head_a_forward.1} parent=5 // pred_fallthru
      _
    %p2969 = scmp.le.s32.totalorder 2, %s10
    // Predicated region
    $region41: #{right_to_left_head_a_forward.1} parent=5 // pred_check
      %p2970 = pneg %p2969
    $region42: #{right_to_left_head_a_forward.1} parent=5 // pred_check_branch
      %2972 = sbr.rel (%p2970) target = $region44
    $region43: #{right_to_left_head_a_forward.1} parent=5 // pred_region
      %s2973 = ssub.s32 %s10, 2
      // Predicated region
      $region45: #{right_to_left_head_a_forward.1} parent=43 // pred_check
        %p2974 = pneg %p133
      $region46: #{right_to_left_head_a_forward.1} parent=43 // pred_check_branch
        %2976 = sbr.rel (%p2974) target = $region48
      $region47: #{right_to_left_head_a_forward.1} parent=43 // pred_region
        %p2977 = scmp.lt.s32.totalorder %s16, 1
        %s2978 = scalar_select %p2977, %s16, 1
        %s2979 = smul.addr %s2978, 32
        %s2980 = smul.addr %s2979, 8
        %s2981 = scalar_lea.vmem %s4, %s2980
      $region48: #{right_to_left_head_a_forward.1} parent=43 // pred_fallthru
        _
    $region44: #{right_to_left_head_a_forward.1} parent=5 // pred_fallthru
      _
  $region6: #{right_to_left_head_a_forward.1} parent=0 // loop_footer
    %s14 = sadd.s32 1, %s10
  $region7: #{right_to_left_head_a_forward.1} parent=0 // loop_footer_branch
    %9 = sbr.rel target = $region3
  $region8: #{right_to_left_head_a_forward.1} parent=0 // loop_exit
    _

</llo_original>
